<compile_context>
chip_gen: v7x
topology: tpu7x:2x2x1
jax: 0.10.0
libtpu: 0.0.40
codegen_flags: <defaults>
</compile_context>

<pallas_src>
import functools

import jax
import jax.numpy as jnp
import numpy as np
from jax.experimental import pallas as pl
from jax.experimental.pallas import tpu as pltpu


def _round_up(x, m):
    return ((x + m - 1) // m) * m


def _cdiv(a, b):
    return (a + b - 1) // b


# ----------------------------------------------------------------------------
# Pallas kernel: 3x3 conv (9 accumulating taps) + bias + ReLU
#                -> fused (score-diff | loc) 1x1 matmul + bias
#                -> sigmoid on the prob lanes (pairwise softmax identity)
# One grid step == one (image, row-group) halo slab.
# ----------------------------------------------------------------------------
def _rpn_head_kernel(x_ref, w1_ref, b1_ref, w2_ref, b2_ref, out_ref,
                     *, wp, m_out, n_prob):
    # x_ref : (R1, Cin)        bf16  padded flat halo slab (row-major (hp, wp))
    # w1_ref: (9, Cin, Cmid)   bf16  3x3 taps, tap t = dy*3 + dx
    # b1_ref: (1, Cmid)        f32
    # w2_ref: (Cmid, Cout_pad) bf16  cols [p0 logit-diff | p1 logit-diff | loc | 0]
    # b2_ref: (1, Cout_pad)    f32
    # out   : (m_out, Cout_pad) f32  lane-dense slab
    cmid = w1_ref.shape[-1]
    acc = jnp.zeros((m_out, cmid), dtype=jnp.float32)
    for t in range(9):                              # static unrolled tap loop
        dy, dx = divmod(t, 3)
        off = dy * wp + dx                          # static row offset
        lhs = x_ref[pl.ds(off, m_out), :]           # static halo window
        acc = acc + jnp.dot(lhs, w1_ref[t], preferred_element_type=jnp.float32)

    feat = jnp.maximum(acc + b1_ref[...], 0.0).astype(jnp.bfloat16)
    raw = jnp.dot(feat, w2_ref[...],
                  preferred_element_type=jnp.float32) + b2_ref[...]

    # pairwise softmax == sigmoid of the pre-fused logit difference
    prob = pl.reciprocal(1.0 + jnp.exp(-raw), approx=True)   # exp+recip on EUP
    lane = jax.lax.broadcasted_iota(jnp.int32, raw.shape, 1)
    out_ref[...] = jnp.where(lane < n_prob, prob, raw)


def rpn_head(x_nchw, w1, b1, ws, bs, wl, bl):
    """Fused RPN head. Returns NHWC prob (N,H,W,2A) and loc (N,H,W,4A), f32."""
    N, Cin, H, W = map(int, x_nchw.shape)
    Cmid = int(w1.shape[0])
    A2 = int(ws.shape[0])
    A4 = int(wl.shape[0])
    A = A2 // 2
    Hp, Wp = H + 2, W + 2
    P = Wp + 1                                   # leading zero rows (halo slack)
    Cout = A2 + A4
    Cout_pad = max(128, _round_up(Cout, 128))    # lane-dense output width

    # ---- split H into row groups so the grid has >=2 steps (v7x: 2 TCs) and
    #      per-step flat M stays in a good matmul range -------------------------
    rows_per_group = max(1, min(H, 2048 // Wp))
    G = _cdiv(H, rows_per_group)
    while N * G < 2 and G < H:
        G += 1
    Hg = _cdiv(H, G)
    G = _cdiv(H, Hg)
    NG = N * G
    Sg = (Hg + 2) * Wp                           # flat positions per group slab
    Mp1 = _round_up(Sg, 8)                       # rows computed per grid step
    R1 = _round_up(Mp1 + 2 * P, 8)               # slab rows incl. halo slack

    # ---- activation: NCHW -> padded NHWC -> per-group halo slabs (bf16) -------
    x = jnp.transpose(x_nchw, (0, 2, 3, 1))
    x_sp = jnp.pad(x, ((0, 0), (1, 1 + (G * Hg - H)), (1, 1), (0, 0)))
    groups = [x_sp[:, g * Hg: g * Hg + Hg + 2] for g in range(G)]
    xg = jnp.stack(groups, axis=1).reshape(NG, Sg, Cin)
    x_ext = jnp.pad(xg, ((0, 0), (P, R1 - Sg - P), (0, 0))).astype(jnp.bfloat16)

    # ---- weights: 3x3 taps + fused [score-diff | loc] head, lane padded -------
    w1_k = jnp.transpose(w1, (2, 3, 1, 0)).reshape(9, Cin, Cmid).astype(jnp.bfloat16)
    b1_r = b1.reshape(1, Cmid).astype(jnp.float32)
    ws2 = ws.reshape(A2, Cmid).astype(jnp.float32)
    wl2 = wl.reshape(A4, Cmid).astype(jnp.float32)
    wdiff = ws2[:A] - ws2[A:]                    # softmax pair (a, a+A) -> diff
    w2_rows = jnp.concatenate([wdiff, -wdiff, wl2], axis=0)        # (6A, Cmid)
    w2_t = jnp.pad(w2_rows.T, ((0, 0), (0, Cout_pad - Cout))).astype(jnp.bfloat16)
    bdiff = bs[:A] - bs[A:]
    b2_r = jnp.pad(jnp.concatenate([bdiff, -bdiff, bl]),
                   (0, Cout_pad - Cout)).reshape(1, Cout_pad).astype(jnp.float32)

    # ---- derived VMEM budget (headroomed; never the full 64 MiB of a v7x TC) --
    need = (2 * R1 * Cin * 2                      # x slab, double buffered
            + 9 * Cin * Cmid * 2                  # w1
            + Cmid * Cout_pad * 2                 # w2
            + (Cmid + Cout_pad) * 4               # biases
            + 2 * Mp1 * Cout_pad * 4              # out, double buffered
            + Mp1 * Cmid * 4                      # f32 conv accumulator
            + Mp1 * Cmid * 2                      # bf16 feat
            + Mp1 * Cout_pad * 4)                 # raw / prob temporaries
    vmem_limit = int(min(48 * 1024 * 1024, max(32 * 1024 * 1024, 2 * need)))

    cost = pl.CostEstimate(
        flops=int(NG * (2 * Mp1 * 9 * Cin * Cmid + 2 * Mp1 * Cmid * Cout_pad)),
        transcendentals=int(2 * NG * Mp1 * Cout_pad),
        bytes_accessed=int(NG * R1 * Cin * 2 + 9 * Cin * Cmid * 2
                           + Cmid * Cout_pad * 2 + NG * Mp1 * Cout_pad * 4),
    )

    kernel = functools.partial(_rpn_head_kernel, wp=Wp, m_out=Mp1, n_prob=A2)

    def _build(single_buffer_weights):
        def _const_spec(*shape):
            imap = lambda i, _s=len(shape): (0,) * _s
            if single_buffer_weights:
                return pl.BlockSpec(shape, imap, pipeline_mode=pl.Buffered(1))
            return pl.BlockSpec(shape, imap)

        return pl.pallas_call(
            kernel,
            out_shape=jax.ShapeDtypeStruct((NG, Mp1, Cout_pad), jnp.float32),
            grid_spec=pltpu.PrefetchScalarGridSpec(
                num_scalar_prefetch=0,
                grid=(NG,),
                in_specs=[
                    pl.BlockSpec((None, R1, Cin), lambda i: (i, 0, 0)),
                    _const_spec(9, Cin, Cmid),
                    _const_spec(1, Cmid),
                    _const_spec(Cmid, Cout_pad),
                    _const_spec(1, Cout_pad),
                ],
                out_specs=pl.BlockSpec((None, Mp1, Cout_pad),
                                       lambda i: (i, 0, 0)),
            ),
            compiler_params=pltpu.CompilerParams(
                dimension_semantics=("parallel",),
                vmem_limit_bytes=vmem_limit),
            cost_estimate=cost,
        )

    args = (x_ext, w1_k, b1_r, w2_t, b2_r)
    try:
        out = _build(True)(*args)
    except Exception:
        # pipeline_mode=pl.Buffered(1) hint unsupported -> default buffering
        out = _build(False)(*args)

    # ---- drop halo / garbage rows, split the lane-dense slab ------------------
    y = out[:, :Sg, :].reshape(N, G, Hg + 2, Wp, Cout_pad)
    y = y[:, :, 1:Hg + 1, 1:W + 1, :].reshape(N, G * Hg, W, Cout_pad)[:, :H]
    prob = y[..., :A2]
    locs = y[..., A2:A2 + A4]
    return prob, locs


# ----------------------------------------------------------------------------
# Plain-JAX glue: anchor generation + proposal decoding (no NMS)
# ----------------------------------------------------------------------------
def generate_anchor_base(base_size=16, ratios=(0.5, 1, 2), anchor_scales=(8, 16, 32)):
    py = px = base_size / 2.0
    ab = np.zeros((len(ratios) * len(anchor_scales), 4), dtype=np.float32)
    for i, r in enumerate(ratios):
        for j, s in enumerate(anchor_scales):
            h = base_size * s * np.sqrt(r)
            w = base_size * s * np.sqrt(1.0 / r)
            idx = i * len(anchor_scales) + j
            ab[idx] = [py - h / 2.0, px - w / 2.0, py + h / 2.0, px + w / 2.0]
    return jnp.asarray(ab)


def enumerate_anchors(anchor_base, feat_stride, hh, ww):
    shift_y = jnp.arange(0, hh * feat_stride, feat_stride, dtype=jnp.float32)
    shift_x = jnp.arange(0, ww * feat_stride, feat_stride, dtype=jnp.float32)
    sy, sx = jnp.meshgrid(shift_y, shift_x, indexing="ij")
    shift = jnp.stack([sy.ravel(), sx.ravel(), sy.ravel(), sx.ravel()], axis=1)
    A = anchor_base.shape[0]
    K = shift.shape[0]
    anchor = anchor_base[None, :, :] + shift[:, None, :]
    return anchor.reshape(K * A, 4)


def proposal_layer(loc_nhwc, anchor, img_size):
    # TODO(synk): ProposalLayer source not provided; only bbox decoding + clipping
    # implemented here (no min-size filter, score sorting, or NMS).
    N, H, W, A4 = loc_nhwc.shape
    locs = loc_nhwc.reshape(N, H * W * (A4 // 4), 4)   # (N, K*A, 4) dy,dx,dh,dw
    ah = anchor[:, 2] - anchor[:, 0]
    aw = anchor[:, 3] - anchor[:, 1]
    acy = anchor[:, 0] + 0.5 * ah
    acx = anchor[:, 1] + 0.5 * aw
    dy, dx, dh, dw = locs[..., 0], locs[..., 1], locs[..., 2], locs[..., 3]
    cy = dy * ah + acy
    cx = dx * aw + acx
    h = jnp.exp(dh) * ah
    w = jnp.exp(dw) * aw
    rois = jnp.stack([cy - 0.5 * h, cx - 0.5 * w, cy + 0.5 * h, cx + 0.5 * w], axis=-1)
    rois = rois.at[..., 0::2].set(jnp.clip(rois[..., 0::2], 0.0, img_size[0]))
    rois = rois.at[..., 1::2].set(jnp.clip(rois[..., 1::2], 0.0, img_size[1]))
    return rois


def region_proposal_forward(x, params, ratios, scales, feat_stride, img_size):
    prob_nhwc, loc_nhwc = rpn_head(x, *params)
    # module contract: NCHW prob / loc maps; proposal decode uses NHWC directly
    rpn_scores_prob = jnp.transpose(prob_nhwc, (0, 3, 1, 2))   # (N, 2A, H, W)
    rpn_locs_pred = jnp.transpose(loc_nhwc, (0, 3, 1, 2))      # (N, 4A, H, W)
    H, W = x.shape[2], x.shape[3]
    anchor_base = generate_anchor_base(16, ratios, scales)
    anchor = enumerate_anchors(anchor_base, feat_stride, H, W)
    rois = proposal_layer(loc_nhwc, anchor, img_size)
    return rpn_scores_prob, rpn_locs_pred, rois, anchor


# ----------------------------------------------------------------------------
# Pure-JAX reference of the fused head (for a numerical sanity check)
# ----------------------------------------------------------------------------
def _reference_head(x_nchw, w1, b1, ws, bs, wl, bl):
    f = lambda a: a.astype(jnp.bfloat16).astype(jnp.float32)
    N, Cin, H, W = x_nchw.shape
    Cmid = w1.shape[0]
    A = ws.shape[0] // 2
    x = jnp.transpose(f(x_nchw), (0, 2, 3, 1))
    xp = jnp.pad(x, ((0, 0), (1, 1), (1, 1), (0, 0)))
    w1_t = jnp.transpose(f(w1), (2, 3, 1, 0))              # (3,3,Cin,Cmid)
    feat = jnp.zeros((N, H, W, Cmid), jnp.float32)
    for dy in range(3):
        for dx in range(3):
            feat = feat + jnp.einsum('nhwc,cm->nhwm',
                                     xp[:, dy:dy + H, dx:dx + W, :], w1_t[dy, dx])
    feat = jnp.maximum(feat + b1, 0.0)
    s = jnp.einsum('nhwm,om->nhwo', feat, f(ws.reshape(-1, Cmid))) + bs
    l = jnp.einsum('nhwm,om->nhwo', feat, f(wl.reshape(-1, Cmid))) + bl
    e0, e1 = s[..., :A], s[..., A:]
    m = jnp.maximum(e0, e1)
    z0, z1 = jnp.exp(e0 - m), jnp.exp(e1 - m)
    p0, p1 = z0 / (z0 + z1), z1 / (z0 + z1)
    return jnp.concatenate([p0, p1], axis=-1), l


if __name__ == "__main__":
    key = jax.random.PRNGKey(0)
    N, Cin, Cmid, H, W = 2, 16, 32, 8, 12
    ratios = [0.5, 1, 2]
    scales = [8, 16, 32]
    A = len(ratios) * len(scales)            # 9 anchors
    feat_stride = 16
    img_size = (H * feat_stride, W * feat_stride)

    k = jax.random.split(key, 4)
    x = jax.random.normal(k[0], (N, Cin, H, W), jnp.float32)
    # deterministic normal_init(mean=0, std=0.01), zero biases
    w1 = 0.01 * jax.random.normal(k[1], (Cmid, Cin, 3, 3), jnp.float32)
    b1 = jnp.zeros((Cmid,), jnp.float32)
    ws = 0.01 * jax.random.normal(k[2], (A * 2, Cmid, 1, 1), jnp.float32)
    bs = jnp.zeros((A * 2,), jnp.float32)
    wl = 0.01 * jax.random.normal(k[3], (A * 4, Cmid, 1, 1), jnp.float32)
    bl = jnp.zeros((A * 4,), jnp.float32)

    outs = region_proposal_forward(
        x, (w1, b1, ws, bs, wl, bl), ratios, scales, feat_stride, img_size)
    jax.block_until_ready(outs)

    rpn_scores_prob, rpn_locs_pred, rois, anchor = outs
    assert rpn_scores_prob.shape == (N, 2 * A, H, W)
    assert rpn_locs_pred.shape == (N, 4 * A, H, W)
    assert rois.shape == (N, H * W * A, 4)
    assert anchor.shape == (H * W * A, 4)
    assert bool(jnp.all(jnp.isfinite(rpn_scores_prob)))
    assert bool(jnp.all(jnp.isfinite(rpn_locs_pred)))
    assert bool(jnp.all(jnp.isfinite(rois)))

    # numerical sanity check against a pure-JAX reference
    prob_ref, loc_ref = _reference_head(x, w1, b1, ws, bs, wl, bl)
    prob_k = jnp.transpose(rpn_scores_prob, (0, 2, 3, 1))
    loc_k = jnp.transpose(rpn_locs_pred, (0, 2, 3, 1))
    assert float(jnp.max(jnp.abs(prob_k - prob_ref))) < 1e-2
    assert float(jnp.max(jnp.abs(loc_k - loc_ref))) < 1e-2

    print("KERNEL_OK")
</pallas_src>

<mosaic_0001>
module attributes {stable_mosaic.version = 11 : i64} {
  func.func @_rpn_head_kernel(%arg0: i32, %arg1: memref<1x176x16xbf16, #tpu.memory_space<vmem>>, %arg2: memref<9x16x32xbf16, #tpu.memory_space<vmem>>, %arg3: memref<1x32xf32, #tpu.memory_space<vmem>>, %arg4: memref<32x128xbf16, #tpu.memory_space<vmem>>, %arg5: memref<1x128xf32, #tpu.memory_space<vmem>>, %arg6: memref<1x144x128xf32, #tpu.memory_space<vmem>>) attributes {dimension_semantics = [#tpu.dimension_semantics<parallel>], iteration_bounds = array<i64: 2>, scalar_prefetch = 0 : i64, scratch_operands = 0 : i64, tpu.core_type = #tpu.core_type<tc>, window_params = [{transform_indices = @transform_0, window_bounds = array<i64: 1, 176, 16>}, {pipeline_mode = #tpu.pipeline_mode<synchronous>, transform_indices = @transform_1, window_bounds = array<i64: 9, 16, 32>}, {pipeline_mode = #tpu.pipeline_mode<synchronous>, transform_indices = @transform_2, window_bounds = array<i64: 1, 32>}, {pipeline_mode = #tpu.pipeline_mode<synchronous>, transform_indices = @transform_3, window_bounds = array<i64: 32, 128>}, {pipeline_mode = #tpu.pipeline_mode<synchronous>, transform_indices = @transform_4, window_bounds = array<i64: 1, 128>}, {transform_indices = @transform_5, window_bounds = array<i64: 1, 144, 128>}]} {
    %cst = arith.constant 0.000000e+00 : f32
    %0 = vector.broadcast %cst : f32 to vector<144x32xf32>
    %c0 = arith.constant 0 : index
    %c0_0 = arith.constant 0 : index
    %c0_1 = arith.constant 0 : index
    %1 = vector.load %arg1[%c0, %c0_0, %c0_1] : memref<1x176x16xbf16, #tpu.memory_space<vmem>>, vector<1x144x16xbf16>
    %2 = vector.shape_cast %1 : vector<1x144x16xbf16> to vector<144x16xbf16>
    %c0_2 = arith.constant 0 : index
    %c0_3 = arith.constant 0 : index
    %c0_4 = arith.constant 0 : index
    %3 = vector.load %arg2[%c0_2, %c0_3, %c0_4] : memref<9x16x32xbf16, #tpu.memory_space<vmem>>, vector<1x16x32xbf16>
    %4 = vector.shape_cast %3 : vector<1x16x32xbf16> to vector<16x32xbf16>
    %cst_5 = arith.constant dense<0.000000e+00> : vector<144x32xf32>
    %5 = tpu.matmul %2, %4, %cst_5 {dimension_numbers = #tpu.dot_dimension_numbers<[1], [0], [0], [1], [0, 0, 1, 1], [], []>} : vector<144x16xbf16>, vector<16x32xbf16>, vector<144x32xf32> -> vector<144x32xf32>
    %6 = arith.addf %0, %5 : vector<144x32xf32>
    %c0_6 = arith.constant 0 : index
    %c1 = arith.constant 1 : index
    %c0_7 = arith.constant 0 : index
    %7 = vector.load %arg1[%c0_6, %c1, %c0_7] : memref<1x176x16xbf16, #tpu.memory_space<vmem>>, vector<1x144x16xbf16>
    %8 = vector.shape_cast %7 : vector<1x144x16xbf16> to vector<144x16xbf16>
    %c1_8 = arith.constant 1 : index
    %c0_9 = arith.constant 0 : index
    %c0_10 = arith.constant 0 : index
    %9 = vector.load %arg2[%c1_8, %c0_9, %c0_10] : memref<9x16x32xbf16, #tpu.memory_space<vmem>>, vector<1x16x32xbf16>
    %10 = vector.shape_cast %9 : vector<1x16x32xbf16> to vector<16x32xbf16>
    %cst_11 = arith.constant dense<0.000000e+00> : vector<144x32xf32>
    %11 = tpu.matmul %8, %10, %cst_11 {dimension_numbers = #tpu.dot_dimension_numbers<[1], [0], [0], [1], [0, 0, 1, 1], [], []>} : vector<144x16xbf16>, vector<16x32xbf16>, vector<144x32xf32> -> vector<144x32xf32>
    %12 = arith.addf %6, %11 : vector<144x32xf32>
    %c0_12 = arith.constant 0 : index
    %c2 = arith.constant 2 : index
    %c0_13 = arith.constant 0 : index
    %13 = vector.load %arg1[%c0_12, %c2, %c0_13] : memref<1x176x16xbf16, #tpu.memory_space<vmem>>, vector<1x144x16xbf16>
    %14 = vector.shape_cast %13 : vector<1x144x16xbf16> to vector<144x16xbf16>
    %c2_14 = arith.constant 2 : index
    %c0_15 = arith.constant 0 : index
    %c0_16 = arith.constant 0 : index
    %15 = vector.load %arg2[%c2_14, %c0_15, %c0_16] : memref<9x16x32xbf16, #tpu.memory_space<vmem>>, vector<1x16x32xbf16>
    %16 = vector.shape_cast %15 : vector<1x16x32xbf16> to vector<16x32xbf16>
    %cst_17 = arith.constant dense<0.000000e+00> : vector<144x32xf32>
    %17 = tpu.matmul %14, %16, %cst_17 {dimension_numbers = #tpu.dot_dimension_numbers<[1], [0], [0], [1], [0, 0, 1, 1], [], []>} : vector<144x16xbf16>, vector<16x32xbf16>, vector<144x32xf32> -> vector<144x32xf32>
    %18 = arith.addf %12, %17 : vector<144x32xf32>
    %c0_18 = arith.constant 0 : index
    %c14 = arith.constant 14 : index
    %c0_19 = arith.constant 0 : index
    %19 = vector.load %arg1[%c0_18, %c14, %c0_19] : memref<1x176x16xbf16, #tpu.memory_space<vmem>>, vector<1x144x16xbf16>
    %20 = vector.shape_cast %19 : vector<1x144x16xbf16> to vector<144x16xbf16>
    %c3 = arith.constant 3 : index
    %c0_20 = arith.constant 0 : index
    %c0_21 = arith.constant 0 : index
    %21 = vector.load %arg2[%c3, %c0_20, %c0_21] : memref<9x16x32xbf16, #tpu.memory_space<vmem>>, vector<1x16x32xbf16>
    %22 = vector.shape_cast %21 : vector<1x16x32xbf16> to vector<16x32xbf16>
    %cst_22 = arith.constant dense<0.000000e+00> : vector<144x32xf32>
    %23 = tpu.matmul %20, %22, %cst_22 {dimension_numbers = #tpu.dot_dimension_numbers<[1], [0], [0], [1], [0, 0, 1, 1], [], []>} : vector<144x16xbf16>, vector<16x32xbf16>, vector<144x32xf32> -> vector<144x32xf32>
    %24 = arith.addf %18, %23 : vector<144x32xf32>
    %c0_23 = arith.constant 0 : index
    %c15 = arith.constant 15 : index
    %c0_24 = arith.constant 0 : index
    %25 = vector.load %arg1[%c0_23, %c15, %c0_24] : memref<1x176x16xbf16, #tpu.memory_space<vmem>>, vector<1x144x16xbf16>
    %26 = vector.shape_cast %25 : vector<1x144x16xbf16> to vector<144x16xbf16>
    %c4 = arith.constant 4 : index
    %c0_25 = arith.constant 0 : index
    %c0_26 = arith.constant 0 : index
    %27 = vector.load %arg2[%c4, %c0_25, %c0_26] : memref<9x16x32xbf16, #tpu.memory_space<vmem>>, vector<1x16x32xbf16>
    %28 = vector.shape_cast %27 : vector<1x16x32xbf16> to vector<16x32xbf16>
    %cst_27 = arith.constant dense<0.000000e+00> : vector<144x32xf32>
    %29 = tpu.matmul %26, %28, %cst_27 {dimension_numbers = #tpu.dot_dimension_numbers<[1], [0], [0], [1], [0, 0, 1, 1], [], []>} : vector<144x16xbf16>, vector<16x32xbf16>, vector<144x32xf32> -> vector<144x32xf32>
    %30 = arith.addf %24, %29 : vector<144x32xf32>
    %c0_28 = arith.constant 0 : index
    %c16 = arith.constant 16 : index
    %c0_29 = arith.constant 0 : index
    %31 = vector.load %arg1[%c0_28, %c16, %c0_29] : memref<1x176x16xbf16, #tpu.memory_space<vmem>>, vector<1x144x16xbf16>
    %32 = vector.shape_cast %31 : vector<1x144x16xbf16> to vector<144x16xbf16>
    %c5 = arith.constant 5 : index
    %c0_30 = arith.constant 0 : index
    %c0_31 = arith.constant 0 : index
    %33 = vector.load %arg2[%c5, %c0_30, %c0_31] : memref<9x16x32xbf16, #tpu.memory_space<vmem>>, vector<1x16x32xbf16>
    %34 = vector.shape_cast %33 : vector<1x16x32xbf16> to vector<16x32xbf16>
    %cst_32 = arith.constant dense<0.000000e+00> : vector<144x32xf32>
    %35 = tpu.matmul %32, %34, %cst_32 {dimension_numbers = #tpu.dot_dimension_numbers<[1], [0], [0], [1], [0, 0, 1, 1], [], []>} : vector<144x16xbf16>, vector<16x32xbf16>, vector<144x32xf32> -> vector<144x32xf32>
    %36 = arith.addf %30, %35 : vector<144x32xf32>
    %c0_33 = arith.constant 0 : index
    %c28 = arith.constant 28 : index
    %c0_34 = arith.constant 0 : index
    %37 = vector.load %arg1[%c0_33, %c28, %c0_34] : memref<1x176x16xbf16, #tpu.memory_space<vmem>>, vector<1x144x16xbf16>
    %38 = vector.shape_cast %37 : vector<1x144x16xbf16> to vector<144x16xbf16>
    %c6 = arith.constant 6 : index
    %c0_35 = arith.constant 0 : index
    %c0_36 = arith.constant 0 : index
    %39 = vector.load %arg2[%c6, %c0_35, %c0_36] : memref<9x16x32xbf16, #tpu.memory_space<vmem>>, vector<1x16x32xbf16>
    %40 = vector.shape_cast %39 : vector<1x16x32xbf16> to vector<16x32xbf16>
    %cst_37 = arith.constant dense<0.000000e+00> : vector<144x32xf32>
    %41 = tpu.matmul %38, %40, %cst_37 {dimension_numbers = #tpu.dot_dimension_numbers<[1], [0], [0], [1], [0, 0, 1, 1], [], []>} : vector<144x16xbf16>, vector<16x32xbf16>, vector<144x32xf32> -> vector<144x32xf32>
    %42 = arith.addf %36, %41 : vector<144x32xf32>
    %c0_38 = arith.constant 0 : index
    %c29 = arith.constant 29 : index
    %c0_39 = arith.constant 0 : index
    %43 = vector.load %arg1[%c0_38, %c29, %c0_39] : memref<1x176x16xbf16, #tpu.memory_space<vmem>>, vector<1x144x16xbf16>
    %44 = vector.shape_cast %43 : vector<1x144x16xbf16> to vector<144x16xbf16>
    %c7 = arith.constant 7 : index
    %c0_40 = arith.constant 0 : index
    %c0_41 = arith.constant 0 : index
    %45 = vector.load %arg2[%c7, %c0_40, %c0_41] : memref<9x16x32xbf16, #tpu.memory_space<vmem>>, vector<1x16x32xbf16>
    %46 = vector.shape_cast %45 : vector<1x16x32xbf16> to vector<16x32xbf16>
    %cst_42 = arith.constant dense<0.000000e+00> : vector<144x32xf32>
    %47 = tpu.matmul %44, %46, %cst_42 {dimension_numbers = #tpu.dot_dimension_numbers<[1], [0], [0], [1], [0, 0, 1, 1], [], []>} : vector<144x16xbf16>, vector<16x32xbf16>, vector<144x32xf32> -> vector<144x32xf32>
    %48 = arith.addf %42, %47 : vector<144x32xf32>
    %c0_43 = arith.constant 0 : index
    %c30 = arith.constant 30 : index
    %c0_44 = arith.constant 0 : index
    %49 = vector.load %arg1[%c0_43, %c30, %c0_44] : memref<1x176x16xbf16, #tpu.memory_space<vmem>>, vector<1x144x16xbf16>
    %50 = vector.shape_cast %49 : vector<1x144x16xbf16> to vector<144x16xbf16>
    %c8 = arith.constant 8 : index
    %c0_45 = arith.constant 0 : index
    %c0_46 = arith.constant 0 : index
    %51 = vector.load %arg2[%c8, %c0_45, %c0_46] : memref<9x16x32xbf16, #tpu.memory_space<vmem>>, vector<1x16x32xbf16>
    %52 = vector.shape_cast %51 : vector<1x16x32xbf16> to vector<16x32xbf16>
    %cst_47 = arith.constant dense<0.000000e+00> : vector<144x32xf32>
    %53 = tpu.matmul %50, %52, %cst_47 {dimension_numbers = #tpu.dot_dimension_numbers<[1], [0], [0], [1], [0, 0, 1, 1], [], []>} : vector<144x16xbf16>, vector<16x32xbf16>, vector<144x32xf32> -> vector<144x32xf32>
    %54 = arith.addf %48, %53 : vector<144x32xf32>
    %c0_48 = arith.constant 0 : index
    %c0_49 = arith.constant 0 : index
    %55 = vector.load %arg3[%c0_48, %c0_49] : memref<1x32xf32, #tpu.memory_space<vmem>>, vector<1x32xf32>
    %56 = vector.broadcast %55 : vector<1x32xf32> to vector<144x32xf32>
    %57 = arith.addf %54, %56 : vector<144x32xf32>
    %cst_50 = arith.constant 0.000000e+00 : f32
    %58 = vector.broadcast %cst_50 : f32 to vector<144x32xf32>
    %59 = arith.maximumf %57, %58 : vector<144x32xf32>
    %60 = arith.truncf %59 : vector<144x32xf32> to vector<144x32xbf16>
    %c0_51 = arith.constant 0 : index
    %c0_52 = arith.constant 0 : index
    %61 = vector.load %arg4[%c0_51, %c0_52] : memref<32x128xbf16, #tpu.memory_space<vmem>>, vector<32x128xbf16>
    %cst_53 = arith.constant dense<0.000000e+00> : vector<144x128xf32>
    %62 = tpu.matmul %60, %61, %cst_53 {dimension_numbers = #tpu.dot_dimension_numbers<[1], [0], [0], [1], [0, 0, 1, 1], [], []>} : vector<144x32xbf16>, vector<32x128xbf16>, vector<144x128xf32> -> vector<144x128xf32>
    %c0_54 = arith.constant 0 : index
    %c0_55 = arith.constant 0 : index
    %63 = vector.load %arg5[%c0_54, %c0_55] : memref<1x128xf32, #tpu.memory_space<vmem>>, vector<1x128xf32>
    %64 = vector.broadcast %63 : vector<1x128xf32> to vector<144x128xf32>
    %65 = arith.addf %62, %64 : vector<144x128xf32>
    %cst_56 = arith.constant 0.000000e+00 : f32
    %66 = vector.broadcast %cst_56 : f32 to vector<144x128xf32>
    %67 = arith.subf %66, %65 : vector<144x128xf32>
    %68 = math.exp %67 : vector<144x128xf32>
    %cst_57 = arith.constant 1.000000e+00 : f32
    %69 = vector.broadcast %cst_57 : f32 to vector<144x128xf32>
    %70 = arith.addf %69, %68 : vector<144x128xf32>
    %71 = tpu.reciprocal %70 {approx = true} : vector<144x128xf32> -> vector<144x128xf32>
    %72 = tpu.iota {dimensions = array<i32: 1>} : vector<144x128xi32>
    %c18_i32 = arith.constant 18 : i32
    %73 = vector.broadcast %c18_i32 : i32 to vector<144x128xi32>
    %74 = arith.cmpi slt, %72, %73 : vector<144x128xi32>
    %75 = arith.select %74, %71, %65 : vector<144x128xi1>, vector<144x128xf32>
    %c0_58 = arith.constant 0 : index
    %c0_59 = arith.constant 0 : index
    %c0_60 = arith.constant 0 : index
    %76 = vector.load %arg6[%c0_58, %c0_59, %c0_60] : memref<1x144x128xf32, #tpu.memory_space<vmem>>, vector<1x144x128xf32>
    %77 = vector.shape_cast %76 : vector<1x144x128xf32> to vector<144x128xf32>
    %78 = vector.shape_cast %75 : vector<144x128xf32> to vector<1x144x128xf32>
    tpu.vector_store %arg6[%c0_58, %c0_59, %c0_60], %78 {strides = array<i32>} : memref<1x144x128xf32, #tpu.memory_space<vmem>>, vector<1x144x128xf32>,
    return
  }
  func.func @transform_0(%arg0: i32) -> (i32, i32, i32) {
    %c0_i32 = arith.constant 0 : i32
    %c0_i32_0 = arith.constant 0 : i32
    %c0_i32_1 = arith.constant 0 : i32
    return %arg0, %c0_i32, %c0_i32_0 : i32, i32, i32
  }
  func.func @transform_1(%arg0: i32) -> (i32, i32, i32) {
    %c0_i32 = arith.constant 0 : i32
    %c0_i32_0 = arith.constant 0 : i32
    %c0_i32_1 = arith.constant 0 : i32
    %c0_i32_2 = arith.constant 0 : i32
    return %c0_i32, %c0_i32_0, %c0_i32_1 : i32, i32, i32
  }
  func.func @transform_2(%arg0: i32) -> (i32, i32) {
    %c0_i32 = arith.constant 0 : i32
    %c0_i32_0 = arith.constant 0 : i32
    %c0_i32_1 = arith.constant 0 : i32
    return %c0_i32, %c0_i32_0 : i32, i32
  }
  func.func @transform_3(%arg0: i32) -> (i32, i32) {
    %c0_i32 = arith.constant 0 : i32
    %c0_i32_0 = arith.constant 0 : i32
    %c0_i32_1 = arith.constant 0 : i32
    return %c0_i32, %c0_i32_0 : i32, i32
  }
  func.func @transform_4(%arg0: i32) -> (i32, i32) {
    %c0_i32 = arith.constant 0 : i32
    %c0_i32_0 = arith.constant 0 : i32
    %c0_i32_1 = arith.constant 0 : i32
    return %c0_i32, %c0_i32_0 : i32, i32
  }
  func.func @transform_5(%arg0: i32) -> (i32, i32, i32) {
    %c0_i32 = arith.constant 0 : i32
    %c0_i32_0 = arith.constant 0 : i32
    %c0_i32_1 = arith.constant 0 : i32
    return %arg0, %c0_i32, %c0_i32_0 : i32, i32, i32
  }
}

module attributes {stable_mosaic.version = 11 : i64} {
  func.func @_rpn_head_kernel(%arg0: i32, %arg1: memref<1x176x16xbf16, #tpu.memory_space<vmem>>, %arg2: memref<9x16x32xbf16, #tpu.memory_space<vmem>>, %arg3: memref<1x32xf32, #tpu.memory_space<vmem>>, %arg4: memref<32x128xbf16, #tpu.memory_space<vmem>>, %arg5: memref<1x128xf32, #tpu.memory_space<vmem>>, %arg6: memref<1x144x128xf32, #tpu.memory_space<vmem>>) attributes {dimension_semantics = [#tpu.dimension_semantics<parallel>], iteration_bounds = array<i64: 2>, scalar_prefetch = 0 : i64, scratch_operands = 0 : i64, tpu.core_type = #tpu.core_type<tc>, window_params = [{transform_indices = @transform_0, window_bounds = array<i64: 1, 176, 16>}, {pipeline_mode = #tpu.pipeline_mode<synchronous>, transform_indices = @transform_1, window_bounds = array<i64: 9, 16, 32>}, {pipeline_mode = #tpu.pipeline_mode<synchronous>, transform_indices = @transform_2, window_bounds = array<i64: 1, 32>}, {pipeline_mode = #tpu.pipeline_mode<synchronous>, transform_indices = @transform_3, window_bounds = array<i64: 32, 128>}, {pipeline_mode = #tpu.pipeline_mode<synchronous>, transform_indices = @transform_4, window_bounds = array<i64: 1, 128>}, {transform_indices = @transform_5, window_bounds = array<i64: 1, 144, 128>}]} {
    %cst = arith.constant 0.000000e+00 : f32
    %0 = vector.broadcast %cst : f32 to vector<144x32xf32>
    %c0 = arith.constant 0 : index
    %c0_0 = arith.constant 0 : index
    %c0_1 = arith.constant 0 : index
    %1 = vector.load %arg1[%c0, %c0_0, %c0_1] : memref<1x176x16xbf16, #tpu.memory_space<vmem>>, vector<1x144x16xbf16>
    %2 = vector.shape_cast %1 : vector<1x144x16xbf16> to vector<144x16xbf16>
    %c0_2 = arith.constant 0 : index
    %c0_3 = arith.constant 0 : index
    %c0_4 = arith.constant 0 : index
    %3 = vector.load %arg2[%c0_2, %c0_3, %c0_4] : memref<9x16x32xbf16, #tpu.memory_space<vmem>>, vector<1x16x32xbf16>
    %4 = vector.shape_cast %3 : vector<1x16x32xbf16> to vector<16x32xbf16>
    %cst_5 = arith.constant dense<0.000000e+00> : vector<144x32xf32>
    %5 = tpu.matmul %2, %4, %cst_5 {dimension_numbers = #tpu.dot_dimension_numbers<[1], [0], [0], [1], [0, 0, 1, 1], [], []>} : vector<144x16xbf16>, vector<16x32xbf16>, vector<144x32xf32> -> vector<144x32xf32>
    %6 = arith.addf %0, %5 : vector<144x32xf32>
    %c0_6 = arith.constant 0 : index
    %c1 = arith.constant 1 : index
    %c0_7 = arith.constant 0 : index
    %7 = vector.load %arg1[%c0_6, %c1, %c0_7] : memref<1x176x16xbf16, #tpu.memory_space<vmem>>, vector<1x144x16xbf16>
    %8 = vector.shape_cast %7 : vector<1x144x16xbf16> to vector<144x16xbf16>
    %c1_8 = arith.constant 1 : index
    %c0_9 = arith.constant 0 : index
    %c0_10 = arith.constant 0 : index
    %9 = vector.load %arg2[%c1_8, %c0_9, %c0_10] : memref<9x16x32xbf16, #tpu.memory_space<vmem>>, vector<1x16x32xbf16>
    %10 = vector.shape_cast %9 : vector<1x16x32xbf16> to vector<16x32xbf16>
    %cst_11 = arith.constant dense<0.000000e+00> : vector<144x32xf32>
    %11 = tpu.matmul %8, %10, %cst_11 {dimension_numbers = #tpu.dot_dimension_numbers<[1], [0], [0], [1], [0, 0, 1, 1], [], []>} : vector<144x16xbf16>, vector<16x32xbf16>, vector<144x32xf32> -> vector<144x32xf32>
    %12 = arith.addf %6, %11 : vector<144x32xf32>
    %c0_12 = arith.constant 0 : index
    %c2 = arith.constant 2 : index
    %c0_13 = arith.constant 0 : index
    %13 = vector.load %arg1[%c0_12, %c2, %c0_13] : memref<1x176x16xbf16, #tpu.memory_space<vmem>>, vector<1x144x16xbf16>
    %14 = vector.shape_cast %13 : vector<1x144x16xbf16> to vector<144x16xbf16>
    %c2_14 = arith.constant 2 : index
    %c0_15 = arith.constant 0 : index
    %c0_16 = arith.constant 0 : index
    %15 = vector.load %arg2[%c2_14, %c0_15, %c0_16] : memref<9x16x32xbf16, #tpu.memory_space<vmem>>, vector<1x16x32xbf16>
    %16 = vector.shape_cast %15 : vector<1x16x32xbf16> to vector<16x32xbf16>
    %cst_17 = arith.constant dense<0.000000e+00> : vector<144x32xf32>
    %17 = tpu.matmul %14, %16, %cst_17 {dimension_numbers = #tpu.dot_dimension_numbers<[1], [0], [0], [1], [0, 0, 1, 1], [], []>} : vector<144x16xbf16>, vector<16x32xbf16>, vector<144x32xf32> -> vector<144x32xf32>
    %18 = arith.addf %12, %17 : vector<144x32xf32>
    %c0_18 = arith.constant 0 : index
    %c14 = arith.constant 14 : index
    %c0_19 = arith.constant 0 : index
    %19 = vector.load %arg1[%c0_18, %c14, %c0_19] : memref<1x176x16xbf16, #tpu.memory_space<vmem>>, vector<1x144x16xbf16>
    %20 = vector.shape_cast %19 : vector<1x144x16xbf16> to vector<144x16xbf16>
    %c3 = arith.constant 3 : index
    %c0_20 = arith.constant 0 : index
    %c0_21 = arith.constant 0 : index
    %21 = vector.load %arg2[%c3, %c0_20, %c0_21] : memref<9x16x32xbf16, #tpu.memory_space<vmem>>, vector<1x16x32xbf16>
    %22 = vector.shape_cast %21 : vector<1x16x32xbf16> to vector<16x32xbf16>
    %cst_22 = arith.constant dense<0.000000e+00> : vector<144x32xf32>
    %23 = tpu.matmul %20, %22, %cst_22 {dimension_numbers = #tpu.dot_dimension_numbers<[1], [0], [0], [1], [0, 0, 1, 1], [], []>} : vector<144x16xbf16>, vector<16x32xbf16>, vector<144x32xf32> -> vector<144x32xf32>
    %24 = arith.addf %18, %23 : vector<144x32xf32>
    %c0_23 = arith.constant 0 : index
    %c15 = arith.constant 15 : index
    %c0_24 = arith.constant 0 : index
    %25 = vector.load %arg1[%c0_23, %c15, %c0_24] : memref<1x176x16xbf16, #tpu.memory_space<vmem>>, vector<1x144x16xbf16>
    %26 = vector.shape_cast %25 : vector<1x144x16xbf16> to vector<144x16xbf16>
    %c4 = arith.constant 4 : index
    %c0_25 = arith.constant 0 : index
    %c0_26 = arith.constant 0 : index
    %27 = vector.load %arg2[%c4, %c0_25, %c0_26] : memref<9x16x32xbf16, #tpu.memory_space<vmem>>, vector<1x16x32xbf16>
    %28 = vector.shape_cast %27 : vector<1x16x32xbf16> to vector<16x32xbf16>
    %cst_27 = arith.constant dense<0.000000e+00> : vector<144x32xf32>
    %29 = tpu.matmul %26, %28, %cst_27 {dimension_numbers = #tpu.dot_dimension_numbers<[1], [0], [0], [1], [0, 0, 1, 1], [], []>} : vector<144x16xbf16>, vector<16x32xbf16>, vector<144x32xf32> -> vector<144x32xf32>
    %30 = arith.addf %24, %29 : vector<144x32xf32>
    %c0_28 = arith.constant 0 : index
    %c16 = arith.constant 16 : index
    %c0_29 = arith.constant 0 : index
    %31 = vector.load %arg1[%c0_28, %c16, %c0_29] : memref<1x176x16xbf16, #tpu.memory_space<vmem>>, vector<1x144x16xbf16>
    %32 = vector.shape_cast %31 : vector<1x144x16xbf16> to vector<144x16xbf16>
    %c5 = arith.constant 5 : index
    %c0_30 = arith.constant 0 : index
    %c0_31 = arith.constant 0 : index
    %33 = vector.load %arg2[%c5, %c0_30, %c0_31] : memref<9x16x32xbf16, #tpu.memory_space<vmem>>, vector<1x16x32xbf16>
    %34 = vector.shape_cast %33 : vector<1x16x32xbf16> to vector<16x32xbf16>
    %cst_32 = arith.constant dense<0.000000e+00> : vector<144x32xf32>
    %35 = tpu.matmul %32, %34, %cst_32 {dimension_numbers = #tpu.dot_dimension_numbers<[1], [0], [0], [1], [0, 0, 1, 1], [], []>} : vector<144x16xbf16>, vector<16x32xbf16>, vector<144x32xf32> -> vector<144x32xf32>
    %36 = arith.addf %30, %35 : vector<144x32xf32>
    %c0_33 = arith.constant 0 : index
    %c28 = arith.constant 28 : index
    %c0_34 = arith.constant 0 : index
    %37 = vector.load %arg1[%c0_33, %c28, %c0_34] : memref<1x176x16xbf16, #tpu.memory_space<vmem>>, vector<1x144x16xbf16>
    %38 = vector.shape_cast %37 : vector<1x144x16xbf16> to vector<144x16xbf16>
    %c6 = arith.constant 6 : index
    %c0_35 = arith.constant 0 : index
    %c0_36 = arith.constant 0 : index
    %39 = vector.load %arg2[%c6, %c0_35, %c0_36] : memref<9x16x32xbf16, #tpu.memory_space<vmem>>, vector<1x16x32xbf16>
    %40 = vector.shape_cast %39 : vector<1x16x32xbf16> to vector<16x32xbf16>
    %cst_37 = arith.constant dense<0.000000e+00> : vector<144x32xf32>
    %41 = tpu.matmul %38, %40, %cst_37 {dimension_numbers = #tpu.dot_dimension_numbers<[1], [0], [0], [1], [0, 0, 1, 1], [], []>} : vector<144x16xbf16>, vector<16x32xbf16>, vector<144x32xf32> -> vector<144x32xf32>
    %42 = arith.addf %36, %41 : vector<144x32xf32>
    %c0_38 = arith.constant 0 : index
    %c29 = arith.constant 29 : index
    %c0_39 = arith.constant 0 : index
    %43 = vector.load %arg1[%c0_38, %c29, %c0_39] : memref<1x176x16xbf16, #tpu.memory_space<vmem>>, vector<1x144x16xbf16>
    %44 = vector.shape_cast %43 : vector<1x144x16xbf16> to vector<144x16xbf16>
    %c7 = arith.constant 7 : index
    %c0_40 = arith.constant 0 : index
    %c0_41 = arith.constant 0 : index
    %45 = vector.load %arg2[%c7, %c0_40, %c0_41] : memref<9x16x32xbf16, #tpu.memory_space<vmem>>, vector<1x16x32xbf16>
    %46 = vector.shape_cast %45 : vector<1x16x32xbf16> to vector<16x32xbf16>
    %cst_42 = arith.constant dense<0.000000e+00> : vector<144x32xf32>
    %47 = tpu.matmul %44, %46, %cst_42 {dimension_numbers = #tpu.dot_dimension_numbers<[1], [0], [0], [1], [0, 0, 1, 1], [], []>} : vector<144x16xbf16>, vector<16x32xbf16>, vector<144x32xf32> -> vector<144x32xf32>
    %48 = arith.addf %42, %47 : vector<144x32xf32>
    %c0_43 = arith.constant 0 : index
    %c30 = arith.constant 30 : index
    %c0_44 = arith.constant 0 : index
    %49 = vector.load %arg1[%c0_43, %c30, %c0_44] : memref<1x176x16xbf16, #tpu.memory_space<vmem>>, vector<1x144x16xbf16>
    %50 = vector.shape_cast %49 : vector<1x144x16xbf16> to vector<144x16xbf16>
    %c8 = arith.constant 8 : index
    %c0_45 = arith.constant 0 : index
    %c0_46 = arith.constant 0 : index
    %51 = vector.load %arg2[%c8, %c0_45, %c0_46] : memref<9x16x32xbf16, #tpu.memory_space<vmem>>, vector<1x16x32xbf16>
    %52 = vector.shape_cast %51 : vector<1x16x32xbf16> to vector<16x32xbf16>
    %cst_47 = arith.constant dense<0.000000e+00> : vector<144x32xf32>
    %53 = tpu.matmul %50, %52, %cst_47 {dimension_numbers = #tpu.dot_dimension_numbers<[1], [0], [0], [1], [0, 0, 1, 1], [], []>} : vector<144x16xbf16>, vector<16x32xbf16>, vector<144x32xf32> -> vector<144x32xf32>
    %54 = arith.addf %48, %53 : vector<144x32xf32>
    %c0_48 = arith.constant 0 : index
    %c0_49 = arith.constant 0 : index
    %55 = vector.load %arg3[%c0_48, %c0_49] : memref<1x32xf32, #tpu.memory_space<vmem>>, vector<1x32xf32>
    %56 = vector.broadcast %55 : vector<1x32xf32> to vector<144x32xf32>
    %57 = arith.addf %54, %56 : vector<144x32xf32>
    %cst_50 = arith.constant 0.000000e+00 : f32
    %58 = vector.broadcast %cst_50 : f32 to vector<144x32xf32>
    %59 = arith.maximumf %57, %58 : vector<144x32xf32>
    %60 = arith.truncf %59 : vector<144x32xf32> to vector<144x32xbf16>
    %c0_51 = arith.constant 0 : index
    %c0_52 = arith.constant 0 : index
    %61 = vector.load %arg4[%c0_51, %c0_52] : memref<32x128xbf16, #tpu.memory_space<vmem>>, vector<32x128xbf16>
    %cst_53 = arith.constant dense<0.000000e+00> : vector<144x128xf32>
    %62 = tpu.matmul %60, %61, %cst_53 {dimension_numbers = #tpu.dot_dimension_numbers<[1], [0], [0], [1], [0, 0, 1, 1], [], []>} : vector<144x32xbf16>, vector<32x128xbf16>, vector<144x128xf32> -> vector<144x128xf32>
    %c0_54 = arith.constant 0 : index
    %c0_55 = arith.constant 0 : index
    %63 = vector.load %arg5[%c0_54, %c0_55] : memref<1x128xf32, #tpu.memory_space<vmem>>, vector<1x128xf32>
    %64 = vector.broadcast %63 : vector<1x128xf32> to vector<144x128xf32>
    %65 = arith.addf %62, %64 : vector<144x128xf32>
    %cst_56 = arith.constant 0.000000e+00 : f32
    %66 = vector.broadcast %cst_56 : f32 to vector<144x128xf32>
    %67 = arith.subf %66, %65 : vector<144x128xf32>
    %68 = math.exp %67 : vector<144x128xf32>
    %cst_57 = arith.constant 1.000000e+00 : f32
    %69 = vector.broadcast %cst_57 : f32 to vector<144x128xf32>
    %70 = arith.addf %69, %68 : vector<144x128xf32>
    %71 = tpu.reciprocal %70 {approx = true} : vector<144x128xf32> -> vector<144x128xf32>
    %72 = tpu.iota {dimensions = array<i32: 1>} : vector<144x128xi32>
    %c18_i32 = arith.constant 18 : i32
    %73 = vector.broadcast %c18_i32 : i32 to vector<144x128xi32>
    %74 = arith.cmpi slt, %72, %73 : vector<144x128xi32>
    %75 = arith.select %74, %71, %65 : vector<144x128xi1>, vector<144x128xf32>
    %c0_58 = arith.constant 0 : index
    %c0_59 = arith.constant 0 : index
    %c0_60 = arith.constant 0 : index
    %76 = vector.load %arg6[%c0_58, %c0_59, %c0_60] : memref<1x144x128xf32, #tpu.memory_space<vmem>>, vector<1x144x128xf32>
    %77 = vector.shape_cast %76 : vector<1x144x128xf32> to vector<144x128xf32>
    %78 = vector.shape_cast %75 : vector<144x128xf32> to vector<1x144x128xf32>
    tpu.vector_store %arg6[%c0_58, %c0_59, %c0_60], %78 {strides = array<i32>} : memref<1x144x128xf32, #tpu.memory_space<vmem>>, vector<1x144x128xf32>,
    return
  }
  func.func @transform_0(%arg0: i32) -> (i32, i32, i32) {
    %c0_i32 = arith.constant 0 : i32
    %c0_i32_0 = arith.constant 0 : i32
    %c0_i32_1 = arith.constant 0 : i32
    return %arg0, %c0_i32, %c0_i32_0 : i32, i32, i32
  }
  func.func @transform_1(%arg0: i32) -> (i32, i32, i32) {
    %c0_i32 = arith.constant 0 : i32
    %c0_i32_0 = arith.constant 0 : i32
    %c0_i32_1 = arith.constant 0 : i32
    %c0_i32_2 = arith.constant 0 : i32
    return %c0_i32, %c0_i32_0, %c0_i32_1 : i32, i32, i32
  }
  func.func @transform_2(%arg0: i32) -> (i32, i32) {
    %c0_i32 = arith.constant 0 : i32
    %c0_i32_0 = arith.constant 0 : i32
    %c0_i32_1 = arith.constant 0 : i32
    return %c0_i32, %c0_i32_0 : i32, i32
  }
  func.func @transform_3(%arg0: i32) -> (i32, i32) {
    %c0_i32 = arith.constant 0 : i32
    %c0_i32_0 = arith.constant 0 : i32
    %c0_i32_1 = arith.constant 0 : i32
    return %c0_i32, %c0_i32_0 : i32, i32
  }
  func.func @transform_4(%arg0: i32) -> (i32, i32) {
    %c0_i32 = arith.constant 0 : i32
    %c0_i32_0 = arith.constant 0 : i32
    %c0_i32_1 = arith.constant 0 : i32
    return %c0_i32, %c0_i32_0 : i32, i32
  }
  func.func @transform_5(%arg0: i32) -> (i32, i32, i32) {
    %c0_i32 = arith.constant 0 : i32
    %c0_i32_0 = arith.constant 0 : i32
    %c0_i32_1 = arith.constant 0 : i32
    return %arg0, %c0_i32, %c0_i32_0 : i32, i32, i32
  }
}

</mosaic_0001>

<llo_original>
// kernel: tpu_custom_call.1
$region0: #{tpu_custom_call.1}
  #allocation0 [shape = 'u32[]', space=smem, size = 0x4, offset = 0x4, fixed_abs, tag = 'smem constant byte address 0x4 - core index']
  #allocation1 [shape = 'u32[144,128]{1,0:T(1,128)}', space=vmem, size = 0x12000, scoped, tag = 'internal scratch']
  %s0 = inlined_call_operand.vmem [shape: bf16[2,176,16], index: 0, kind: input, shape index: {}]
  %s1 = inlined_call_operand.vmem [shape: bf16[9,16,32], index: 1, kind: input, shape index: {}]
  %s2 = inlined_call_operand.vmem [shape: f32[1,32], index: 2, kind: input, shape index: {}]
  %s3 = inlined_call_operand.vmem [shape: bf16[32,128], index: 3, kind: input, shape index: {}]
  %s4 = inlined_call_operand.vmem [shape: f32[1,128], index: 4, kind: input, shape index: {}]
  %s5 = inlined_call_operand.hbm [shape: f32[2,144,128], index: 5, kind: output, shape index: {}]
  %s6 = sld [smem:[#allocation0]]
  $region53: #{tpu_custom_call.1} parent=0
    _
  %s8 = ssub.s32 1, %s6
  %s9 = scalar_select 0, %s8, %s6
  $region1: #{tpu_custom_call.1} parent=0
    #allocation2 [shape = 'u8[147456]{0}', space=vmem, size = 0x24000, scoped, tag = 'output window, operand 0']
    #allocation3 [shape = 's32[2]{0}', space=sflag, size = 0x8, scoped, tag = 'scoped memory for tpu_custom_call.1']
    %10 = vsyncpa [#allocation3], 0
    %s11 = scalar_lea.sflag [#allocation3], 1
    %12 = vsyncpa %s11, 0
    loop: start=0, step=1, limit=4
    $region2: #{tpu_custom_call.1} parent=1 // loop_pre_header
      _
    $region3: #{tpu_custom_call.1} parent=1 // loop_header
      %s14 = sphi 0, %s18
      %p15 = scmp.ge.s32.totalorder %s14, 4
      %s24 = sphi 0, %s26
      %s27 = sphi 0, %s24
      %s28 = sphi 0, %s27
      %s44 = sphi 0, %s28
      %s48 = sphi 0, %s48
      %s50 = sphi 0, %s48
      %s51 = sphi 0, %s50
      %s65 = sphi 0, %s51
      %s69 = sphi 0, %s69
      %s71 = sphi 0, %s69
      %s72 = sphi 0, %s71
      %s86 = sphi 0, %s72
      %s90 = sphi 0, %s90
      %s92 = sphi 0, %s90
      %s93 = sphi 0, %s92
      %s107 = sphi 0, %s93
      %s111 = sphi 0, %s111
      %s113 = sphi 0, %s111
      %s114 = sphi 0, %s113
      %s128 = sphi 0, %s114
      %s134 = sphi 0, %s136
      %s137 = sphi 0, %s134
      %s138 = sphi 0, %s137
      %s154 = sphi 0, %s138
    $region4: #{tpu_custom_call.1} parent=1 // loop_header_branch
      %17 = sbr.rel (%p15) target = $region8
    $region5: #{tpu_custom_call.1} parent=1 // loop_body
      %s19 = ssub.s32 %s14, 1
      %s20 = ssub.s32 %s14, 2
      %s21 = sadd.s32 %s14, 1
      %s22 = ssub.s32 %s14, %s21
      %p23 = scmp.eq.s32.totalorder %s22, 0
      %s25 = sadd.s32 %s24, 1
      %s26 = scalar_select %p23, %s24, %s25
      %p29 = pneg %p23
      %p30 = scmp.eq.s32.totalorder %s14, 1
      %p31 = por %p29, %p30
      %p32 = scmp.ne.s32.totalorder %s24, %s27
      %p33 = scmp.eq.s32.totalorder %s14, 0
      %p34 = por %p32, %p33
      %p35 = scmp.ne.s32.totalorder %s24, %s27
      %p36 = scmp.eq.s32.totalorder %s19, 1
      %p37 = por %p35, %p36
      %p38 = scmp.ne.s32.totalorder %s27, %s28
      %p39 = scmp.eq.s32.totalorder %s19, 0
      %p40 = por %p38, %p39
      %p41 = scmp.ne.s32.totalorder %s27, %s28
      %p42 = scmp.eq.s32.totalorder %s20, 1
      %p43 = por %p41, %p42
      %p45 = scmp.ne.s32.totalorder %s28, %s44
      %p46 = scmp.eq.s32.totalorder %s20, 0
      %p47 = por %p45, %p46
      %s49 = sadd.s32 %s48, 1
      %p52 = scmp.eq.s32.totalorder %s14, 1
      %p53 = scmp.ne.s32.totalorder %s48, %s50
      %p54 = scmp.eq.s32.totalorder %s14, 0
      %p55 = por %p53, %p54
      %p56 = scmp.ne.s32.totalorder %s48, %s50
      %p57 = scmp.eq.s32.totalorder %s19, 1
      %p58 = por %p56, %p57
      %p59 = scmp.ne.s32.totalorder %s50, %s51
      %p60 = scmp.eq.s32.totalorder %s19, 0
      %p61 = por %p59, %p60
      %p62 = scmp.ne.s32.totalorder %s50, %s51
      %p63 = scmp.eq.s32.totalorder %s20, 1
      %p64 = por %p62, %p63
      %p66 = scmp.ne.s32.totalorder %s51, %s65
      %p67 = scmp.eq.s32.totalorder %s20, 0
      %p68 = por %p66, %p67
      %s70 = sadd.s32 %s69, 1
      %p73 = scmp.eq.s32.totalorder %s14, 1
      %p74 = scmp.ne.s32.totalorder %s69, %s71
      %p75 = scmp.eq.s32.totalorder %s14, 0
      %p76 = por %p74, %p75
      %p77 = scmp.ne.s32.totalorder %s69, %s71
      %p78 = scmp.eq.s32.totalorder %s19, 1
      %p79 = por %p77, %p78
      %p80 = scmp.ne.s32.totalorder %s71, %s72
      %p81 = scmp.eq.s32.totalorder %s19, 0
      %p82 = por %p80, %p81
      %p83 = scmp.ne.s32.totalorder %s71, %s72
      %p84 = scmp.eq.s32.totalorder %s20, 1
      %p85 = por %p83, %p84
      %p87 = scmp.ne.s32.totalorder %s72, %s86
      %p88 = scmp.eq.s32.totalorder %s20, 0
      %p89 = por %p87, %p88
      %s91 = sadd.s32 %s90, 1
      %p94 = scmp.eq.s32.totalorder %s14, 1
      %p95 = scmp.ne.s32.totalorder %s90, %s92
      %p96 = scmp.eq.s32.totalorder %s14, 0
      %p97 = por %p95, %p96
      %p98 = scmp.ne.s32.totalorder %s90, %s92
      %p99 = scmp.eq.s32.totalorder %s19, 1
      %p100 = por %p98, %p99
      %p101 = scmp.ne.s32.totalorder %s92, %s93
      %p102 = scmp.eq.s32.totalorder %s19, 0
      %p103 = por %p101, %p102
      %p104 = scmp.ne.s32.totalorder %s92, %s93
      %p105 = scmp.eq.s32.totalorder %s20, 1
      %p106 = por %p104, %p105
      %p108 = scmp.ne.s32.totalorder %s93, %s107
      %p109 = scmp.eq.s32.totalorder %s20, 0
      %p110 = por %p108, %p109
      %s112 = sadd.s32 %s111, 1
      %p115 = scmp.eq.s32.totalorder %s14, 1
      %p116 = scmp.ne.s32.totalorder %s111, %s113
      %p117 = scmp.eq.s32.totalorder %s14, 0
      %p118 = por %p116, %p117
      %p119 = scmp.ne.s32.totalorder %s111, %s113
      %p120 = scmp.eq.s32.totalorder %s19, 1
      %p121 = por %p119, %p120
      %p122 = scmp.ne.s32.totalorder %s113, %s114
      %p123 = scmp.eq.s32.totalorder %s19, 0
      %p124 = por %p122, %p123
      %p125 = scmp.ne.s32.totalorder %s113, %s114
      %p126 = scmp.eq.s32.totalorder %s20, 1
      %p127 = por %p125, %p126
      %p129 = scmp.ne.s32.totalorder %s114, %s128
      %p130 = scmp.eq.s32.totalorder %s20, 0
      %p131 = por %p129, %p130
      %s132 = ssub.s32 %s14, %s21
      %p133 = scmp.eq.s32.totalorder %s132, 0
      %s135 = sadd.s32 %s134, 1
      %s136 = scalar_select %p133, %s134, %s135
      %p139 = pneg %p133
      %p140 = scmp.eq.s32.totalorder %s14, 1
      %p141 = por %p139, %p140
      %p142 = scmp.ne.s32.totalorder %s134, %s137
      %p143 = scmp.eq.s32.totalorder %s14, 0
      %p144 = por %p142, %p143
      %p145 = scmp.ne.s32.totalorder %s134, %s137
      %p146 = scmp.eq.s32.totalorder %s19, 1
      %p147 = por %p145, %p146
      %p148 = scmp.ne.s32.totalorder %s137, %s138
      %p149 = scmp.eq.s32.totalorder %s19, 0
      %p150 = por %p148, %p149
      %p151 = scmp.ne.s32.totalorder %s137, %s138
      %p152 = scmp.eq.s32.totalorder %s20, 1
      %p153 = por %p151, %p152
      %p155 = scmp.ne.s32.totalorder %s138, %s154
      %p156 = scmp.eq.s32.totalorder %s20, 0
      %p157 = por %p155, %p156
      %p158 = scmp.le.s32.totalorder 1, %s14
      %p159 = scmp.lt.s32.totalorder %s14, 3
      %p160 = pnand %p158, %p159
      %p161 = pneg %p160
      // Predicated region
      $region9: #{tpu_custom_call.1} parent=5 // pred_check
        _
      $region10: #{tpu_custom_call.1} parent=5 // pred_check_branch
        %163 = sbr.rel (%p160) target = $region12
      $region11: #{tpu_custom_call.1} parent=5 // pred_region
        %s164 = ssub.s32 %s14, 1
        // Predicated region
        $region13: #{tpu_custom_call.1} parent=11 // pred_check
          %p165 = pneg %p61
        $region14: #{tpu_custom_call.1} parent=11 // pred_check_branch
          %167 = sbr.rel (%p165) target = $region16
        $region15: #{tpu_custom_call.1} parent=11 // pred_region
          _
        $region16: #{tpu_custom_call.1} parent=11 // pred_fallthru
          _
        // Predicated region
        $region17: #{tpu_custom_call.1} parent=11 // pred_check
          %p168 = pneg %p82
        $region18: #{tpu_custom_call.1} parent=11 // pred_check_branch
          %170 = sbr.rel (%p168) target = $region20
        $region19: #{tpu_custom_call.1} parent=11 // pred_region
          _
        $region20: #{tpu_custom_call.1} parent=11 // pred_fallthru
          _
        // Predicated region
        $region21: #{tpu_custom_call.1} parent=11 // pred_check
          %p171 = pneg %p103
        $region22: #{tpu_custom_call.1} parent=11 // pred_check_branch
          %173 = sbr.rel (%p171) target = $region24
        $region23: #{tpu_custom_call.1} parent=11 // pred_region
          _
        $region24: #{tpu_custom_call.1} parent=11 // pred_fallthru
          _
        // Predicated region
        $region25: #{tpu_custom_call.1} parent=11 // pred_check
          %p174 = pneg %p124
        $region26: #{tpu_custom_call.1} parent=11 // pred_check_branch
          %176 = sbr.rel (%p174) target = $region28
        $region27: #{tpu_custom_call.1} parent=11 // pred_region
          _
        $region28: #{tpu_custom_call.1} parent=11 // pred_fallthru
          _
      $region12: #{tpu_custom_call.1} parent=5 // pred_fallthru
        _
      %p177 = scmp.lt.s32.totalorder %s14, 2
      // Predicated region
      $region29: #{tpu_custom_call.1} parent=5 // pred_check
        %p178 = pneg %p177
      $region30: #{tpu_custom_call.1} parent=5 // pred_check_branch
        %180 = sbr.rel (%p178) target = $region32
      $region31: #{tpu_custom_call.1} parent=5 // pred_region
        // Predicated region
        $region33: #{tpu_custom_call.1} parent=31 // pred_check
          %p181 = pneg %p34
        $region34: #{tpu_custom_call.1} parent=31 // pred_check_branch
          %183 = sbr.rel (%p181) target = $region36
        $region35: #{tpu_custom_call.1} parent=31 // pred_region
          %p184 = scmp.lt.s32.totalorder %s14, 1
          %s185 = scalar_select %p184, %s14, 1
          %s186 = smul.addr %s185, 22
          %s187 = smul.addr %s186, 4
          %s188 = scalar_lea.vmem %s0, %s187
        $region36: #{tpu_custom_call.1} parent=31 // pred_fallthru
          _
      $region32: #{tpu_custom_call.1} parent=5 // pred_fallthru
        _
      %p189 = scmp.le.s32.totalorder 1, %s14
      %p190 = scmp.lt.s32.totalorder %s14, 3
      %p191 = pnand %p189, %p190
      %p192 = pneg %p191
      // Predicated region
      $region37: #{tpu_custom_call.1} parent=5 // pred_check
        _
      $region38: #{tpu_custom_call.1} parent=5 // pred_check_branch
        %194 = sbr.rel (%p191) target = $region40
      $region39: #{tpu_custom_call.1} parent=5 // pred_region
        %s195 = ssub.s32 %s14, 1
        %p196 = scmp.lt.s32.totalorder %s19, 1
        %s197 = scalar_select %p196, %s19, 1
        %s198 = smul.addr %s197, 22
        %s199 = smul.addr %s198, 4
        %s200 = scalar_lea.vmem %s0, %s199
        %p201 = pneg %p40
        %p202 = pneg %p37
        %p203 = pneg %p61
        %p204 = pneg %p58
        %p205 = pneg %p82
        %p206 = pneg %p79
        %p207 = pneg %p103
        %p208 = pneg %p100
        %p209 = pneg %p124
        %p210 = pneg %p121
        %p211 = pneg %p150
        %p212 = pneg %p147
        %s213 = sand.u32 %s137, 1
        %s214 = scalar_lea.sflag [#allocation3], %s213
        %s215 = sand.u32 %s137, 1
        %s216 = smul.addr %s215, 144
        %s217 = scalar_lea.vmem [#allocation2], %s216
        %p218 = scmp.lt.s32.totalorder %s19, 1
        %s219 = scalar_select %p218, %s19, 1
        %s220 = smul.addr %s219, 22
        %s221 = smul.addr %s220, 4
        %s222 = scalar_lea.vmem %s0, %s221
        %v224 = vld [vmem:[%s222] sm:$0xf]
        %v225 = vld [vmem:[%s222 + $0x4] sm:$0xf]
        %v226 = vld [vmem:[%s222 + $0x8] sm:$0xf]
        %v227 = vld [vmem:[%s222 + $0xc] sm:$0xf]
        %v228 = vld [vmem:[%s222 + $0x10] sm:$0xf]
        %v229 = vld [vmem:[%s222 + $0x14] sm:$0xf]
        %v230 = vld [vmem:[%s222 + $0x18] sm:$0xf]
        %v231 = vld [vmem:[%s222 + $0x1c] sm:$0xf]
        %v232 = vld [vmem:[%s222 + $0x20] sm:$0xf]
        %v233 = vld [vmem:[%s222 + $0x24] sm:$0xf]
        %v234 = vld [vmem:[%s222 + $0x28] sm:$0xf]
        %v235 = vld [vmem:[%s222 + $0x2c] sm:$0xf]
        %v236 = vld [vmem:[%s222 + $0x30] sm:$0xf]
        %v237 = vld [vmem:[%s222 + $0x34] sm:$0xf]
        %v238 = vld [vmem:[%s222 + $0x38] sm:$0xf]
        %v239 = vld [vmem:[%s222 + $0x3c] sm:$0xf]
        %v240 = vld [vmem:[%s222 + $0x40] sm:$0xf]
        %v241 = vld [vmem:[%s222 + $0x44] sm:$0xf]
        %v242 = vld [vmem:[%s1] sm:$0xf]
        %v243 = vld [vmem:[%s1 + $0x4] sm:$0xf]
        %v244 = vld [vmem:[%s222 + $0x48] sm:$0x1]
        %s245 = scalar_lea.vmem %s1, 8
        %v246 = vld [vmem:[%s245] sm:$0xf]
        %v247 = vld [vmem:[%s245 + $0x4] sm:$0xf]
        %v267 = vunpack.c.l.b16 %v224
        %v268 = vunpack.c.l.b16 %v225
        %v269 = vunpack.c.l.b16 %v226
        %v270 = vunpack.c.l.b16 %v227
        %v271 = vunpack.c.l.b16 %v228
        %v272 = vunpack.c.l.b16 %v229
        %v273 = vunpack.c.l.b16 %v230
        %v274 = vunpack.c.l.b16 %v231
        %v275 = vunpack.c.l.b16 %v232
        %v276 = vunpack.c.l.b16 %v233
        %v277 = vunpack.c.l.b16 %v234
        %v278 = vunpack.c.l.b16 %v235
        %v279 = vunpack.c.l.b16 %v236
        %v280 = vunpack.c.l.b16 %v237
        %v281 = vunpack.c.l.b16 %v238
        %v282 = vunpack.c.l.b16 %v239
        %v283 = vunpack.c.l.b16 %v240
        %v284 = vunpack.c.l.b16 %v241
        %v285 = vunpack.c.l.b16 %v244
        %v286 = vpack.c.b16 %v268, %v267
        %v287 = vpack.c.b16 %v270, %v269
        %v288 = vpack.c.b16 %v272, %v271
        %v289 = vpack.c.b16 %v274, %v273
        %v290 = vpack.c.b16 %v276, %v275
        %v291 = vpack.c.b16 %v278, %v277
        %v292 = vpack.c.b16 %v280, %v279
        %v293 = vpack.c.b16 %v282, %v281
        %v294 = vpack.c.b16 %v284, %v283
        %v295 = vpack.c.b16 %v285, %v285
        %vm296 = vsmask.f32 7424
        %v298 = vshrl.u32 %v286, 16
        %v300 = vshll.u32 %v286, 16
        %v302 = vrot.slane %v300, 1
        %v303 = vor.u32 %v298, %v302
        %v305 = vshll.u32 %v287, 16
        %v307 = vrot.slane %v305, 1
        %v308 = vsel %vm296, %v303, %v307
        %v309 = vshrl.u32 %v287, 16
        %v311 = vor.u32 %v309, %v307
        %v313 = vshll.u32 %v288, 16
        %v315 = vrot.slane %v313, 1
        %v316 = vsel %vm296, %v311, %v315
        %v317 = vshrl.u32 %v288, 16
        %v319 = vor.u32 %v317, %v315
        %v321 = vshll.u32 %v289, 16
        %v323 = vrot.slane %v321, 1
        %v324 = vsel %vm296, %v319, %v323
        %v325 = vshrl.u32 %v289, 16
        %v327 = vor.u32 %v325, %v323
        %v329 = vshll.u32 %v290, 16
        %v331 = vrot.slane %v329, 1
        %v332 = vsel %vm296, %v327, %v331
        %v333 = vshrl.u32 %v290, 16
        %v335 = vor.u32 %v333, %v331
        %v337 = vshll.u32 %v291, 16
        %v339 = vrot.slane %v337, 1
        %v340 = vsel %vm296, %v335, %v339
        %v341 = vshrl.u32 %v291, 16
        %v343 = vor.u32 %v341, %v339
        %v345 = vshll.u32 %v292, 16
        %v347 = vrot.slane %v345, 1
        %v348 = vsel %vm296, %v343, %v347
        %v349 = vshrl.u32 %v292, 16
        %v351 = vor.u32 %v349, %v347
        %v353 = vshll.u32 %v293, 16
        %v355 = vrot.slane %v353, 1
        %v356 = vsel %vm296, %v351, %v355
        %v357 = vshrl.u32 %v293, 16
        %v359 = vor.u32 %v357, %v355
        %v361 = vshll.u32 %v294, 16
        %v363 = vrot.slane %v361, 1
        %v364 = vsel %vm296, %v359, %v363
        %v365 = vshrl.u32 %v294, 16
        %v367 = vor.u32 %v365, %v363
        %v369 = vshll.u32 %v295, 16
        %v371 = vrot.slane %v369, 1
        %v372 = vsel %vm296, %v367, %v371
        %v375 = vunpack.c.l.b16 %v246
        %v376 = vunpack.c.l.b16 %v247
        %v377 = vpack.c.b16 %v376, %v375
        %vm379 = vcmask 130048
        %v381 = vsel %vm379, %v308, 0
        %v384 = vsel %vm379, %v316, 0
        %v387 = vsel %vm379, %v324, 0
        %v390 = vsel %vm379, %v332, 0
        %v393 = vsel %vm379, %v340, 0
        %v396 = vsel %vm379, %v348, 0
        %v399 = vsel %vm379, %v356, 0
        %v402 = vsel %vm379, %v364, 0
        %v405 = vsel %vm379, %v372, 0
        %407 = vmatprep.subr.bf16.mxu0 0
        %408 = vmatpush1.bf16.msra.mxu0 %v377
        %409 = vmatprep.subr.bf16.mxu0 0
        %410 = vmatpush1.bf16.msra.mxu0 0
        %411 = vmatprep.subr.bf16.mxu0 0
        %412 = vmatpush1.bf16.msra.mxu0 0
        %413 = vmatprep.subr.bf16.mxu0 0
        %414 = vmatpush1.bf16.msra.mxu0 0
        %415 = vmatprep.subr.bf16.mxu0 0
        %416 = vmatpush1.bf16.msra.mxu0 0
        %417 = vmatprep.subr.bf16.mxu0 0
        %418 = vmatpush1.bf16.msra.mxu0 0
        %419 = vmatprep.subr.bf16.mxu0 0
        %420 = vmatpush1.bf16.msra.mxu0 0
        %421 = vmatprep.subr.bf16.mxu0 0
        %422 = vmatpush1.bf16.msra.mxu0 0
        %423 = vmatprep.subr.bf16.mxu0 0
        %424 = vmatpush1.bf16.msra.mxu0 0
        %425 = vmatprep.subr.bf16.mxu0 0
        %426 = vmatpush1.bf16.msra.mxu0 0
        %427 = vmatprep.subr.bf16.mxu0 0
        %428 = vmatpush1.bf16.msra.mxu0 0
        %429 = vmatprep.subr.bf16.mxu0 0
        %430 = vmatpush1.bf16.msra.mxu0 0
        %431 = vmatprep.subr.bf16.mxu0 0
        %432 = vmatpush1.bf16.msra.mxu0 0
        %433 = vmatprep.subr.bf16.mxu0 0
        %434 = vmatpush1.bf16.msra.mxu0 0
        %435 = vmatprep.subr.bf16.mxu0 0
        %436 = vmatpush1.bf16.msra.mxu0 0
        %437 = vmatprep.subr.bf16.mxu0 0
        %438 = vmatpush1.bf16.msra.mxu0 0
        %439 = vmatprep.mubr.bf16.mxu0 0
        %440 = vmatmul.mubr.bf16.gmra.mrb[0].mxu0 %v381
        %v441 = vpop.f32.mrb[0].mxu0
        %v442 = vadd.f32 0.0, %v441
        %v443 = vpop.f32.mrb[0].mxu0
        %v444 = vpop.f32.mrb[0].mxu0
        %v445 = vadd.f32 0.0, %v444
        %v446 = vpop.f32.mrb[0].mxu0
        %447 = vmatprep.mubr.bf16.mxu0 0
        %448 = vmatmul.mubr.bf16.gmra.mrb[0].mxu0 %v384
        %v449 = vpop.f32.mrb[0].mxu0
        %v450 = vadd.f32 0.0, %v449
        %v451 = vpop.f32.mrb[0].mxu0
        %v452 = vpop.f32.mrb[0].mxu0
        %v453 = vadd.f32 0.0, %v452
        %v454 = vpop.f32.mrb[0].mxu0
        %455 = vmatprep.mubr.bf16.mxu0 0
        %456 = vmatmul.mubr.bf16.gmra.mrb[0].mxu0 %v387
        %v457 = vpop.f32.mrb[0].mxu0
        %v458 = vadd.f32 0.0, %v457
        %v459 = vpop.f32.mrb[0].mxu0
        %v460 = vpop.f32.mrb[0].mxu0
        %v461 = vadd.f32 0.0, %v460
        %v462 = vpop.f32.mrb[0].mxu0
        %463 = vmatprep.mubr.bf16.mxu0 0
        %464 = vmatmul.mubr.bf16.gmra.mrb[0].mxu0 %v390
        %v465 = vpop.f32.mrb[0].mxu0
        %v466 = vadd.f32 0.0, %v465
        %v467 = vpop.f32.mrb[0].mxu0
        %v468 = vpop.f32.mrb[0].mxu0
        %v469 = vadd.f32 0.0, %v468
        %v470 = vpop.f32.mrb[0].mxu0
        %471 = vmatprep.mubr.bf16.mxu0 0
        %472 = vmatmul.mubr.bf16.gmra.mrb[0].mxu0 %v393
        %v473 = vpop.f32.mrb[0].mxu0
        %v474 = vadd.f32 0.0, %v473
        %v475 = vpop.f32.mrb[0].mxu0
        %v476 = vpop.f32.mrb[0].mxu0
        %v477 = vadd.f32 0.0, %v476
        %v478 = vpop.f32.mrb[0].mxu0
        %479 = vmatprep.mubr.bf16.mxu0 0
        %480 = vmatmul.mubr.bf16.gmra.mrb[0].mxu0 %v396
        %v481 = vpop.f32.mrb[0].mxu0
        %v482 = vadd.f32 0.0, %v481
        %v483 = vpop.f32.mrb[0].mxu0
        %v484 = vpop.f32.mrb[0].mxu0
        %v485 = vadd.f32 0.0, %v484
        %v486 = vpop.f32.mrb[0].mxu0
        %487 = vmatprep.mubr.bf16.mxu0 0
        %488 = vmatmul.mubr.bf16.gmra.mrb[0].mxu0 %v399
        %v489 = vpop.f32.mrb[0].mxu0
        %v490 = vadd.f32 0.0, %v489
        %v491 = vpop.f32.mrb[0].mxu0
        %v492 = vpop.f32.mrb[0].mxu0
        %v493 = vadd.f32 0.0, %v492
        %v494 = vpop.f32.mrb[0].mxu0
        %495 = vmatprep.mubr.bf16.mxu0 0
        %496 = vmatmul.mubr.bf16.gmra.mrb[0].mxu0 %v402
        %v497 = vpop.f32.mrb[0].mxu0
        %v498 = vadd.f32 0.0, %v497
        %v499 = vpop.f32.mrb[0].mxu0
        %v500 = vpop.f32.mrb[0].mxu0
        %v501 = vadd.f32 0.0, %v500
        %v502 = vpop.f32.mrb[0].mxu0
        %503 = vmatprep.mubr.bf16.mxu0 0
        %504 = vmatmul.mubr.bf16.gmra.mrb[0].mxu0 %v405
        %v505 = vpop.f32.mrb[0].mxu0
        %v506 = vadd.f32 0.0, %v505
        %v507 = vpop.f32.mrb[0].mxu0
        %v508 = vpop.f32.mrb[0].mxu0
        %v509 = vadd.f32 0.0, %v508
        %v510 = vpop.f32.mrb[0].mxu0
        %511 = vdwg.mxu0
        %v514 = vunpack.c.l.b16 %v242
        %v515 = vunpack.c.l.b16 %v243
        %v516 = vpack.c.b16 %v515, %v514
        %v518 = vsel %vm379, %v286, 0
        %v520 = vsel %vm379, %v287, 0
        %v522 = vsel %vm379, %v288, 0
        %v524 = vsel %vm379, %v289, 0
        %v526 = vsel %vm379, %v290, 0
        %v528 = vsel %vm379, %v291, 0
        %v530 = vsel %vm379, %v292, 0
        %v532 = vsel %vm379, %v293, 0
        %v534 = vsel %vm379, %v294, 0
        %536 = vmatprep.subr.bf16.mxu0 0
        %537 = vmatpush1.bf16.msra.mxu0 %v516
        %538 = vmatprep.subr.bf16.mxu0 0
        %539 = vmatpush1.bf16.msra.mxu0 0
        %540 = vmatprep.subr.bf16.mxu0 0
        %541 = vmatpush1.bf16.msra.mxu0 0
        %542 = vmatprep.subr.bf16.mxu0 0
        %543 = vmatpush1.bf16.msra.mxu0 0
        %544 = vmatprep.subr.bf16.mxu0 0
        %545 = vmatpush1.bf16.msra.mxu0 0
        %546 = vmatprep.subr.bf16.mxu0 0
        %547 = vmatpush1.bf16.msra.mxu0 0
        %548 = vmatprep.subr.bf16.mxu0 0
        %549 = vmatpush1.bf16.msra.mxu0 0
        %550 = vmatprep.subr.bf16.mxu0 0
        %551 = vmatpush1.bf16.msra.mxu0 0
        %552 = vmatprep.subr.bf16.mxu0 0
        %553 = vmatpush1.bf16.msra.mxu0 0
        %554 = vmatprep.subr.bf16.mxu0 0
        %555 = vmatpush1.bf16.msra.mxu0 0
        %556 = vmatprep.subr.bf16.mxu0 0
        %557 = vmatpush1.bf16.msra.mxu0 0
        %558 = vmatprep.subr.bf16.mxu0 0
        %559 = vmatpush1.bf16.msra.mxu0 0
        %560 = vmatprep.subr.bf16.mxu0 0
        %561 = vmatpush1.bf16.msra.mxu0 0
        %562 = vmatprep.subr.bf16.mxu0 0
        %563 = vmatpush1.bf16.msra.mxu0 0
        %564 = vmatprep.subr.bf16.mxu0 0
        %565 = vmatpush1.bf16.msra.mxu0 0
        %566 = vmatprep.subr.bf16.mxu0 0
        %567 = vmatpush1.bf16.msra.mxu0 0
        %568 = vmatprep.mubr.bf16.mxu0 0
        %569 = vmatmul.mubr.bf16.gmra.mrb[0].mxu0 %v518
        %v570 = vpop.f32.mrb[0].mxu0
        %v571 = vadd.f32 %v442, %v570
        %v572 = vpop.f32.mrb[0].mxu0
        %v573 = vpop.f32.mrb[0].mxu0
        %v574 = vadd.f32 %v445, %v573
        %v575 = vpop.f32.mrb[0].mxu0
        %576 = vmatprep.mubr.bf16.mxu0 0
        %577 = vmatmul.mubr.bf16.gmra.mrb[0].mxu0 %v520
        %v578 = vpop.f32.mrb[0].mxu0
        %v579 = vadd.f32 %v450, %v578
        %v580 = vpop.f32.mrb[0].mxu0
        %v581 = vpop.f32.mrb[0].mxu0
        %v582 = vadd.f32 %v453, %v581
        %v583 = vpop.f32.mrb[0].mxu0
        %584 = vmatprep.mubr.bf16.mxu0 0
        %585 = vmatmul.mubr.bf16.gmra.mrb[0].mxu0 %v522
        %v586 = vpop.f32.mrb[0].mxu0
        %v587 = vadd.f32 %v458, %v586
        %v588 = vpop.f32.mrb[0].mxu0
        %v589 = vpop.f32.mrb[0].mxu0
        %v590 = vadd.f32 %v461, %v589
        %v591 = vpop.f32.mrb[0].mxu0
        %592 = vmatprep.mubr.bf16.mxu0 0
        %593 = vmatmul.mubr.bf16.gmra.mrb[0].mxu0 %v524
        %v594 = vpop.f32.mrb[0].mxu0
        %v595 = vadd.f32 %v466, %v594
        %v596 = vpop.f32.mrb[0].mxu0
        %v597 = vpop.f32.mrb[0].mxu0
        %v598 = vadd.f32 %v469, %v597
        %v599 = vpop.f32.mrb[0].mxu0
        %600 = vmatprep.mubr.bf16.mxu0 0
        %601 = vmatmul.mubr.bf16.gmra.mrb[0].mxu0 %v526
        %v602 = vpop.f32.mrb[0].mxu0
        %v603 = vadd.f32 %v474, %v602
        %v604 = vpop.f32.mrb[0].mxu0
        %v605 = vpop.f32.mrb[0].mxu0
        %v606 = vadd.f32 %v477, %v605
        %v607 = vpop.f32.mrb[0].mxu0
        %608 = vmatprep.mubr.bf16.mxu0 0
        %609 = vmatmul.mubr.bf16.gmra.mrb[0].mxu0 %v528
        %v610 = vpop.f32.mrb[0].mxu0
        %v611 = vadd.f32 %v482, %v610
        %v612 = vpop.f32.mrb[0].mxu0
        %v613 = vpop.f32.mrb[0].mxu0
        %v614 = vadd.f32 %v485, %v613
        %v615 = vpop.f32.mrb[0].mxu0
        %616 = vmatprep.mubr.bf16.mxu0 0
        %617 = vmatmul.mubr.bf16.gmra.mrb[0].mxu0 %v530
        %v618 = vpop.f32.mrb[0].mxu0
        %v619 = vadd.f32 %v490, %v618
        %v620 = vpop.f32.mrb[0].mxu0
        %v621 = vpop.f32.mrb[0].mxu0
        %v622 = vadd.f32 %v493, %v621
        %v623 = vpop.f32.mrb[0].mxu0
        %624 = vmatprep.mubr.bf16.mxu0 0
        %625 = vmatmul.mubr.bf16.gmra.mrb[0].mxu0 %v532
        %v626 = vpop.f32.mrb[0].mxu0
        %v627 = vadd.f32 %v498, %v626
        %v628 = vpop.f32.mrb[0].mxu0
        %v629 = vpop.f32.mrb[0].mxu0
        %v630 = vadd.f32 %v501, %v629
        %v631 = vpop.f32.mrb[0].mxu0
        %632 = vmatprep.mubr.bf16.mxu0 0
        %633 = vmatmul.mubr.bf16.gmra.mrb[0].mxu0 %v534
        %v634 = vpop.f32.mrb[0].mxu0
        %v635 = vadd.f32 %v506, %v634
        %v636 = vpop.f32.mrb[0].mxu0
        %v637 = vpop.f32.mrb[0].mxu0
        %v638 = vadd.f32 %v509, %v637
        %v639 = vpop.f32.mrb[0].mxu0
        %640 = vdwg.mxu0
        %v641 = vld [vmem:[%s222] sm:$0xe]
        %s642 = scalar_lea.vmem %s1, 16
        %v643 = vld [vmem:[%s642] sm:$0xf]
        %v644 = vld [vmem:[%s642 + $0x4] sm:$0xf]
        %v646 = vunpack.c.l.b16 %v641
        %v647 = vpack.c.b16 %v268, %v646
        %vm648 = vcmask 1046528
        %v649 = vrot.slane %v647, 1
        %v650 = vrot.slane %v287, 1
        %v651 = vsel %vm648, %v649, %v650
        %v652 = vrot.slane %v288, 1
        %v653 = vsel %vm648, %v650, %v652
        %v654 = vrot.slane %v289, 1
        %v655 = vsel %vm648, %v652, %v654
        %v656 = vrot.slane %v290, 1
        %v657 = vsel %vm648, %v654, %v656
        %v658 = vrot.slane %v291, 1
        %v659 = vsel %vm648, %v656, %v658
        %v660 = vrot.slane %v292, 1
        %v661 = vsel %vm648, %v658, %v660
        %v662 = vrot.slane %v293, 1
        %v663 = vsel %vm648, %v660, %v662
        %v664 = vrot.slane %v294, 1
        %v665 = vsel %vm648, %v662, %v664
        %v666 = vrot.slane %v295, 1
        %v667 = vsel %vm648, %v664, %v666
        %v670 = vunpack.c.l.b16 %v643
        %v671 = vunpack.c.l.b16 %v644
        %v672 = vpack.c.b16 %v671, %v670
        %v675 = vsel %vm379, %v651, 0
        %v678 = vsel %vm379, %v653, 0
        %v681 = vsel %vm379, %v655, 0
        %v684 = vsel %vm379, %v657, 0
        %v687 = vsel %vm379, %v659, 0
        %v690 = vsel %vm379, %v661, 0
        %v693 = vsel %vm379, %v663, 0
        %v696 = vsel %vm379, %v665, 0
        %v699 = vsel %vm379, %v667, 0
        %701 = vmatprep.subr.bf16.mxu0 0
        %702 = vmatpush1.bf16.msra.mxu0 %v672
        %703 = vmatprep.subr.bf16.mxu0 0
        %704 = vmatpush1.bf16.msra.mxu0 0
        %705 = vmatprep.subr.bf16.mxu0 0
        %706 = vmatpush1.bf16.msra.mxu0 0
        %707 = vmatprep.subr.bf16.mxu0 0
        %708 = vmatpush1.bf16.msra.mxu0 0
        %709 = vmatprep.subr.bf16.mxu0 0
        %710 = vmatpush1.bf16.msra.mxu0 0
        %711 = vmatprep.subr.bf16.mxu0 0
        %712 = vmatpush1.bf16.msra.mxu0 0
        %713 = vmatprep.subr.bf16.mxu0 0
        %714 = vmatpush1.bf16.msra.mxu0 0
        %715 = vmatprep.subr.bf16.mxu0 0
        %716 = vmatpush1.bf16.msra.mxu0 0
        %717 = vmatprep.subr.bf16.mxu0 0
        %718 = vmatpush1.bf16.msra.mxu0 0
        %719 = vmatprep.subr.bf16.mxu0 0
        %720 = vmatpush1.bf16.msra.mxu0 0
        %721 = vmatprep.subr.bf16.mxu0 0
        %722 = vmatpush1.bf16.msra.mxu0 0
        %723 = vmatprep.subr.bf16.mxu0 0
        %724 = vmatpush1.bf16.msra.mxu0 0
        %725 = vmatprep.subr.bf16.mxu0 0
        %726 = vmatpush1.bf16.msra.mxu0 0
        %727 = vmatprep.subr.bf16.mxu0 0
        %728 = vmatpush1.bf16.msra.mxu0 0
        %729 = vmatprep.subr.bf16.mxu0 0
        %730 = vmatpush1.bf16.msra.mxu0 0
        %731 = vmatprep.subr.bf16.mxu0 0
        %732 = vmatpush1.bf16.msra.mxu0 0
        %733 = vmatprep.mubr.bf16.mxu0 0
        %734 = vmatmul.mubr.bf16.gmra.mrb[0].mxu0 %v675
        %v735 = vpop.f32.mrb[0].mxu0
        %v736 = vadd.f32 0.0, %v735
        %v737 = vpop.f32.mrb[0].mxu0
        %v738 = vpop.f32.mrb[0].mxu0
        %v739 = vadd.f32 0.0, %v738
        %v740 = vpop.f32.mrb[0].mxu0
        %741 = vmatprep.mubr.bf16.mxu0 0
        %742 = vmatmul.mubr.bf16.gmra.mrb[0].mxu0 %v678
        %v743 = vpop.f32.mrb[0].mxu0
        %v744 = vadd.f32 0.0, %v743
        %v745 = vpop.f32.mrb[0].mxu0
        %v746 = vpop.f32.mrb[0].mxu0
        %v747 = vadd.f32 0.0, %v746
        %v748 = vpop.f32.mrb[0].mxu0
        %749 = vmatprep.mubr.bf16.mxu0 0
        %750 = vmatmul.mubr.bf16.gmra.mrb[0].mxu0 %v681
        %v751 = vpop.f32.mrb[0].mxu0
        %v752 = vadd.f32 0.0, %v751
        %v753 = vpop.f32.mrb[0].mxu0
        %v754 = vpop.f32.mrb[0].mxu0
        %v755 = vadd.f32 0.0, %v754
        %v756 = vpop.f32.mrb[0].mxu0
        %757 = vmatprep.mubr.bf16.mxu0 0
        %758 = vmatmul.mubr.bf16.gmra.mrb[0].mxu0 %v684
        %v759 = vpop.f32.mrb[0].mxu0
        %v760 = vadd.f32 0.0, %v759
        %v761 = vpop.f32.mrb[0].mxu0
        %v762 = vpop.f32.mrb[0].mxu0
        %v763 = vadd.f32 0.0, %v762
        %v764 = vpop.f32.mrb[0].mxu0
        %765 = vmatprep.mubr.bf16.mxu0 0
        %766 = vmatmul.mubr.bf16.gmra.mrb[0].mxu0 %v687
        %v767 = vpop.f32.mrb[0].mxu0
        %v768 = vadd.f32 0.0, %v767
        %v769 = vpop.f32.mrb[0].mxu0
        %v770 = vpop.f32.mrb[0].mxu0
        %v771 = vadd.f32 0.0, %v770
        %v772 = vpop.f32.mrb[0].mxu0
        %773 = vmatprep.mubr.bf16.mxu0 0
        %774 = vmatmul.mubr.bf16.gmra.mrb[0].mxu0 %v690
        %v775 = vpop.f32.mrb[0].mxu0
        %v776 = vadd.f32 0.0, %v775
        %v777 = vpop.f32.mrb[0].mxu0
        %v778 = vpop.f32.mrb[0].mxu0
        %v779 = vadd.f32 0.0, %v778
        %v780 = vpop.f32.mrb[0].mxu0
        %781 = vmatprep.mubr.bf16.mxu0 0
        %782 = vmatmul.mubr.bf16.gmra.mrb[0].mxu0 %v693
        %v783 = vpop.f32.mrb[0].mxu0
        %v784 = vadd.f32 0.0, %v783
        %v785 = vpop.f32.mrb[0].mxu0
        %v786 = vpop.f32.mrb[0].mxu0
        %v787 = vadd.f32 0.0, %v786
        %v788 = vpop.f32.mrb[0].mxu0
        %789 = vmatprep.mubr.bf16.mxu0 0
        %790 = vmatmul.mubr.bf16.gmra.mrb[0].mxu0 %v696
        %v791 = vpop.f32.mrb[0].mxu0
        %v792 = vadd.f32 0.0, %v791
        %v793 = vpop.f32.mrb[0].mxu0
        %v794 = vpop.f32.mrb[0].mxu0
        %v795 = vadd.f32 0.0, %v794
        %v796 = vpop.f32.mrb[0].mxu0
        %797 = vmatprep.mubr.bf16.mxu0 0
        %798 = vmatmul.mubr.bf16.gmra.mrb[0].mxu0 %v699
        %v799 = vpop.f32.mrb[0].mxu0
        %v800 = vadd.f32 0.0, %v799
        %v801 = vpop.f32.mrb[0].mxu0
        %v802 = vpop.f32.mrb[0].mxu0
        %v803 = vadd.f32 0.0, %v802
        %v804 = vpop.f32.mrb[0].mxu0
        %805 = vdwg.mxu0
        %v806 = vadd.f32 %v571, %v736
        %v807 = vadd.f32 %v574, %v739
        %v808 = vadd.f32 %v579, %v744
        %v809 = vadd.f32 %v582, %v747
        %v810 = vadd.f32 %v587, %v752
        %v811 = vadd.f32 %v590, %v755
        %v812 = vadd.f32 %v595, %v760
        %v813 = vadd.f32 %v598, %v763
        %v814 = vadd.f32 %v603, %v768
        %v815 = vadd.f32 %v606, %v771
        %v816 = vadd.f32 %v611, %v776
        %v817 = vadd.f32 %v614, %v779
        %v818 = vadd.f32 %v619, %v784
        %v819 = vadd.f32 %v622, %v787
        %v820 = vadd.f32 %v627, %v792
        %v821 = vadd.f32 %v630, %v795
        %v822 = vadd.f32 %v635, %v800
        %v823 = vadd.f32 %v638, %v803
        %v824 = vld [vmem:[%s222 + $0x4] sm:$0x8]
        %v825 = vld [vmem:[%s222 + $0x8] sm:$0xf]
        %v826 = vld [vmem:[%s222 + $0xc] sm:$0xf]
        %v827 = vld [vmem:[%s222 + $0x10] sm:$0xf]
        %v828 = vld [vmem:[%s222 + $0x14] sm:$0xf]
        %v829 = vld [vmem:[%s222 + $0x18] sm:$0xf]
        %v830 = vld [vmem:[%s222 + $0x1c] sm:$0xf]
        %v831 = vld [vmem:[%s222 + $0x20] sm:$0xf]
        %v832 = vld [vmem:[%s222 + $0x24] sm:$0xf]
        %v833 = vld [vmem:[%s222 + $0x28] sm:$0xf]
        %v834 = vld [vmem:[%s222 + $0x2c] sm:$0xf]
        %v835 = vld [vmem:[%s222 + $0x30] sm:$0xf]
        %v836 = vld [vmem:[%s222 + $0x34] sm:$0xf]
        %v837 = vld [vmem:[%s222 + $0x38] sm:$0xf]
        %v838 = vld [vmem:[%s222 + $0x3c] sm:$0xf]
        %v839 = vld [vmem:[%s222 + $0x40] sm:$0xf]
        %v840 = vld [vmem:[%s222 + $0x44] sm:$0xf]
        %v841 = vld [vmem:[%s222 + $0x48] sm:$0xf]
        %v842 = vld [vmem:[%s222 + $0x4c] sm:$0x7]
        %s843 = scalar_lea.vmem %s1, 24
        %v844 = vld [vmem:[%s843] sm:$0xf]
        %v845 = vld [vmem:[%s843 + $0x4] sm:$0xf]
        %v865 = vunpack.c.l.b16 %v824
        %v866 = vunpack.c.l.b16 %v825
        %v867 = vunpack.c.l.b16 %v826
        %v868 = vunpack.c.l.b16 %v827
        %v869 = vunpack.c.l.b16 %v828
        %v870 = vunpack.c.l.b16 %v829
        %v871 = vunpack.c.l.b16 %v830
        %v872 = vunpack.c.l.b16 %v831
        %v873 = vunpack.c.l.b16 %v832
        %v874 = vunpack.c.l.b16 %v833
        %v875 = vunpack.c.l.b16 %v834
        %v876 = vunpack.c.l.b16 %v835
        %v877 = vunpack.c.l.b16 %v836
        %v878 = vunpack.c.l.b16 %v837
        %v879 = vunpack.c.l.b16 %v838
        %v880 = vunpack.c.l.b16 %v839
        %v881 = vunpack.c.l.b16 %v840
        %v882 = vunpack.c.l.b16 %v841
        %v883 = vunpack.c.l.b16 %v842
        %v884 = vpack.c.b16 %v866, %v865
        %v885 = vpack.c.b16 %v868, %v867
        %v886 = vpack.c.b16 %v870, %v869
        %v887 = vpack.c.b16 %v872, %v871
        %v888 = vpack.c.b16 %v874, %v873
        %v889 = vpack.c.b16 %v876, %v875
        %v890 = vpack.c.b16 %v878, %v877
        %v891 = vpack.c.b16 %v880, %v879
        %v892 = vpack.c.b16 %v882, %v881
        %v893 = vpack.c.b16 %v883, %v883
        %vm894 = vcmask 1044480
        %v895 = vrot.slane %v884, 3
        %v896 = vrot.slane %v885, 3
        %v897 = vsel %vm894, %v895, %v896
        %v898 = vrot.slane %v886, 3
        %v899 = vsel %vm894, %v896, %v898
        %v900 = vrot.slane %v887, 3
        %v901 = vsel %vm894, %v898, %v900
        %v902 = vrot.slane %v888, 3
        %v903 = vsel %vm894, %v900, %v902
        %v904 = vrot.slane %v889, 3
        %v905 = vsel %vm894, %v902, %v904
        %v906 = vrot.slane %v890, 3
        %v907 = vsel %vm894, %v904, %v906
        %v908 = vrot.slane %v891, 3
        %v909 = vsel %vm894, %v906, %v908
        %v910 = vrot.slane %v892, 3
        %v911 = vsel %vm894, %v908, %v910
        %v912 = vrot.slane %v893, 3
        %v913 = vsel %vm894, %v910, %v912
        %v916 = vunpack.c.l.b16 %v844
        %v917 = vunpack.c.l.b16 %v845
        %v918 = vpack.c.b16 %v917, %v916
        %v921 = vsel %vm379, %v897, 0
        %v924 = vsel %vm379, %v899, 0
        %v927 = vsel %vm379, %v901, 0
        %v930 = vsel %vm379, %v903, 0
        %v933 = vsel %vm379, %v905, 0
        %v936 = vsel %vm379, %v907, 0
        %v939 = vsel %vm379, %v909, 0
        %v942 = vsel %vm379, %v911, 0
        %v945 = vsel %vm379, %v913, 0
        %947 = vmatprep.subr.bf16.mxu0 0
        %948 = vmatpush1.bf16.msra.mxu0 %v918
        %949 = vmatprep.subr.bf16.mxu0 0
        %950 = vmatpush1.bf16.msra.mxu0 0
        %951 = vmatprep.subr.bf16.mxu0 0
        %952 = vmatpush1.bf16.msra.mxu0 0
        %953 = vmatprep.subr.bf16.mxu0 0
        %954 = vmatpush1.bf16.msra.mxu0 0
        %955 = vmatprep.subr.bf16.mxu0 0
        %956 = vmatpush1.bf16.msra.mxu0 0
        %957 = vmatprep.subr.bf16.mxu0 0
        %958 = vmatpush1.bf16.msra.mxu0 0
        %959 = vmatprep.subr.bf16.mxu0 0
        %960 = vmatpush1.bf16.msra.mxu0 0
        %961 = vmatprep.subr.bf16.mxu0 0
        %962 = vmatpush1.bf16.msra.mxu0 0
        %963 = vmatprep.subr.bf16.mxu0 0
        %964 = vmatpush1.bf16.msra.mxu0 0
        %965 = vmatprep.subr.bf16.mxu0 0
        %966 = vmatpush1.bf16.msra.mxu0 0
        %967 = vmatprep.subr.bf16.mxu0 0
        %968 = vmatpush1.bf16.msra.mxu0 0
        %969 = vmatprep.subr.bf16.mxu0 0
        %970 = vmatpush1.bf16.msra.mxu0 0
        %971 = vmatprep.subr.bf16.mxu0 0
        %972 = vmatpush1.bf16.msra.mxu0 0
        %973 = vmatprep.subr.bf16.mxu0 0
        %974 = vmatpush1.bf16.msra.mxu0 0
        %975 = vmatprep.subr.bf16.mxu0 0
        %976 = vmatpush1.bf16.msra.mxu0 0
        %977 = vmatprep.subr.bf16.mxu0 0
        %978 = vmatpush1.bf16.msra.mxu0 0
        %979 = vmatprep.mubr.bf16.mxu0 0
        %980 = vmatmul.mubr.bf16.gmra.mrb[0].mxu0 %v921
        %v981 = vpop.f32.mrb[0].mxu0
        %v982 = vadd.f32 0.0, %v981
        %v983 = vpop.f32.mrb[0].mxu0
        %v984 = vpop.f32.mrb[0].mxu0
        %v985 = vadd.f32 0.0, %v984
        %v986 = vpop.f32.mrb[0].mxu0
        %987 = vmatprep.mubr.bf16.mxu0 0
        %988 = vmatmul.mubr.bf16.gmra.mrb[0].mxu0 %v924
        %v989 = vpop.f32.mrb[0].mxu0
        %v990 = vadd.f32 0.0, %v989
        %v991 = vpop.f32.mrb[0].mxu0
        %v992 = vpop.f32.mrb[0].mxu0
        %v993 = vadd.f32 0.0, %v992
        %v994 = vpop.f32.mrb[0].mxu0
        %995 = vmatprep.mubr.bf16.mxu0 0
        %996 = vmatmul.mubr.bf16.gmra.mrb[0].mxu0 %v927
        %v997 = vpop.f32.mrb[0].mxu0
        %v998 = vadd.f32 0.0, %v997
        %v999 = vpop.f32.mrb[0].mxu0
        %v1000 = vpop.f32.mrb[0].mxu0
        %v1001 = vadd.f32 0.0, %v1000
        %v1002 = vpop.f32.mrb[0].mxu0
        %1003 = vmatprep.mubr.bf16.mxu0 0
        %1004 = vmatmul.mubr.bf16.gmra.mrb[0].mxu0 %v930
        %v1005 = vpop.f32.mrb[0].mxu0
        %v1006 = vadd.f32 0.0, %v1005
        %v1007 = vpop.f32.mrb[0].mxu0
        %v1008 = vpop.f32.mrb[0].mxu0
        %v1009 = vadd.f32 0.0, %v1008
        %v1010 = vpop.f32.mrb[0].mxu0
        %1011 = vmatprep.mubr.bf16.mxu0 0
        %1012 = vmatmul.mubr.bf16.gmra.mrb[0].mxu0 %v933
        %v1013 = vpop.f32.mrb[0].mxu0
        %v1014 = vadd.f32 0.0, %v1013
        %v1015 = vpop.f32.mrb[0].mxu0
        %v1016 = vpop.f32.mrb[0].mxu0
        %v1017 = vadd.f32 0.0, %v1016
        %v1018 = vpop.f32.mrb[0].mxu0
        %1019 = vmatprep.mubr.bf16.mxu0 0
        %1020 = vmatmul.mubr.bf16.gmra.mrb[0].mxu0 %v936
        %v1021 = vpop.f32.mrb[0].mxu0
        %v1022 = vadd.f32 0.0, %v1021
        %v1023 = vpop.f32.mrb[0].mxu0
        %v1024 = vpop.f32.mrb[0].mxu0
        %v1025 = vadd.f32 0.0, %v1024
        %v1026 = vpop.f32.mrb[0].mxu0
        %1027 = vmatprep.mubr.bf16.mxu0 0
        %1028 = vmatmul.mubr.bf16.gmra.mrb[0].mxu0 %v939
        %v1029 = vpop.f32.mrb[0].mxu0
        %v1030 = vadd.f32 0.0, %v1029
        %v1031 = vpop.f32.mrb[0].mxu0
        %v1032 = vpop.f32.mrb[0].mxu0
        %v1033 = vadd.f32 0.0, %v1032
        %v1034 = vpop.f32.mrb[0].mxu0
        %1035 = vmatprep.mubr.bf16.mxu0 0
        %1036 = vmatmul.mubr.bf16.gmra.mrb[0].mxu0 %v942
        %v1037 = vpop.f32.mrb[0].mxu0
        %v1038 = vadd.f32 0.0, %v1037
        %v1039 = vpop.f32.mrb[0].mxu0
        %v1040 = vpop.f32.mrb[0].mxu0
        %v1041 = vadd.f32 0.0, %v1040
        %v1042 = vpop.f32.mrb[0].mxu0
        %1043 = vmatprep.mubr.bf16.mxu0 0
        %1044 = vmatmul.mubr.bf16.gmra.mrb[0].mxu0 %v945
        %v1045 = vpop.f32.mrb[0].mxu0
        %v1046 = vadd.f32 0.0, %v1045
        %v1047 = vpop.f32.mrb[0].mxu0
        %v1048 = vpop.f32.mrb[0].mxu0
        %v1049 = vadd.f32 0.0, %v1048
        %v1050 = vpop.f32.mrb[0].mxu0
        %1051 = vdwg.mxu0
        %v1052 = vadd.f32 %v806, %v982
        %v1053 = vadd.f32 %v807, %v985
        %v1054 = vadd.f32 %v808, %v990
        %v1055 = vadd.f32 %v809, %v993
        %v1056 = vadd.f32 %v810, %v998
        %v1057 = vadd.f32 %v811, %v1001
        %v1058 = vadd.f32 %v812, %v1006
        %v1059 = vadd.f32 %v813, %v1009
        %v1060 = vadd.f32 %v814, %v1014
        %v1061 = vadd.f32 %v815, %v1017
        %v1062 = vadd.f32 %v816, %v1022
        %v1063 = vadd.f32 %v817, %v1025
        %v1064 = vadd.f32 %v818, %v1030
        %v1065 = vadd.f32 %v819, %v1033
        %v1066 = vadd.f32 %v820, %v1038
        %v1067 = vadd.f32 %v821, %v1041
        %v1068 = vadd.f32 %v822, %v1046
        %v1069 = vadd.f32 %v823, %v1049
        %v1070 = vld [vmem:[%s222 + $0x4c] sm:$0xf]
        %s1071 = scalar_lea.vmem %s1, 32
        %v1072 = vld [vmem:[%s1071] sm:$0xf]
        %v1073 = vld [vmem:[%s1071 + $0x4] sm:$0xf]
        %v1075 = vunpack.c.l.b16 %v1070
        %v1076 = vpack.c.b16 %v1075, %v1075
        %vm1077 = vsmask.f32 4352
        %v1079 = vshrl.u32 %v884, 16
        %v1081 = vrot.slane %v1079, 3
        %v1082 = vshll.u32 %v884, 16
        %v1084 = vrot.slane %v1082, 4
        %v1085 = vor.u32 %v1081, %v1084
        %v1087 = vshrl.u32 %v885, 16
        %v1089 = vrot.slane %v1087, 3
        %v1090 = vshll.u32 %v885, 16
        %v1092 = vrot.slane %v1090, 4
        %v1093 = vor.u32 %v1089, %v1092
        %v1094 = vsel %vm1077, %v1085, %v1093
        %v1096 = vshrl.u32 %v886, 16
        %v1098 = vrot.slane %v1096, 3
        %v1099 = vshll.u32 %v886, 16
        %v1101 = vrot.slane %v1099, 4
        %v1102 = vor.u32 %v1098, %v1101
        %v1103 = vsel %vm1077, %v1093, %v1102
        %v1105 = vshrl.u32 %v887, 16
        %v1107 = vrot.slane %v1105, 3
        %v1108 = vshll.u32 %v887, 16
        %v1110 = vrot.slane %v1108, 4
        %v1111 = vor.u32 %v1107, %v1110
        %v1112 = vsel %vm1077, %v1102, %v1111
        %v1114 = vshrl.u32 %v888, 16
        %v1116 = vrot.slane %v1114, 3
        %v1117 = vshll.u32 %v888, 16
        %v1119 = vrot.slane %v1117, 4
        %v1120 = vor.u32 %v1116, %v1119
        %v1121 = vsel %vm1077, %v1111, %v1120
        %v1123 = vshrl.u32 %v889, 16
        %v1125 = vrot.slane %v1123, 3
        %v1126 = vshll.u32 %v889, 16
        %v1128 = vrot.slane %v1126, 4
        %v1129 = vor.u32 %v1125, %v1128
        %v1130 = vsel %vm1077, %v1120, %v1129
        %v1132 = vshrl.u32 %v890, 16
        %v1134 = vrot.slane %v1132, 3
        %v1135 = vshll.u32 %v890, 16
        %v1137 = vrot.slane %v1135, 4
        %v1138 = vor.u32 %v1134, %v1137
        %v1139 = vsel %vm1077, %v1129, %v1138
        %v1141 = vshrl.u32 %v891, 16
        %v1143 = vrot.slane %v1141, 3
        %v1144 = vshll.u32 %v891, 16
        %v1146 = vrot.slane %v1144, 4
        %v1147 = vor.u32 %v1143, %v1146
        %v1148 = vsel %vm1077, %v1138, %v1147
        %v1150 = vshrl.u32 %v892, 16
        %v1152 = vrot.slane %v1150, 3
        %v1153 = vshll.u32 %v892, 16
        %v1155 = vrot.slane %v1153, 4
        %v1156 = vor.u32 %v1152, %v1155
        %v1157 = vsel %vm1077, %v1147, %v1156
        %v1159 = vshrl.u32 %v1076, 16
        %v1161 = vrot.slane %v1159, 3
        %v1162 = vshll.u32 %v1076, 16
        %v1164 = vrot.slane %v1162, 4
        %v1165 = vor.u32 %v1161, %v1164
        %v1166 = vsel %vm1077, %v1156, %v1165
        %v1169 = vunpack.c.l.b16 %v1072
        %v1170 = vunpack.c.l.b16 %v1073
        %v1171 = vpack.c.b16 %v1170, %v1169
        %v1174 = vsel %vm379, %v1094, 0
        %v1177 = vsel %vm379, %v1103, 0
        %v1180 = vsel %vm379, %v1112, 0
        %v1183 = vsel %vm379, %v1121, 0
        %v1186 = vsel %vm379, %v1130, 0
        %v1189 = vsel %vm379, %v1139, 0
        %v1192 = vsel %vm379, %v1148, 0
        %v1195 = vsel %vm379, %v1157, 0
        %v1198 = vsel %vm379, %v1166, 0
        %1200 = vmatprep.subr.bf16.mxu0 0
        %1201 = vmatpush1.bf16.msra.mxu0 %v1171
        %1202 = vmatprep.subr.bf16.mxu0 0
        %1203 = vmatpush1.bf16.msra.mxu0 0
        %1204 = vmatprep.subr.bf16.mxu0 0
        %1205 = vmatpush1.bf16.msra.mxu0 0
        %1206 = vmatprep.subr.bf16.mxu0 0
        %1207 = vmatpush1.bf16.msra.mxu0 0
        %1208 = vmatprep.subr.bf16.mxu0 0
        %1209 = vmatpush1.bf16.msra.mxu0 0
        %1210 = vmatprep.subr.bf16.mxu0 0
        %1211 = vmatpush1.bf16.msra.mxu0 0
        %1212 = vmatprep.subr.bf16.mxu0 0
        %1213 = vmatpush1.bf16.msra.mxu0 0
        %1214 = vmatprep.subr.bf16.mxu0 0
        %1215 = vmatpush1.bf16.msra.mxu0 0
        %1216 = vmatprep.subr.bf16.mxu0 0
        %1217 = vmatpush1.bf16.msra.mxu0 0
        %1218 = vmatprep.subr.bf16.mxu0 0
        %1219 = vmatpush1.bf16.msra.mxu0 0
        %1220 = vmatprep.subr.bf16.mxu0 0
        %1221 = vmatpush1.bf16.msra.mxu0 0
        %1222 = vmatprep.subr.bf16.mxu0 0
        %1223 = vmatpush1.bf16.msra.mxu0 0
        %1224 = vmatprep.subr.bf16.mxu0 0
        %1225 = vmatpush1.bf16.msra.mxu0 0
        %1226 = vmatprep.subr.bf16.mxu0 0
        %1227 = vmatpush1.bf16.msra.mxu0 0
        %1228 = vmatprep.subr.bf16.mxu0 0
        %1229 = vmatpush1.bf16.msra.mxu0 0
        %1230 = vmatprep.subr.bf16.mxu0 0
        %1231 = vmatpush1.bf16.msra.mxu0 0
        %1232 = vmatprep.mubr.bf16.mxu0 0
        %1233 = vmatmul.mubr.bf16.gmra.mrb[0].mxu0 %v1174
        %v1234 = vpop.f32.mrb[0].mxu0
        %v1235 = vadd.f32 0.0, %v1234
        %v1236 = vpop.f32.mrb[0].mxu0
        %v1237 = vpop.f32.mrb[0].mxu0
        %v1238 = vadd.f32 0.0, %v1237
        %v1239 = vpop.f32.mrb[0].mxu0
        %1240 = vmatprep.mubr.bf16.mxu0 0
        %1241 = vmatmul.mubr.bf16.gmra.mrb[0].mxu0 %v1177
        %v1242 = vpop.f32.mrb[0].mxu0
        %v1243 = vadd.f32 0.0, %v1242
        %v1244 = vpop.f32.mrb[0].mxu0
        %v1245 = vpop.f32.mrb[0].mxu0
        %v1246 = vadd.f32 0.0, %v1245
        %v1247 = vpop.f32.mrb[0].mxu0
        %1248 = vmatprep.mubr.bf16.mxu0 0
        %1249 = vmatmul.mubr.bf16.gmra.mrb[0].mxu0 %v1180
        %v1250 = vpop.f32.mrb[0].mxu0
        %v1251 = vadd.f32 0.0, %v1250
        %v1252 = vpop.f32.mrb[0].mxu0
        %v1253 = vpop.f32.mrb[0].mxu0
        %v1254 = vadd.f32 0.0, %v1253
        %v1255 = vpop.f32.mrb[0].mxu0
        %1256 = vmatprep.mubr.bf16.mxu0 0
        %1257 = vmatmul.mubr.bf16.gmra.mrb[0].mxu0 %v1183
        %v1258 = vpop.f32.mrb[0].mxu0
        %v1259 = vadd.f32 0.0, %v1258
        %v1260 = vpop.f32.mrb[0].mxu0
        %v1261 = vpop.f32.mrb[0].mxu0
        %v1262 = vadd.f32 0.0, %v1261
        %v1263 = vpop.f32.mrb[0].mxu0
        %1264 = vmatprep.mubr.bf16.mxu0 0
        %1265 = vmatmul.mubr.bf16.gmra.mrb[0].mxu0 %v1186
        %v1266 = vpop.f32.mrb[0].mxu0
        %v1267 = vadd.f32 0.0, %v1266
        %v1268 = vpop.f32.mrb[0].mxu0
        %v1269 = vpop.f32.mrb[0].mxu0
        %v1270 = vadd.f32 0.0, %v1269
        %v1271 = vpop.f32.mrb[0].mxu0
        %1272 = vmatprep.mubr.bf16.mxu0 0
        %1273 = vmatmul.mubr.bf16.gmra.mrb[0].mxu0 %v1189
        %v1274 = vpop.f32.mrb[0].mxu0
        %v1275 = vadd.f32 0.0, %v1274
        %v1276 = vpop.f32.mrb[0].mxu0
        %v1277 = vpop.f32.mrb[0].mxu0
        %v1278 = vadd.f32 0.0, %v1277
        %v1279 = vpop.f32.mrb[0].mxu0
        %1280 = vmatprep.mubr.bf16.mxu0 0
        %1281 = vmatmul.mubr.bf16.gmra.mrb[0].mxu0 %v1192
        %v1282 = vpop.f32.mrb[0].mxu0
        %v1283 = vadd.f32 0.0, %v1282
        %v1284 = vpop.f32.mrb[0].mxu0
        %v1285 = vpop.f32.mrb[0].mxu0
        %v1286 = vadd.f32 0.0, %v1285
        %v1287 = vpop.f32.mrb[0].mxu0
        %1288 = vmatprep.mubr.bf16.mxu0 0
        %1289 = vmatmul.mubr.bf16.gmra.mrb[0].mxu0 %v1195
        %v1290 = vpop.f32.mrb[0].mxu0
        %v1291 = vadd.f32 0.0, %v1290
        %v1292 = vpop.f32.mrb[0].mxu0
        %v1293 = vpop.f32.mrb[0].mxu0
        %v1294 = vadd.f32 0.0, %v1293
        %v1295 = vpop.f32.mrb[0].mxu0
        %1296 = vmatprep.mubr.bf16.mxu0 0
        %1297 = vmatmul.mubr.bf16.gmra.mrb[0].mxu0 %v1198
        %v1298 = vpop.f32.mrb[0].mxu0
        %v1299 = vadd.f32 0.0, %v1298
        %v1300 = vpop.f32.mrb[0].mxu0
        %v1301 = vpop.f32.mrb[0].mxu0
        %v1302 = vadd.f32 0.0, %v1301
        %v1303 = vpop.f32.mrb[0].mxu0
        %1304 = vdwg.mxu0
        %v1305 = vadd.f32 %v1052, %v1235
        %v1306 = vadd.f32 %v1053, %v1238
        %v1307 = vadd.f32 %v1054, %v1243
        %v1308 = vadd.f32 %v1055, %v1246
        %v1309 = vadd.f32 %v1056, %v1251
        %v1310 = vadd.f32 %v1057, %v1254
        %v1311 = vadd.f32 %v1058, %v1259
        %v1312 = vadd.f32 %v1059, %v1262
        %v1313 = vadd.f32 %v1060, %v1267
        %v1314 = vadd.f32 %v1061, %v1270
        %v1315 = vadd.f32 %v1062, %v1275
        %v1316 = vadd.f32 %v1063, %v1278
        %v1317 = vadd.f32 %v1064, %v1283
        %v1318 = vadd.f32 %v1065, %v1286
        %v1319 = vadd.f32 %v1066, %v1291
        %v1320 = vadd.f32 %v1067, %v1294
        %v1321 = vadd.f32 %v1068, %v1299
        %v1322 = vadd.f32 %v1069, %v1302
        %s1323 = scalar_lea.vmem %s1, 40
        %v1324 = vld [vmem:[%s1323] sm:$0xf]
        %v1325 = vld [vmem:[%s1323 + $0x4] sm:$0xf]
        %v1326 = vpack.c.b16 %v867, %v866
        %v1327 = vpack.c.b16 %v869, %v868
        %v1328 = vpack.c.b16 %v871, %v870
        %v1329 = vpack.c.b16 %v873, %v872
        %v1330 = vpack.c.b16 %v875, %v874
        %v1331 = vpack.c.b16 %v877, %v876
        %v1332 = vpack.c.b16 %v879, %v878
        %v1333 = vpack.c.b16 %v881, %v880
        %v1334 = vpack.c.b16 %v1075, %v882
        %v1337 = vunpack.c.l.b16 %v1324
        %v1338 = vunpack.c.l.b16 %v1325
        %v1339 = vpack.c.b16 %v1338, %v1337
        %v1342 = vsel %vm379, %v1326, 0
        %v1345 = vsel %vm379, %v1327, 0
        %v1348 = vsel %vm379, %v1328, 0
        %v1351 = vsel %vm379, %v1329, 0
        %v1354 = vsel %vm379, %v1330, 0
        %v1357 = vsel %vm379, %v1331, 0
        %v1360 = vsel %vm379, %v1332, 0
        %v1363 = vsel %vm379, %v1333, 0
        %v1366 = vsel %vm379, %v1334, 0
        %1368 = vmatprep.subr.bf16.mxu0 0
        %1369 = vmatpush1.bf16.msra.mxu0 %v1339
        %1370 = vmatprep.subr.bf16.mxu0 0
        %1371 = vmatpush1.bf16.msra.mxu0 0
        %1372 = vmatprep.subr.bf16.mxu0 0
        %1373 = vmatpush1.bf16.msra.mxu0 0
        %1374 = vmatprep.subr.bf16.mxu0 0
        %1375 = vmatpush1.bf16.msra.mxu0 0
        %1376 = vmatprep.subr.bf16.mxu0 0
        %1377 = vmatpush1.bf16.msra.mxu0 0
        %1378 = vmatprep.subr.bf16.mxu0 0
        %1379 = vmatpush1.bf16.msra.mxu0 0
        %1380 = vmatprep.subr.bf16.mxu0 0
        %1381 = vmatpush1.bf16.msra.mxu0 0
        %1382 = vmatprep.subr.bf16.mxu0 0
        %1383 = vmatpush1.bf16.msra.mxu0 0
        %1384 = vmatprep.subr.bf16.mxu0 0
        %1385 = vmatpush1.bf16.msra.mxu0 0
        %1386 = vmatprep.subr.bf16.mxu0 0
        %1387 = vmatpush1.bf16.msra.mxu0 0
        %1388 = vmatprep.subr.bf16.mxu0 0
        %1389 = vmatpush1.bf16.msra.mxu0 0
        %1390 = vmatprep.subr.bf16.mxu0 0
        %1391 = vmatpush1.bf16.msra.mxu0 0
        %1392 = vmatprep.subr.bf16.mxu0 0
        %1393 = vmatpush1.bf16.msra.mxu0 0
        %1394 = vmatprep.subr.bf16.mxu0 0
        %1395 = vmatpush1.bf16.msra.mxu0 0
        %1396 = vmatprep.subr.bf16.mxu0 0
        %1397 = vmatpush1.bf16.msra.mxu0 0
        %1398 = vmatprep.subr.bf16.mxu0 0
        %1399 = vmatpush1.bf16.msra.mxu0 0
        %1400 = vmatprep.mubr.bf16.mxu0 0
        %1401 = vmatmul.mubr.bf16.gmra.mrb[0].mxu0 %v1342
        %v1402 = vpop.f32.mrb[0].mxu0
        %v1403 = vadd.f32 0.0, %v1402
        %v1404 = vpop.f32.mrb[0].mxu0
        %v1405 = vpop.f32.mrb[0].mxu0
        %v1406 = vadd.f32 0.0, %v1405
        %v1407 = vpop.f32.mrb[0].mxu0
        %1408 = vmatprep.mubr.bf16.mxu0 0
        %1409 = vmatmul.mubr.bf16.gmra.mrb[0].mxu0 %v1345
        %v1410 = vpop.f32.mrb[0].mxu0
        %v1411 = vadd.f32 0.0, %v1410
        %v1412 = vpop.f32.mrb[0].mxu0
        %v1413 = vpop.f32.mrb[0].mxu0
        %v1414 = vadd.f32 0.0, %v1413
        %v1415 = vpop.f32.mrb[0].mxu0
        %1416 = vmatprep.mubr.bf16.mxu0 0
        %1417 = vmatmul.mubr.bf16.gmra.mrb[0].mxu0 %v1348
        %v1418 = vpop.f32.mrb[0].mxu0
        %v1419 = vadd.f32 0.0, %v1418
        %v1420 = vpop.f32.mrb[0].mxu0
        %v1421 = vpop.f32.mrb[0].mxu0
        %v1422 = vadd.f32 0.0, %v1421
        %v1423 = vpop.f32.mrb[0].mxu0
        %1424 = vmatprep.mubr.bf16.mxu0 0
        %1425 = vmatmul.mubr.bf16.gmra.mrb[0].mxu0 %v1351
        %v1426 = vpop.f32.mrb[0].mxu0
        %v1427 = vadd.f32 0.0, %v1426
        %v1428 = vpop.f32.mrb[0].mxu0
        %v1429 = vpop.f32.mrb[0].mxu0
        %v1430 = vadd.f32 0.0, %v1429
        %v1431 = vpop.f32.mrb[0].mxu0
        %1432 = vmatprep.mubr.bf16.mxu0 0
        %1433 = vmatmul.mubr.bf16.gmra.mrb[0].mxu0 %v1354
        %v1434 = vpop.f32.mrb[0].mxu0
        %v1435 = vadd.f32 0.0, %v1434
        %v1436 = vpop.f32.mrb[0].mxu0
        %v1437 = vpop.f32.mrb[0].mxu0
        %v1438 = vadd.f32 0.0, %v1437
        %v1439 = vpop.f32.mrb[0].mxu0
        %1440 = vmatprep.mubr.bf16.mxu0 0
        %1441 = vmatmul.mubr.bf16.gmra.mrb[0].mxu0 %v1357
        %v1442 = vpop.f32.mrb[0].mxu0
        %v1443 = vadd.f32 0.0, %v1442
        %v1444 = vpop.f32.mrb[0].mxu0
        %v1445 = vpop.f32.mrb[0].mxu0
        %v1446 = vadd.f32 0.0, %v1445
        %v1447 = vpop.f32.mrb[0].mxu0
        %1448 = vmatprep.mubr.bf16.mxu0 0
        %1449 = vmatmul.mubr.bf16.gmra.mrb[0].mxu0 %v1360
        %v1450 = vpop.f32.mrb[0].mxu0
        %v1451 = vadd.f32 0.0, %v1450
        %v1452 = vpop.f32.mrb[0].mxu0
        %v1453 = vpop.f32.mrb[0].mxu0
        %v1454 = vadd.f32 0.0, %v1453
        %v1455 = vpop.f32.mrb[0].mxu0
        %1456 = vmatprep.mubr.bf16.mxu0 0
        %1457 = vmatmul.mubr.bf16.gmra.mrb[0].mxu0 %v1363
        %v1458 = vpop.f32.mrb[0].mxu0
        %v1459 = vadd.f32 0.0, %v1458
        %v1460 = vpop.f32.mrb[0].mxu0
        %v1461 = vpop.f32.mrb[0].mxu0
        %v1462 = vadd.f32 0.0, %v1461
        %v1463 = vpop.f32.mrb[0].mxu0
        %1464 = vmatprep.mubr.bf16.mxu0 0
        %1465 = vmatmul.mubr.bf16.gmra.mrb[0].mxu0 %v1366
        %v1466 = vpop.f32.mrb[0].mxu0
        %v1467 = vadd.f32 0.0, %v1466
        %v1468 = vpop.f32.mrb[0].mxu0
        %v1469 = vpop.f32.mrb[0].mxu0
        %v1470 = vadd.f32 0.0, %v1469
        %v1471 = vpop.f32.mrb[0].mxu0
        %1472 = vdwg.mxu0
        %v1473 = vadd.f32 %v1305, %v1403
        %v1474 = vadd.f32 %v1306, %v1406
        %v1475 = vadd.f32 %v1307, %v1411
        %v1476 = vadd.f32 %v1308, %v1414
        %v1477 = vadd.f32 %v1309, %v1419
        %v1478 = vadd.f32 %v1310, %v1422
        %v1479 = vadd.f32 %v1311, %v1427
        %v1480 = vadd.f32 %v1312, %v1430
        %v1481 = vadd.f32 %v1313, %v1435
        %v1482 = vadd.f32 %v1314, %v1438
        %v1483 = vadd.f32 %v1315, %v1443
        %v1484 = vadd.f32 %v1316, %v1446
        %v1485 = vadd.f32 %v1317, %v1451
        %v1486 = vadd.f32 %v1318, %v1454
        %v1487 = vadd.f32 %v1319, %v1459
        %v1488 = vadd.f32 %v1320, %v1462
        %v1489 = vadd.f32 %v1321, %v1467
        %v1490 = vadd.f32 %v1322, %v1470
        %v1491 = vld [vmem:[%s222 + $0xc] sm:$0xc]
        %v1492 = vld [vmem:[%s222 + $0x10] sm:$0xf]
        %v1493 = vld [vmem:[%s222 + $0x14] sm:$0xf]
        %v1494 = vld [vmem:[%s222 + $0x18] sm:$0xf]
        %v1495 = vld [vmem:[%s222 + $0x1c] sm:$0xf]
        %v1496 = vld [vmem:[%s222 + $0x20] sm:$0xf]
        %v1497 = vld [vmem:[%s222 + $0x24] sm:$0xf]
        %v1498 = vld [vmem:[%s222 + $0x28] sm:$0xf]
        %v1499 = vld [vmem:[%s222 + $0x2c] sm:$0xf]
        %v1500 = vld [vmem:[%s222 + $0x30] sm:$0xf]
        %v1501 = vld [vmem:[%s222 + $0x34] sm:$0xf]
        %v1502 = vld [vmem:[%s222 + $0x38] sm:$0xf]
        %v1503 = vld [vmem:[%s222 + $0x3c] sm:$0xf]
        %v1504 = vld [vmem:[%s222 + $0x40] sm:$0xf]
        %v1505 = vld [vmem:[%s222 + $0x44] sm:$0xf]
        %v1506 = vld [vmem:[%s222 + $0x48] sm:$0xf]
        %v1507 = vld [vmem:[%s222 + $0x4c] sm:$0xf]
        %v1508 = vld [vmem:[%s222 + $0x50] sm:$0xf]
        %v1509 = vld [vmem:[%s222 + $0x54] sm:$0x3]
        %s1510 = scalar_lea.vmem %s1, 48
        %v1511 = vld [vmem:[%s1510] sm:$0xf]
        %v1512 = vld [vmem:[%s1510 + $0x4] sm:$0xf]
        %v1532 = vunpack.c.l.b16 %v1491
        %v1533 = vunpack.c.l.b16 %v1492
        %v1534 = vunpack.c.l.b16 %v1493
        %v1535 = vunpack.c.l.b16 %v1494
        %v1536 = vunpack.c.l.b16 %v1495
        %v1537 = vunpack.c.l.b16 %v1496
        %v1538 = vunpack.c.l.b16 %v1497
        %v1539 = vunpack.c.l.b16 %v1498
        %v1540 = vunpack.c.l.b16 %v1499
        %v1541 = vunpack.c.l.b16 %v1500
        %v1542 = vunpack.c.l.b16 %v1501
        %v1543 = vunpack.c.l.b16 %v1502
        %v1544 = vunpack.c.l.b16 %v1503
        %v1545 = vunpack.c.l.b16 %v1504
        %v1546 = vunpack.c.l.b16 %v1505
        %v1547 = vunpack.c.l.b16 %v1506
        %v1548 = vunpack.c.l.b16 %v1507
        %v1549 = vunpack.c.l.b16 %v1508
        %v1550 = vunpack.c.l.b16 %v1509
        %v1551 = vpack.c.b16 %v1533, %v1532
        %v1552 = vpack.c.b16 %v1535, %v1534
        %v1553 = vpack.c.b16 %v1537, %v1536
        %v1554 = vpack.c.b16 %v1539, %v1538
        %v1555 = vpack.c.b16 %v1541, %v1540
        %v1556 = vpack.c.b16 %v1543, %v1542
        %v1557 = vpack.c.b16 %v1545, %v1544
        %v1558 = vpack.c.b16 %v1547, %v1546
        %v1559 = vpack.c.b16 %v1549, %v1548
        %v1560 = vpack.c.b16 %v1550, %v1550
        %vm1561 = vcmask 1045504
        %v1562 = vrot.slane %v1551, 2
        %v1563 = vrot.slane %v1552, 2
        %v1564 = vsel %vm1561, %v1562, %v1563
        %v1565 = vrot.slane %v1553, 2
        %v1566 = vsel %vm1561, %v1563, %v1565
        %v1567 = vrot.slane %v1554, 2
        %v1568 = vsel %vm1561, %v1565, %v1567
        %v1569 = vrot.slane %v1555, 2
        %v1570 = vsel %vm1561, %v1567, %v1569
        %v1571 = vrot.slane %v1556, 2
        %v1572 = vsel %vm1561, %v1569, %v1571
        %v1573 = vrot.slane %v1557, 2
        %v1574 = vsel %vm1561, %v1571, %v1573
        %v1575 = vrot.slane %v1558, 2
        %v1576 = vsel %vm1561, %v1573, %v1575
        %v1577 = vrot.slane %v1559, 2
        %v1578 = vsel %vm1561, %v1575, %v1577
        %v1579 = vrot.slane %v1560, 2
        %v1580 = vsel %vm1561, %v1577, %v1579
        %v1583 = vunpack.c.l.b16 %v1511
        %v1584 = vunpack.c.l.b16 %v1512
        %v1585 = vpack.c.b16 %v1584, %v1583
        %v1588 = vsel %vm379, %v1564, 0
        %v1591 = vsel %vm379, %v1566, 0
        %v1594 = vsel %vm379, %v1568, 0
        %v1597 = vsel %vm379, %v1570, 0
        %v1600 = vsel %vm379, %v1572, 0
        %v1603 = vsel %vm379, %v1574, 0
        %v1606 = vsel %vm379, %v1576, 0
        %v1609 = vsel %vm379, %v1578, 0
        %v1612 = vsel %vm379, %v1580, 0
        %1614 = vmatprep.subr.bf16.mxu0 0
        %1615 = vmatpush1.bf16.msra.mxu0 %v1585
        %1616 = vmatprep.subr.bf16.mxu0 0
        %1617 = vmatpush1.bf16.msra.mxu0 0
        %1618 = vmatprep.subr.bf16.mxu0 0
        %1619 = vmatpush1.bf16.msra.mxu0 0
        %1620 = vmatprep.subr.bf16.mxu0 0
        %1621 = vmatpush1.bf16.msra.mxu0 0
        %1622 = vmatprep.subr.bf16.mxu0 0
        %1623 = vmatpush1.bf16.msra.mxu0 0
        %1624 = vmatprep.subr.bf16.mxu0 0
        %1625 = vmatpush1.bf16.msra.mxu0 0
        %1626 = vmatprep.subr.bf16.mxu0 0
        %1627 = vmatpush1.bf16.msra.mxu0 0
        %1628 = vmatprep.subr.bf16.mxu0 0
        %1629 = vmatpush1.bf16.msra.mxu0 0
        %1630 = vmatprep.subr.bf16.mxu0 0
        %1631 = vmatpush1.bf16.msra.mxu0 0
        %1632 = vmatprep.subr.bf16.mxu0 0
        %1633 = vmatpush1.bf16.msra.mxu0 0
        %1634 = vmatprep.subr.bf16.mxu0 0
        %1635 = vmatpush1.bf16.msra.mxu0 0
        %1636 = vmatprep.subr.bf16.mxu0 0
        %1637 = vmatpush1.bf16.msra.mxu0 0
        %1638 = vmatprep.subr.bf16.mxu0 0
        %1639 = vmatpush1.bf16.msra.mxu0 0
        %1640 = vmatprep.subr.bf16.mxu0 0
        %1641 = vmatpush1.bf16.msra.mxu0 0
        %1642 = vmatprep.subr.bf16.mxu0 0
        %1643 = vmatpush1.bf16.msra.mxu0 0
        %1644 = vmatprep.subr.bf16.mxu0 0
        %1645 = vmatpush1.bf16.msra.mxu0 0
        %1646 = vmatprep.mubr.bf16.mxu0 0
        %1647 = vmatmul.mubr.bf16.gmra.mrb[0].mxu0 %v1588
        %v1648 = vpop.f32.mrb[0].mxu0
        %v1649 = vadd.f32 0.0, %v1648
        %v1650 = vpop.f32.mrb[0].mxu0
        %v1651 = vpop.f32.mrb[0].mxu0
        %v1652 = vadd.f32 0.0, %v1651
        %v1653 = vpop.f32.mrb[0].mxu0
        %1654 = vmatprep.mubr.bf16.mxu0 0
        %1655 = vmatmul.mubr.bf16.gmra.mrb[0].mxu0 %v1591
        %v1656 = vpop.f32.mrb[0].mxu0
        %v1657 = vadd.f32 0.0, %v1656
        %v1658 = vpop.f32.mrb[0].mxu0
        %v1659 = vpop.f32.mrb[0].mxu0
        %v1660 = vadd.f32 0.0, %v1659
        %v1661 = vpop.f32.mrb[0].mxu0
        %1662 = vmatprep.mubr.bf16.mxu0 0
        %1663 = vmatmul.mubr.bf16.gmra.mrb[0].mxu0 %v1594
        %v1664 = vpop.f32.mrb[0].mxu0
        %v1665 = vadd.f32 0.0, %v1664
        %v1666 = vpop.f32.mrb[0].mxu0
        %v1667 = vpop.f32.mrb[0].mxu0
        %v1668 = vadd.f32 0.0, %v1667
        %v1669 = vpop.f32.mrb[0].mxu0
        %1670 = vmatprep.mubr.bf16.mxu0 0
        %1671 = vmatmul.mubr.bf16.gmra.mrb[0].mxu0 %v1597
        %v1672 = vpop.f32.mrb[0].mxu0
        %v1673 = vadd.f32 0.0, %v1672
        %v1674 = vpop.f32.mrb[0].mxu0
        %v1675 = vpop.f32.mrb[0].mxu0
        %v1676 = vadd.f32 0.0, %v1675
        %v1677 = vpop.f32.mrb[0].mxu0
        %1678 = vmatprep.mubr.bf16.mxu0 0
        %1679 = vmatmul.mubr.bf16.gmra.mrb[0].mxu0 %v1600
        %v1680 = vpop.f32.mrb[0].mxu0
        %v1681 = vadd.f32 0.0, %v1680
        %v1682 = vpop.f32.mrb[0].mxu0
        %v1683 = vpop.f32.mrb[0].mxu0
        %v1684 = vadd.f32 0.0, %v1683
        %v1685 = vpop.f32.mrb[0].mxu0
        %1686 = vmatprep.mubr.bf16.mxu0 0
        %1687 = vmatmul.mubr.bf16.gmra.mrb[0].mxu0 %v1603
        %v1688 = vpop.f32.mrb[0].mxu0
        %v1689 = vadd.f32 0.0, %v1688
        %v1690 = vpop.f32.mrb[0].mxu0
        %v1691 = vpop.f32.mrb[0].mxu0
        %v1692 = vadd.f32 0.0, %v1691
        %v1693 = vpop.f32.mrb[0].mxu0
        %1694 = vmatprep.mubr.bf16.mxu0 0
        %1695 = vmatmul.mubr.bf16.gmra.mrb[0].mxu0 %v1606
        %v1696 = vpop.f32.mrb[0].mxu0
        %v1697 = vadd.f32 0.0, %v1696
        %v1698 = vpop.f32.mrb[0].mxu0
        %v1699 = vpop.f32.mrb[0].mxu0
        %v1700 = vadd.f32 0.0, %v1699
        %v1701 = vpop.f32.mrb[0].mxu0
        %1702 = vmatprep.mubr.bf16.mxu0 0
        %1703 = vmatmul.mubr.bf16.gmra.mrb[0].mxu0 %v1609
        %v1704 = vpop.f32.mrb[0].mxu0
        %v1705 = vadd.f32 0.0, %v1704
        %v1706 = vpop.f32.mrb[0].mxu0
        %v1707 = vpop.f32.mrb[0].mxu0
        %v1708 = vadd.f32 0.0, %v1707
        %v1709 = vpop.f32.mrb[0].mxu0
        %1710 = vmatprep.mubr.bf16.mxu0 0
        %1711 = vmatmul.mubr.bf16.gmra.mrb[0].mxu0 %v1612
        %v1712 = vpop.f32.mrb[0].mxu0
        %v1713 = vadd.f32 0.0, %v1712
        %v1714 = vpop.f32.mrb[0].mxu0
        %v1715 = vpop.f32.mrb[0].mxu0
        %v1716 = vadd.f32 0.0, %v1715
        %v1717 = vpop.f32.mrb[0].mxu0
        %1718 = vdwg.mxu0
        %v1719 = vadd.f32 %v1473, %v1649
        %v1720 = vadd.f32 %v1474, %v1652
        %v1721 = vadd.f32 %v1475, %v1657
        %v1722 = vadd.f32 %v1476, %v1660
        %v1723 = vadd.f32 %v1477, %v1665
        %v1724 = vadd.f32 %v1478, %v1668
        %v1725 = vadd.f32 %v1479, %v1673
        %v1726 = vadd.f32 %v1480, %v1676
        %v1727 = vadd.f32 %v1481, %v1681
        %v1728 = vadd.f32 %v1482, %v1684
        %v1729 = vadd.f32 %v1483, %v1689
        %v1730 = vadd.f32 %v1484, %v1692
        %v1731 = vadd.f32 %v1485, %v1697
        %v1732 = vadd.f32 %v1486, %v1700
        %v1733 = vadd.f32 %v1487, %v1705
        %v1734 = vadd.f32 %v1488, %v1708
        %v1735 = vadd.f32 %v1489, %v1713
        %v1736 = vadd.f32 %v1490, %v1716
        %v1737 = vld [vmem:[%s222 + $0x54] sm:$0x7]
        %s1738 = scalar_lea.vmem %s1, 56
        %v1739 = vld [vmem:[%s1738] sm:$0xf]
        %v1740 = vld [vmem:[%s1738 + $0x4] sm:$0xf]
        %v1742 = vunpack.c.l.b16 %v1737
        %v1743 = vpack.c.b16 %v1742, %v1742
        %vm1744 = vsmask.f32 5376
        %v1746 = vshrl.u32 %v1551, 16
        %v1748 = vrot.slane %v1746, 2
        %v1749 = vshll.u32 %v1551, 16
        %v1751 = vrot.slane %v1749, 3
        %v1752 = vor.u32 %v1748, %v1751
        %v1754 = vshrl.u32 %v1552, 16
        %v1756 = vrot.slane %v1754, 2
        %v1757 = vshll.u32 %v1552, 16
        %v1759 = vrot.slane %v1757, 3
        %v1760 = vor.u32 %v1756, %v1759
        %v1761 = vsel %vm1744, %v1752, %v1760
        %v1763 = vshrl.u32 %v1553, 16
        %v1765 = vrot.slane %v1763, 2
        %v1766 = vshll.u32 %v1553, 16
        %v1768 = vrot.slane %v1766, 3
        %v1769 = vor.u32 %v1765, %v1768
        %v1770 = vsel %vm1744, %v1760, %v1769
        %v1772 = vshrl.u32 %v1554, 16
        %v1774 = vrot.slane %v1772, 2
        %v1775 = vshll.u32 %v1554, 16
        %v1777 = vrot.slane %v1775, 3
        %v1778 = vor.u32 %v1774, %v1777
        %v1779 = vsel %vm1744, %v1769, %v1778
        %v1781 = vshrl.u32 %v1555, 16
        %v1783 = vrot.slane %v1781, 2
        %v1784 = vshll.u32 %v1555, 16
        %v1786 = vrot.slane %v1784, 3
        %v1787 = vor.u32 %v1783, %v1786
        %v1788 = vsel %vm1744, %v1778, %v1787
        %v1790 = vshrl.u32 %v1556, 16
        %v1792 = vrot.slane %v1790, 2
        %v1793 = vshll.u32 %v1556, 16
        %v1795 = vrot.slane %v1793, 3
        %v1796 = vor.u32 %v1792, %v1795
        %v1797 = vsel %vm1744, %v1787, %v1796
        %v1799 = vshrl.u32 %v1557, 16
        %v1801 = vrot.slane %v1799, 2
        %v1802 = vshll.u32 %v1557, 16
        %v1804 = vrot.slane %v1802, 3
        %v1805 = vor.u32 %v1801, %v1804
        %v1806 = vsel %vm1744, %v1796, %v1805
        %v1808 = vshrl.u32 %v1558, 16
        %v1810 = vrot.slane %v1808, 2
        %v1811 = vshll.u32 %v1558, 16
        %v1813 = vrot.slane %v1811, 3
        %v1814 = vor.u32 %v1810, %v1813
        %v1815 = vsel %vm1744, %v1805, %v1814
        %v1817 = vshrl.u32 %v1559, 16
        %v1819 = vrot.slane %v1817, 2
        %v1820 = vshll.u32 %v1559, 16
        %v1822 = vrot.slane %v1820, 3
        %v1823 = vor.u32 %v1819, %v1822
        %v1824 = vsel %vm1744, %v1814, %v1823
        %v1826 = vshrl.u32 %v1743, 16
        %v1828 = vrot.slane %v1826, 2
        %v1829 = vshll.u32 %v1743, 16
        %v1831 = vrot.slane %v1829, 3
        %v1832 = vor.u32 %v1828, %v1831
        %v1833 = vsel %vm1744, %v1823, %v1832
        %v1836 = vunpack.c.l.b16 %v1739
        %v1837 = vunpack.c.l.b16 %v1740
        %v1838 = vpack.c.b16 %v1837, %v1836
        %v1841 = vsel %vm379, %v1761, 0
        %v1844 = vsel %vm379, %v1770, 0
        %v1847 = vsel %vm379, %v1779, 0
        %v1850 = vsel %vm379, %v1788, 0
        %v1853 = vsel %vm379, %v1797, 0
        %v1856 = vsel %vm379, %v1806, 0
        %v1859 = vsel %vm379, %v1815, 0
        %v1862 = vsel %vm379, %v1824, 0
        %v1865 = vsel %vm379, %v1833, 0
        %1867 = vmatprep.subr.bf16.mxu0 0
        %1868 = vmatpush1.bf16.msra.mxu0 %v1838
        %1869 = vmatprep.subr.bf16.mxu0 0
        %1870 = vmatpush1.bf16.msra.mxu0 0
        %1871 = vmatprep.subr.bf16.mxu0 0
        %1872 = vmatpush1.bf16.msra.mxu0 0
        %1873 = vmatprep.subr.bf16.mxu0 0
        %1874 = vmatpush1.bf16.msra.mxu0 0
        %1875 = vmatprep.subr.bf16.mxu0 0
        %1876 = vmatpush1.bf16.msra.mxu0 0
        %1877 = vmatprep.subr.bf16.mxu0 0
        %1878 = vmatpush1.bf16.msra.mxu0 0
        %1879 = vmatprep.subr.bf16.mxu0 0
        %1880 = vmatpush1.bf16.msra.mxu0 0
        %1881 = vmatprep.subr.bf16.mxu0 0
        %1882 = vmatpush1.bf16.msra.mxu0 0
        %1883 = vmatprep.subr.bf16.mxu0 0
        %1884 = vmatpush1.bf16.msra.mxu0 0
        %1885 = vmatprep.subr.bf16.mxu0 0
        %1886 = vmatpush1.bf16.msra.mxu0 0
        %1887 = vmatprep.subr.bf16.mxu0 0
        %1888 = vmatpush1.bf16.msra.mxu0 0
        %1889 = vmatprep.subr.bf16.mxu0 0
        %1890 = vmatpush1.bf16.msra.mxu0 0
        %1891 = vmatprep.subr.bf16.mxu0 0
        %1892 = vmatpush1.bf16.msra.mxu0 0
        %1893 = vmatprep.subr.bf16.mxu0 0
        %1894 = vmatpush1.bf16.msra.mxu0 0
        %1895 = vmatprep.subr.bf16.mxu0 0
        %1896 = vmatpush1.bf16.msra.mxu0 0
        %1897 = vmatprep.subr.bf16.mxu0 0
        %1898 = vmatpush1.bf16.msra.mxu0 0
        %1899 = vmatprep.mubr.bf16.mxu0 0
        %1900 = vmatmul.mubr.bf16.gmra.mrb[0].mxu0 %v1841
        %v1901 = vpop.f32.mrb[0].mxu0
        %v1902 = vadd.f32 0.0, %v1901
        %v1903 = vpop.f32.mrb[0].mxu0
        %v1904 = vpop.f32.mrb[0].mxu0
        %v1905 = vadd.f32 0.0, %v1904
        %v1906 = vpop.f32.mrb[0].mxu0
        %1907 = vmatprep.mubr.bf16.mxu0 0
        %1908 = vmatmul.mubr.bf16.gmra.mrb[0].mxu0 %v1844
        %v1909 = vpop.f32.mrb[0].mxu0
        %v1910 = vadd.f32 0.0, %v1909
        %v1911 = vpop.f32.mrb[0].mxu0
        %v1912 = vpop.f32.mrb[0].mxu0
        %v1913 = vadd.f32 0.0, %v1912
        %v1914 = vpop.f32.mrb[0].mxu0
        %1915 = vmatprep.mubr.bf16.mxu0 0
        %1916 = vmatmul.mubr.bf16.gmra.mrb[0].mxu0 %v1847
        %v1917 = vpop.f32.mrb[0].mxu0
        %v1918 = vadd.f32 0.0, %v1917
        %v1919 = vpop.f32.mrb[0].mxu0
        %v1920 = vpop.f32.mrb[0].mxu0
        %v1921 = vadd.f32 0.0, %v1920
        %v1922 = vpop.f32.mrb[0].mxu0
        %1923 = vmatprep.mubr.bf16.mxu0 0
        %1924 = vmatmul.mubr.bf16.gmra.mrb[0].mxu0 %v1850
        %v1925 = vpop.f32.mrb[0].mxu0
        %v1926 = vadd.f32 0.0, %v1925
        %v1927 = vpop.f32.mrb[0].mxu0
        %v1928 = vpop.f32.mrb[0].mxu0
        %v1929 = vadd.f32 0.0, %v1928
        %v1930 = vpop.f32.mrb[0].mxu0
        %1931 = vmatprep.mubr.bf16.mxu0 0
        %1932 = vmatmul.mubr.bf16.gmra.mrb[0].mxu0 %v1853
        %v1933 = vpop.f32.mrb[0].mxu0
        %v1934 = vadd.f32 0.0, %v1933
        %v1935 = vpop.f32.mrb[0].mxu0
        %v1936 = vpop.f32.mrb[0].mxu0
        %v1937 = vadd.f32 0.0, %v1936
        %v1938 = vpop.f32.mrb[0].mxu0
        %1939 = vmatprep.mubr.bf16.mxu0 0
        %1940 = vmatmul.mubr.bf16.gmra.mrb[0].mxu0 %v1856
        %v1941 = vpop.f32.mrb[0].mxu0
        %v1942 = vadd.f32 0.0, %v1941
        %v1943 = vpop.f32.mrb[0].mxu0
        %v1944 = vpop.f32.mrb[0].mxu0
        %v1945 = vadd.f32 0.0, %v1944
        %v1946 = vpop.f32.mrb[0].mxu0
        %1947 = vmatprep.mubr.bf16.mxu0 0
        %1948 = vmatmul.mubr.bf16.gmra.mrb[0].mxu0 %v1859
        %v1949 = vpop.f32.mrb[0].mxu0
        %v1950 = vadd.f32 0.0, %v1949
        %v1951 = vpop.f32.mrb[0].mxu0
        %v1952 = vpop.f32.mrb[0].mxu0
        %v1953 = vadd.f32 0.0, %v1952
        %v1954 = vpop.f32.mrb[0].mxu0
        %1955 = vmatprep.mubr.bf16.mxu0 0
        %1956 = vmatmul.mubr.bf16.gmra.mrb[0].mxu0 %v1862
        %v1957 = vpop.f32.mrb[0].mxu0
        %v1958 = vadd.f32 0.0, %v1957
        %v1959 = vpop.f32.mrb[0].mxu0
        %v1960 = vpop.f32.mrb[0].mxu0
        %v1961 = vadd.f32 0.0, %v1960
        %v1962 = vpop.f32.mrb[0].mxu0
        %1963 = vmatprep.mubr.bf16.mxu0 0
        %1964 = vmatmul.mubr.bf16.gmra.mrb[0].mxu0 %v1865
        %v1965 = vpop.f32.mrb[0].mxu0
        %v1966 = vadd.f32 0.0, %v1965
        %v1967 = vpop.f32.mrb[0].mxu0
        %v1968 = vpop.f32.mrb[0].mxu0
        %v1969 = vadd.f32 0.0, %v1968
        %v1970 = vpop.f32.mrb[0].mxu0
        %1971 = vdwg.mxu0
        %v1972 = vadd.f32 %v1719, %v1902
        %v1973 = vadd.f32 %v1720, %v1905
        %v1974 = vadd.f32 %v1721, %v1910
        %v1975 = vadd.f32 %v1722, %v1913
        %v1976 = vadd.f32 %v1723, %v1918
        %v1977 = vadd.f32 %v1724, %v1921
        %v1978 = vadd.f32 %v1725, %v1926
        %v1979 = vadd.f32 %v1726, %v1929
        %v1980 = vadd.f32 %v1727, %v1934
        %v1981 = vadd.f32 %v1728, %v1937
        %v1982 = vadd.f32 %v1729, %v1942
        %v1983 = vadd.f32 %v1730, %v1945
        %v1984 = vadd.f32 %v1731, %v1950
        %v1985 = vadd.f32 %v1732, %v1953
        %v1986 = vadd.f32 %v1733, %v1958
        %v1987 = vadd.f32 %v1734, %v1961
        %v1988 = vadd.f32 %v1735, %v1966
        %v1989 = vadd.f32 %v1736, %v1969
        %v1990 = vld [vmem:[%s222 + $0xc] sm:$0x8]
        %s1991 = scalar_lea.vmem %s1, 64
        %v1992 = vld [vmem:[%s1991] sm:$0xf]
        %v1993 = vld [vmem:[%s1991 + $0x4] sm:$0xf]
        %v1995 = vunpack.c.l.b16 %v1990
        %v1996 = vpack.c.b16 %v1533, %v1995
        %v1997 = vrot.slane %v1996, 3
        %v1998 = vrot.slane %v1552, 3
        %v1999 = vsel %vm894, %v1997, %v1998
        %v2000 = vrot.slane %v1553, 3
        %v2001 = vsel %vm894, %v1998, %v2000
        %v2002 = vrot.slane %v1554, 3
        %v2003 = vsel %vm894, %v2000, %v2002
        %v2004 = vrot.slane %v1555, 3
        %v2005 = vsel %vm894, %v2002, %v2004
        %v2006 = vrot.slane %v1556, 3
        %v2007 = vsel %vm894, %v2004, %v2006
        %v2008 = vrot.slane %v1557, 3
        %v2009 = vsel %vm894, %v2006, %v2008
        %v2010 = vrot.slane %v1558, 3
        %v2011 = vsel %vm894, %v2008, %v2010
        %v2012 = vrot.slane %v1559, 3
        %v2013 = vsel %vm894, %v2010, %v2012
        %v2014 = vrot.slane %v1743, 3
        %v2015 = vsel %vm894, %v2012, %v2014
        %v2018 = vunpack.c.l.b16 %v1992
        %v2019 = vunpack.c.l.b16 %v1993
        %v2020 = vpack.c.b16 %v2019, %v2018
        %v2023 = vsel %vm379, %v1999, 0
        %v2026 = vsel %vm379, %v2001, 0
        %v2029 = vsel %vm379, %v2003, 0
        %v2032 = vsel %vm379, %v2005, 0
        %v2035 = vsel %vm379, %v2007, 0
        %v2038 = vsel %vm379, %v2009, 0
        %v2041 = vsel %vm379, %v2011, 0
        %v2044 = vsel %vm379, %v2013, 0
        %v2047 = vsel %vm379, %v2015, 0
        %2049 = vmatprep.subr.bf16.mxu0 0
        %2050 = vmatpush1.bf16.msra.mxu0 %v2020
        %2051 = vmatprep.subr.bf16.mxu0 0
        %2052 = vmatpush1.bf16.msra.mxu0 0
        %2053 = vmatprep.subr.bf16.mxu0 0
        %2054 = vmatpush1.bf16.msra.mxu0 0
        %2055 = vmatprep.subr.bf16.mxu0 0
        %2056 = vmatpush1.bf16.msra.mxu0 0
        %2057 = vmatprep.subr.bf16.mxu0 0
        %2058 = vmatpush1.bf16.msra.mxu0 0
        %2059 = vmatprep.subr.bf16.mxu0 0
        %2060 = vmatpush1.bf16.msra.mxu0 0
        %2061 = vmatprep.subr.bf16.mxu0 0
        %2062 = vmatpush1.bf16.msra.mxu0 0
        %2063 = vmatprep.subr.bf16.mxu0 0
        %2064 = vmatpush1.bf16.msra.mxu0 0
        %2065 = vmatprep.subr.bf16.mxu0 0
        %2066 = vmatpush1.bf16.msra.mxu0 0
        %2067 = vmatprep.subr.bf16.mxu0 0
        %2068 = vmatpush1.bf16.msra.mxu0 0
        %2069 = vmatprep.subr.bf16.mxu0 0
        %2070 = vmatpush1.bf16.msra.mxu0 0
        %2071 = vmatprep.subr.bf16.mxu0 0
        %2072 = vmatpush1.bf16.msra.mxu0 0
        %2073 = vmatprep.subr.bf16.mxu0 0
        %2074 = vmatpush1.bf16.msra.mxu0 0
        %2075 = vmatprep.subr.bf16.mxu0 0
        %2076 = vmatpush1.bf16.msra.mxu0 0
        %2077 = vmatprep.subr.bf16.mxu0 0
        %2078 = vmatpush1.bf16.msra.mxu0 0
        %2079 = vmatprep.subr.bf16.mxu0 0
        %2080 = vmatpush1.bf16.msra.mxu0 0
        %2081 = vmatprep.mubr.bf16.mxu0 0
        %2082 = vmatmul.mubr.bf16.gmra.mrb[0].mxu0 %v2023
        %v2083 = vpop.f32.mrb[0].mxu0
        %v2084 = vadd.f32 0.0, %v2083
        %v2085 = vpop.f32.mrb[0].mxu0
        %v2086 = vpop.f32.mrb[0].mxu0
        %v2087 = vadd.f32 0.0, %v2086
        %v2088 = vpop.f32.mrb[0].mxu0
        %2089 = vmatprep.mubr.bf16.mxu0 0
        %2090 = vmatmul.mubr.bf16.gmra.mrb[0].mxu0 %v2026
        %v2091 = vpop.f32.mrb[0].mxu0
        %v2092 = vadd.f32 0.0, %v2091
        %v2093 = vpop.f32.mrb[0].mxu0
        %v2094 = vpop.f32.mrb[0].mxu0
        %v2095 = vadd.f32 0.0, %v2094
        %v2096 = vpop.f32.mrb[0].mxu0
        %2097 = vmatprep.mubr.bf16.mxu0 0
        %2098 = vmatmul.mubr.bf16.gmra.mrb[0].mxu0 %v2029
        %v2099 = vpop.f32.mrb[0].mxu0
        %v2100 = vadd.f32 0.0, %v2099
        %v2101 = vpop.f32.mrb[0].mxu0
        %v2102 = vpop.f32.mrb[0].mxu0
        %v2103 = vadd.f32 0.0, %v2102
        %v2104 = vpop.f32.mrb[0].mxu0
        %2105 = vmatprep.mubr.bf16.mxu0 0
        %2106 = vmatmul.mubr.bf16.gmra.mrb[0].mxu0 %v2032
        %v2107 = vpop.f32.mrb[0].mxu0
        %v2108 = vadd.f32 0.0, %v2107
        %v2109 = vpop.f32.mrb[0].mxu0
        %v2110 = vpop.f32.mrb[0].mxu0
        %v2111 = vadd.f32 0.0, %v2110
        %v2112 = vpop.f32.mrb[0].mxu0
        %2113 = vmatprep.mubr.bf16.mxu0 0
        %2114 = vmatmul.mubr.bf16.gmra.mrb[0].mxu0 %v2035
        %v2115 = vpop.f32.mrb[0].mxu0
        %v2116 = vadd.f32 0.0, %v2115
        %v2117 = vpop.f32.mrb[0].mxu0
        %v2118 = vpop.f32.mrb[0].mxu0
        %v2119 = vadd.f32 0.0, %v2118
        %v2120 = vpop.f32.mrb[0].mxu0
        %2121 = vmatprep.mubr.bf16.mxu0 0
        %2122 = vmatmul.mubr.bf16.gmra.mrb[0].mxu0 %v2038
        %v2123 = vpop.f32.mrb[0].mxu0
        %v2124 = vadd.f32 0.0, %v2123
        %v2125 = vpop.f32.mrb[0].mxu0
        %v2126 = vpop.f32.mrb[0].mxu0
        %v2127 = vadd.f32 0.0, %v2126
        %v2128 = vpop.f32.mrb[0].mxu0
        %2129 = vmatprep.mubr.bf16.mxu0 0
        %2130 = vmatmul.mubr.bf16.gmra.mrb[0].mxu0 %v2041
        %v2131 = vpop.f32.mrb[0].mxu0
        %v2132 = vadd.f32 0.0, %v2131
        %v2133 = vpop.f32.mrb[0].mxu0
        %v2134 = vpop.f32.mrb[0].mxu0
        %v2135 = vadd.f32 0.0, %v2134
        %v2136 = vpop.f32.mrb[0].mxu0
        %2137 = vmatprep.mubr.bf16.mxu0 0
        %2138 = vmatmul.mubr.bf16.gmra.mrb[0].mxu0 %v2044
        %v2139 = vpop.f32.mrb[0].mxu0
        %v2140 = vadd.f32 0.0, %v2139
        %v2141 = vpop.f32.mrb[0].mxu0
        %v2142 = vpop.f32.mrb[0].mxu0
        %v2143 = vadd.f32 0.0, %v2142
        %v2144 = vpop.f32.mrb[0].mxu0
        %2145 = vmatprep.mubr.bf16.mxu0 0
        %2146 = vmatmul.mubr.bf16.gmra.mrb[0].mxu0 %v2047
        %v2147 = vpop.f32.mrb[0].mxu0
        %v2148 = vadd.f32 0.0, %v2147
        %v2149 = vpop.f32.mrb[0].mxu0
        %v2150 = vpop.f32.mrb[0].mxu0
        %v2151 = vadd.f32 0.0, %v2150
        %v2152 = vpop.f32.mrb[0].mxu0
        %2153 = vdwg.mxu0
        %v2154 = vadd.f32 %v1972, %v2084
        %v2155 = vadd.f32 %v1973, %v2087
        %v2156 = vadd.f32 %v1974, %v2092
        %v2157 = vadd.f32 %v1975, %v2095
        %v2158 = vadd.f32 %v1976, %v2100
        %v2159 = vadd.f32 %v1977, %v2103
        %v2160 = vadd.f32 %v1978, %v2108
        %v2161 = vadd.f32 %v1979, %v2111
        %v2162 = vadd.f32 %v1980, %v2116
        %v2163 = vadd.f32 %v1981, %v2119
        %v2164 = vadd.f32 %v1982, %v2124
        %v2165 = vadd.f32 %v1983, %v2127
        %v2166 = vadd.f32 %v1984, %v2132
        %v2167 = vadd.f32 %v1985, %v2135
        %v2168 = vadd.f32 %v1986, %v2140
        %v2169 = vadd.f32 %v1987, %v2143
        %v2170 = vadd.f32 %v1988, %v2148
        %v2171 = vadd.f32 %v1989, %v2151
        %v2172 = vld [vmem:[%s2] sm:$0x1]
        %v2174 = vlaneseq
        %v2175 = vshrl.u32 %v2174, 7
        %v2176 = vsub.s32 0, %v2175
        %v2177 = vrot.slane %v2172, %v2176
        %v2179 = vadd.f32 %v2154, %v2177
        %v2180 = vadd.f32 %v2155, %v2177
        %v2181 = vadd.f32 %v2156, %v2177
        %v2182 = vadd.f32 %v2157, %v2177
        %v2183 = vadd.f32 %v2158, %v2177
        %v2184 = vadd.f32 %v2159, %v2177
        %v2185 = vadd.f32 %v2160, %v2177
        %v2186 = vadd.f32 %v2161, %v2177
        %v2187 = vadd.f32 %v2162, %v2177
        %v2188 = vadd.f32 %v2163, %v2177
        %v2189 = vadd.f32 %v2164, %v2177
        %v2190 = vadd.f32 %v2165, %v2177
        %v2191 = vadd.f32 %v2166, %v2177
        %v2192 = vadd.f32 %v2167, %v2177
        %v2193 = vadd.f32 %v2168, %v2177
        %v2194 = vadd.f32 %v2169, %v2177
        %v2195 = vadd.f32 %v2170, %v2177
        %v2196 = vadd.f32 %v2171, %v2177
        %v2197 = vmax.f32 %v2179, 0.0
        %v2198 = vmax.f32 %v2180, 0.0
        %v2199 = vmax.f32 %v2181, 0.0
        %v2200 = vmax.f32 %v2182, 0.0
        %v2201 = vmax.f32 %v2183, 0.0
        %v2202 = vmax.f32 %v2184, 0.0
        %v2203 = vmax.f32 %v2185, 0.0
        %v2204 = vmax.f32 %v2186, 0.0
        %v2205 = vmax.f32 %v2187, 0.0
        %v2206 = vmax.f32 %v2188, 0.0
        %v2207 = vmax.f32 %v2189, 0.0
        %v2208 = vmax.f32 %v2190, 0.0
        %v2209 = vmax.f32 %v2191, 0.0
        %v2210 = vmax.f32 %v2192, 0.0
        %v2211 = vmax.f32 %v2193, 0.0
        %v2212 = vmax.f32 %v2194, 0.0
        %v2213 = vmax.f32 %v2195, 0.0
        %v2214 = vmax.f32 %v2196, 0.0
        %v2215 = vpack.c.bf16 %v2198, %v2197
        %v2216 = vpack.c.bf16 %v2200, %v2199
        %v2217 = vpack.c.bf16 %v2202, %v2201
        %v2218 = vpack.c.bf16 %v2204, %v2203
        %v2219 = vpack.c.bf16 %v2206, %v2205
        %v2220 = vpack.c.bf16 %v2208, %v2207
        %v2221 = vpack.c.bf16 %v2210, %v2209
        %v2222 = vpack.c.bf16 %v2212, %v2211
        %v2223 = vpack.c.bf16 %v2214, %v2213
        %v2224 = vld [vmem:[%s3] sm:$0xf]
        %v2225 = vld [vmem:[%s3 + $0x4] sm:$0xf]
        %v2226 = vld [vmem:[%s3 + $0x8] sm:$0xf]
        %v2227 = vld [vmem:[%s3 + $0xc] sm:$0xf]
        %v2228 = vld [vmem:[%s4] sm:$0x1]
        %v2230 = vlaneseq
        %v2231 = vshrl.u32 %v2230, 7
        %v2232 = vsub.s32 0, %v2231
        %v2233 = vrot.slane %v2228, %v2232
        %v2239 = vunpack.c.l.b16 %v2224
        %v2240 = vunpack.c.l.b16 %v2225
        %v2241 = vunpack.c.l.b16 %v2226
        %v2242 = vunpack.c.l.b16 %v2227
        %v2243 = vpack.c.b16 %v2240, %v2239
        %v2244 = vpack.c.b16 %v2242, %v2241
        %vm2247 = vcmask 261120
        %v2249 = vsel %vm2247, %v2215, 0
        %v2252 = vsel %vm2247, %v2216, 0
        %v2255 = vsel %vm2247, %v2217, 0
        %v2258 = vsel %vm2247, %v2218, 0
        %v2261 = vsel %vm2247, %v2219, 0
        %v2264 = vsel %vm2247, %v2220, 0
        %v2267 = vsel %vm2247, %v2221, 0
        %v2270 = vsel %vm2247, %v2222, 0
        %v2273 = vsel %vm2247, %v2223, 0
        %2275 = vmatprep.subr.bf16.mxu0 0
        %2276 = vmatpush1.bf16.msra.mxu0 %v2243
        %2277 = vmatprep.subr.bf16.mxu0 0
        %2278 = vmatpush1.bf16.msra.mxu0 %v2244
        %2279 = vmatprep.subr.bf16.mxu0 0
        %2280 = vmatpush1.bf16.msra.mxu0 0
        %2281 = vmatprep.subr.bf16.mxu0 0
        %2282 = vmatpush1.bf16.msra.mxu0 0
        %2283 = vmatprep.subr.bf16.mxu0 0
        %2284 = vmatpush1.bf16.msra.mxu0 0
        %2285 = vmatprep.subr.bf16.mxu0 0
        %2286 = vmatpush1.bf16.msra.mxu0 0
        %2287 = vmatprep.subr.bf16.mxu0 0
        %2288 = vmatpush1.bf16.msra.mxu0 0
        %2289 = vmatprep.subr.bf16.mxu0 0
        %2290 = vmatpush1.bf16.msra.mxu0 0
        %2291 = vmatprep.subr.bf16.mxu0 0
        %2292 = vmatpush1.bf16.msra.mxu0 0
        %2293 = vmatprep.subr.bf16.mxu0 0
        %2294 = vmatpush1.bf16.msra.mxu0 0
        %2295 = vmatprep.subr.bf16.mxu0 0
        %2296 = vmatpush1.bf16.msra.mxu0 0
        %2297 = vmatprep.subr.bf16.mxu0 0
        %2298 = vmatpush1.bf16.msra.mxu0 0
        %2299 = vmatprep.subr.bf16.mxu0 0
        %2300 = vmatpush1.bf16.msra.mxu0 0
        %2301 = vmatprep.subr.bf16.mxu0 0
        %2302 = vmatpush1.bf16.msra.mxu0 0
        %2303 = vmatprep.subr.bf16.mxu0 0
        %2304 = vmatpush1.bf16.msra.mxu0 0
        %2305 = vmatprep.subr.bf16.mxu0 0
        %2306 = vmatpush1.bf16.msra.mxu0 0
        %2307 = vmatprep.mubr.bf16.mxu0 0
        %2308 = vmatmul.mubr.bf16.gmra.mrb[0].mxu0 %v2249
        %v2309 = vpop.f32.mrb[0].mxu0
        %v2310 = vadd.f32 %v2233, %v2309
        %v2311 = vpop.f32.mrb[0].mxu0
        %v2312 = vpop.f32.mrb[0].mxu0
        %v2313 = vadd.f32 %v2233, %v2312
        %v2314 = vpop.f32.mrb[0].mxu0
        %2315 = vmatprep.mubr.bf16.mxu0 0
        %2316 = vmatmul.mubr.bf16.gmra.mrb[0].mxu0 %v2252
        %v2317 = vpop.f32.mrb[0].mxu0
        %v2318 = vadd.f32 %v2233, %v2317
        %v2319 = vpop.f32.mrb[0].mxu0
        %v2320 = vpop.f32.mrb[0].mxu0
        %v2321 = vadd.f32 %v2233, %v2320
        %v2322 = vpop.f32.mrb[0].mxu0
        %2323 = vmatprep.mubr.bf16.mxu0 0
        %2324 = vmatmul.mubr.bf16.gmra.mrb[0].mxu0 %v2255
        %v2325 = vpop.f32.mrb[0].mxu0
        %v2326 = vadd.f32 %v2233, %v2325
        %v2327 = vpop.f32.mrb[0].mxu0
        %v2328 = vpop.f32.mrb[0].mxu0
        %v2329 = vadd.f32 %v2233, %v2328
        %v2330 = vpop.f32.mrb[0].mxu0
        %2331 = vmatprep.mubr.bf16.mxu0 0
        %2332 = vmatmul.mubr.bf16.gmra.mrb[0].mxu0 %v2258
        %v2333 = vpop.f32.mrb[0].mxu0
        %v2334 = vadd.f32 %v2233, %v2333
        %v2335 = vpop.f32.mrb[0].mxu0
        %v2336 = vpop.f32.mrb[0].mxu0
        %v2337 = vadd.f32 %v2233, %v2336
        %v2338 = vpop.f32.mrb[0].mxu0
        %2339 = vmatprep.mubr.bf16.mxu0 0
        %2340 = vmatmul.mubr.bf16.gmra.mrb[0].mxu0 %v2261
        %v2341 = vpop.f32.mrb[0].mxu0
        %v2342 = vadd.f32 %v2233, %v2341
        %v2343 = vpop.f32.mrb[0].mxu0
        %v2344 = vpop.f32.mrb[0].mxu0
        %v2345 = vadd.f32 %v2233, %v2344
        %v2346 = vpop.f32.mrb[0].mxu0
        %2347 = vmatprep.mubr.bf16.mxu0 0
        %2348 = vmatmul.mubr.bf16.gmra.mrb[0].mxu0 %v2264
        %v2349 = vpop.f32.mrb[0].mxu0
        %v2350 = vadd.f32 %v2233, %v2349
        %v2351 = vpop.f32.mrb[0].mxu0
        %v2352 = vpop.f32.mrb[0].mxu0
        %v2353 = vadd.f32 %v2233, %v2352
        %v2354 = vpop.f32.mrb[0].mxu0
        %2355 = vmatprep.mubr.bf16.mxu0 0
        %2356 = vmatmul.mubr.bf16.gmra.mrb[0].mxu0 %v2267
        %v2357 = vpop.f32.mrb[0].mxu0
        %v2358 = vadd.f32 %v2233, %v2357
        %v2359 = vpop.f32.mrb[0].mxu0
        %v2360 = vpop.f32.mrb[0].mxu0
        %v2361 = vadd.f32 %v2233, %v2360
        %v2362 = vpop.f32.mrb[0].mxu0
        %2363 = vmatprep.mubr.bf16.mxu0 0
        %2364 = vmatmul.mubr.bf16.gmra.mrb[0].mxu0 %v2270
        %v2365 = vpop.f32.mrb[0].mxu0
        %v2366 = vadd.f32 %v2233, %v2365
        %v2367 = vpop.f32.mrb[0].mxu0
        %v2368 = vpop.f32.mrb[0].mxu0
        %v2369 = vadd.f32 %v2233, %v2368
        %v2370 = vpop.f32.mrb[0].mxu0
        %2371 = vmatprep.mubr.bf16.mxu0 0
        %2372 = vmatmul.mubr.bf16.gmra.mrb[0].mxu0 %v2273
        %v2373 = vpop.f32.mrb[0].mxu0
        %v2374 = vadd.f32 %v2233, %v2373
        %v2375 = vpop.f32.mrb[0].mxu0
        %v2376 = vpop.f32.mrb[0].mxu0
        %v2377 = vadd.f32 %v2233, %v2376
        %v2378 = vpop.f32.mrb[0].mxu0
        %2379 = vdwg.mxu0
        %v2380 = vsub.f32 0.0, %v2310
        %v2381 = vsub.f32 0.0, %v2313
        %v2382 = vsub.f32 0.0, %v2318
        %v2383 = vsub.f32 0.0, %v2321
        %v2384 = vsub.f32 0.0, %v2326
        %v2385 = vsub.f32 0.0, %v2329
        %v2386 = vsub.f32 0.0, %v2334
        %v2387 = vsub.f32 0.0, %v2337
        %v2388 = vsub.f32 0.0, %v2342
        %v2389 = vsub.f32 0.0, %v2345
        %v2390 = vsub.f32 0.0, %v2350
        %v2391 = vsub.f32 0.0, %v2353
        %v2392 = vsub.f32 0.0, %v2358
        %v2393 = vsub.f32 0.0, %v2361
        %v2394 = vsub.f32 0.0, %v2366
        %v2395 = vsub.f32 0.0, %v2369
        %v2396 = vsub.f32 0.0, %v2374
        %v2397 = vsub.f32 0.0, %v2377
        %v2398 = vmul.f32 %v2380, 1.442695
        %v2399 = vpow.pop %v2398
        %v2400 = vmul.f32 %v2381, 1.442695
        %v2401 = vpow.pop %v2400
        %v2402 = vmul.f32 %v2382, 1.442695
        %v2403 = vpow.pop %v2402
        %v2404 = vmul.f32 %v2383, 1.442695
        %v2405 = vpow.pop %v2404
        %v2406 = vmul.f32 %v2384, 1.442695
        %v2407 = vpow.pop %v2406
        %v2408 = vmul.f32 %v2385, 1.442695
        %v2409 = vpow.pop %v2408
        %v2410 = vmul.f32 %v2386, 1.442695
        %v2411 = vpow.pop %v2410
        %v2412 = vmul.f32 %v2387, 1.442695
        %v2413 = vpow.pop %v2412
        %v2414 = vmul.f32 %v2388, 1.442695
        %v2415 = vpow.pop %v2414
        %v2416 = vmul.f32 %v2389, 1.442695
        %v2417 = vpow.pop %v2416
        %v2418 = vmul.f32 %v2390, 1.442695
        %v2419 = vpow.pop %v2418
        %v2420 = vmul.f32 %v2391, 1.442695
        %v2421 = vpow.pop %v2420
        %v2422 = vmul.f32 %v2392, 1.442695
        %v2423 = vpow.pop %v2422
        %v2424 = vmul.f32 %v2393, 1.442695
        %v2425 = vpow.pop %v2424
        %v2426 = vmul.f32 %v2394, 1.442695
        %v2427 = vpow.pop %v2426
        %v2428 = vmul.f32 %v2395, 1.442695
        %v2429 = vpow.pop %v2428
        %v2430 = vmul.f32 %v2396, 1.442695
        %v2431 = vpow.pop %v2430
        %v2432 = vmul.f32 %v2397, 1.442695
        %v2433 = vpow.pop %v2432
        %v2434 = vadd.f32 %v2399, 1.0
        %v2435 = vadd.f32 %v2401, 1.0
        %v2436 = vadd.f32 %v2403, 1.0
        %v2437 = vadd.f32 %v2405, 1.0
        %v2438 = vadd.f32 %v2407, 1.0
        %v2439 = vadd.f32 %v2409, 1.0
        %v2440 = vadd.f32 %v2411, 1.0
        %v2441 = vadd.f32 %v2413, 1.0
        %v2442 = vadd.f32 %v2415, 1.0
        %v2443 = vadd.f32 %v2417, 1.0
        %v2444 = vadd.f32 %v2419, 1.0
        %v2445 = vadd.f32 %v2421, 1.0
        %v2446 = vadd.f32 %v2423, 1.0
        %v2447 = vadd.f32 %v2425, 1.0
        %v2448 = vadd.f32 %v2427, 1.0
        %v2449 = vadd.f32 %v2429, 1.0
        %v2450 = vadd.f32 %v2431, 1.0
        %v2451 = vadd.f32 %v2433, 1.0
        %v2452 = vrcp.pop %v2434
        %v2453 = vrcp.pop %v2435
        %v2454 = vrcp.pop %v2436
        %v2455 = vrcp.pop %v2437
        %v2456 = vrcp.pop %v2438
        %v2457 = vrcp.pop %v2439
        %v2458 = vrcp.pop %v2440
        %v2459 = vrcp.pop %v2441
        %v2460 = vrcp.pop %v2442
        %v2461 = vrcp.pop %v2443
        %v2462 = vrcp.pop %v2444
        %v2463 = vrcp.pop %v2445
        %v2464 = vrcp.pop %v2446
        %v2465 = vrcp.pop %v2447
        %v2466 = vrcp.pop %v2448
        %v2467 = vrcp.pop %v2449
        %v2468 = vrcp.pop %v2450
        %v2469 = vrcp.pop %v2451
        %v2470 = vlaneseq
        %v2471 = vand.u32 %v2470, 127
        %vm2472 = vcmp.lt.s32.totalorder %v2471, 18
        %v2473 = vsel %vm2472, %v2452, %v2310
        %v2474 = vsel %vm2472, %v2453, %v2313
        %v2475 = vsel %vm2472, %v2454, %v2318
        %v2476 = vsel %vm2472, %v2455, %v2321
        %v2477 = vsel %vm2472, %v2456, %v2326
        %v2478 = vsel %vm2472, %v2457, %v2329
        %v2479 = vsel %vm2472, %v2458, %v2334
        %v2480 = vsel %vm2472, %v2459, %v2337
        %v2481 = vsel %vm2472, %v2460, %v2342
        %v2482 = vsel %vm2472, %v2461, %v2345
        %v2483 = vsel %vm2472, %v2462, %v2350
        %v2484 = vsel %vm2472, %v2463, %v2353
        %v2485 = vsel %vm2472, %v2464, %v2358
        %v2486 = vsel %vm2472, %v2465, %v2361
        %v2487 = vsel %vm2472, %v2466, %v2366
        %v2488 = vsel %vm2472, %v2467, %v2369
        %v2489 = vsel %vm2472, %v2468, %v2374
        %v2490 = vsel %vm2472, %v2469, %v2377
        %2491 = vst [vmem:[%s217] sm:$0xff] %v2473
        %2492 = vst [vmem:[%s217 + $0x8] sm:$0xff] %v2474
        %2493 = vst [vmem:[%s217 + $0x10] sm:$0xff] %v2475
        %2494 = vst [vmem:[%s217 + $0x18] sm:$0xff] %v2476
        %2495 = vst [vmem:[%s217 + $0x20] sm:$0xff] %v2477
        %2496 = vst [vmem:[%s217 + $0x28] sm:$0xff] %v2478
        %2497 = vst [vmem:[%s217 + $0x30] sm:$0xff] %v2479
        %2498 = vst [vmem:[%s217 + $0x38] sm:$0xff] %v2480
        %2499 = vst [vmem:[%s217 + $0x40] sm:$0xff] %v2481
        %2500 = vst [vmem:[%s217 + $0x48] sm:$0xff] %v2482
        %2501 = vst [vmem:[%s217 + $0x50] sm:$0xff] %v2483
        %2502 = vst [vmem:[%s217 + $0x58] sm:$0xff] %v2484
        %2503 = vst [vmem:[%s217 + $0x60] sm:$0xff] %v2485
        %2504 = vst [vmem:[%s217 + $0x68] sm:$0xff] %v2486
        %2505 = vst [vmem:[%s217 + $0x70] sm:$0xff] %v2487
        %2506 = vst [vmem:[%s217 + $0x78] sm:$0xff] %v2488
        %2507 = vst [vmem:[%s217 + $0x80] sm:$0xff] %v2489
        %2508 = vst [vmem:[%s217 + $0x88] sm:$0xff] %v2490
        %s2509 = sand.u32 %s137, 1
        %s2510 = scalar_lea.sflag [#allocation3], %s2509
        %s2511 = sand.u32 %s137, 1
        %s2512 = smul.addr %s2511, 144
        %s2513 = scalar_lea.vmem [#allocation2], %s2512
        // Predicated region
        $region41: #{tpu_custom_call.1} parent=39 // pred_check
          %p2514 = pneg %p147
        $region42: #{tpu_custom_call.1} parent=39 // pred_check_branch
          %2516 = sbr.rel (%p2514) target = $region44
        $region43: #{tpu_custom_call.1} parent=39 // pred_region
          %s2518 = ssub.s32 2304, 2304
          %2519 = vsyncadd %s2510, %s2518
          %s2520 = smul.addr %s19, 18
          %s2521 = smul.addr %s2520, 128
          %s2522 = scalar_lea.hbm %s5, %s2521
          %s2523 = sshll.u32 %s2513, 4
          %s2524 = int_to_ptr.vmem [resolvable:$true] %s2523
          %2529 = dma.vmem_to_hbm [thread:$0]  %s2524, 2304, %s2522, %s2510, 128, 128, 8
        $region44: #{tpu_custom_call.1} parent=39 // pred_fallthru
          _
      $region40: #{tpu_custom_call.1} parent=5 // pred_fallthru
        _
      %p2530 = scmp.le.s32.totalorder 2, %s14
      // Predicated region
      $region45: #{tpu_custom_call.1} parent=5 // pred_check
        %p2531 = pneg %p2530
      $region46: #{tpu_custom_call.1} parent=5 // pred_check_branch
        %2533 = sbr.rel (%p2531) target = $region48
      $region47: #{tpu_custom_call.1} parent=5 // pred_region
        %s2534 = ssub.s32 %s14, 2
        // Predicated region
        $region49: #{tpu_custom_call.1} parent=47 // pred_check
          %p2535 = pneg %p153
        $region50: #{tpu_custom_call.1} parent=47 // pred_check_branch
          %2537 = sbr.rel (%p2535) target = $region52
        $region51: #{tpu_custom_call.1} parent=47 // pred_region
          %s2538 = sand.u32 %s138, 1
          %s2539 = scalar_lea.sflag [#allocation3], %s2538
          %s2540 = sand.u32 %s138, 1
          %s2541 = smul.addr %s2540, 144
          %s2542 = scalar_lea.vmem [#allocation2], %s2541
          %2543 = dma.done %s2539, 2304
        $region52: #{tpu_custom_call.1} parent=47 // pred_fallthru
          _
      $region48: #{tpu_custom_call.1} parent=5 // pred_fallthru
        _
    $region6: #{tpu_custom_call.1} parent=1 // loop_footer
      %s18 = sadd.s32 1, %s14
    $region7: #{tpu_custom_call.1} parent=1 // loop_footer_branch
      %13 = sbr.rel target = $region3
    $region8: #{tpu_custom_call.1} parent=1 // loop_exit
      _
    %2544 = vsyncpa [#allocation3], 1
    %s2545 = scalar_lea.sflag [#allocation3], 1
    %2546 = vsyncpa %s2545, 1

// kernel: tpu_custom_call.1
$region0: #{tpu_custom_call.1}
  #allocation0 [shape = 'u32[]', space=smem, size = 0x4, offset = 0x4, fixed_abs, tag = 'smem constant byte address 0x4 - core index']
  #allocation1 [shape = 'u32[144,128]{1,0:T(1,128)}', space=vmem, size = 0x12000, scoped, tag = 'internal scratch']
  %s0 = inlined_call_operand.vmem [shape: bf16[2,176,16], index: 0, kind: input, shape index: {}]
  %s1 = inlined_call_operand.vmem [shape: bf16[9,16,32], index: 1, kind: input, shape index: {}]
  %s2 = inlined_call_operand.vmem [shape: f32[1,32], index: 2, kind: input, shape index: {}]
  %s3 = inlined_call_operand.vmem [shape: bf16[32,128], index: 3, kind: input, shape index: {}]
  %s4 = inlined_call_operand.vmem [shape: f32[1,128], index: 4, kind: input, shape index: {}]
  %s5 = inlined_call_operand.hbm [shape: f32[2,144,128], index: 5, kind: output, shape index: {}]
  %s6 = sld [smem:[#allocation0]]
  $region53: #{tpu_custom_call.1} parent=0
    _
  %s8 = ssub.s32 1, %s6
  %s9 = scalar_select 0, %s8, %s6
  $region1: #{tpu_custom_call.1} parent=0
    #allocation2 [shape = 'u8[147456]{0}', space=vmem, size = 0x24000, scoped, tag = 'output window, operand 0']
    #allocation3 [shape = 's32[2]{0}', space=sflag, size = 0x8, scoped, tag = 'scoped memory for tpu_custom_call.1']
    %10 = vsyncpa [#allocation3], 0
    %s11 = scalar_lea.sflag [#allocation3], 1
    %12 = vsyncpa %s11, 0
    loop: start=0, step=1, limit=4
    $region2: #{tpu_custom_call.1} parent=1 // loop_pre_header
      _
    $region3: #{tpu_custom_call.1} parent=1 // loop_header
      %s14 = sphi 0, %s18
      %p15 = scmp.ge.s32.totalorder %s14, 4
      %s24 = sphi 0, %s26
      %s27 = sphi 0, %s24
      %s28 = sphi 0, %s27
      %s44 = sphi 0, %s28
      %s48 = sphi 0, %s48
      %s50 = sphi 0, %s48
      %s51 = sphi 0, %s50
      %s65 = sphi 0, %s51
      %s69 = sphi 0, %s69
      %s71 = sphi 0, %s69
      %s72 = sphi 0, %s71
      %s86 = sphi 0, %s72
      %s90 = sphi 0, %s90
      %s92 = sphi 0, %s90
      %s93 = sphi 0, %s92
      %s107 = sphi 0, %s93
      %s111 = sphi 0, %s111
      %s113 = sphi 0, %s111
      %s114 = sphi 0, %s113
      %s128 = sphi 0, %s114
      %s134 = sphi 0, %s136
      %s137 = sphi 0, %s134
      %s138 = sphi 0, %s137
      %s154 = sphi 0, %s138
    $region4: #{tpu_custom_call.1} parent=1 // loop_header_branch
      %17 = sbr.rel (%p15) target = $region8
    $region5: #{tpu_custom_call.1} parent=1 // loop_body
      %s19 = ssub.s32 %s14, 1
      %s20 = ssub.s32 %s14, 2
      %s21 = sadd.s32 %s14, 1
      %s22 = ssub.s32 %s14, %s21
      %p23 = scmp.eq.s32.totalorder %s22, 0
      %s25 = sadd.s32 %s24, 1
      %s26 = scalar_select %p23, %s24, %s25
      %p29 = pneg %p23
      %p30 = scmp.eq.s32.totalorder %s14, 1
      %p31 = por %p29, %p30
      %p32 = scmp.ne.s32.totalorder %s24, %s27
      %p33 = scmp.eq.s32.totalorder %s14, 0
      %p34 = por %p32, %p33
      %p35 = scmp.ne.s32.totalorder %s24, %s27
      %p36 = scmp.eq.s32.totalorder %s19, 1
      %p37 = por %p35, %p36
      %p38 = scmp.ne.s32.totalorder %s27, %s28
      %p39 = scmp.eq.s32.totalorder %s19, 0
      %p40 = por %p38, %p39
      %p41 = scmp.ne.s32.totalorder %s27, %s28
      %p42 = scmp.eq.s32.totalorder %s20, 1
      %p43 = por %p41, %p42
      %p45 = scmp.ne.s32.totalorder %s28, %s44
      %p46 = scmp.eq.s32.totalorder %s20, 0
      %p47 = por %p45, %p46
      %s49 = sadd.s32 %s48, 1
      %p52 = scmp.eq.s32.totalorder %s14, 1
      %p53 = scmp.ne.s32.totalorder %s48, %s50
      %p54 = scmp.eq.s32.totalorder %s14, 0
      %p55 = por %p53, %p54
      %p56 = scmp.ne.s32.totalorder %s48, %s50
      %p57 = scmp.eq.s32.totalorder %s19, 1
      %p58 = por %p56, %p57
      %p59 = scmp.ne.s32.totalorder %s50, %s51
      %p60 = scmp.eq.s32.totalorder %s19, 0
      %p61 = por %p59, %p60
      %p62 = scmp.ne.s32.totalorder %s50, %s51
      %p63 = scmp.eq.s32.totalorder %s20, 1
      %p64 = por %p62, %p63
      %p66 = scmp.ne.s32.totalorder %s51, %s65
      %p67 = scmp.eq.s32.totalorder %s20, 0
      %p68 = por %p66, %p67
      %s70 = sadd.s32 %s69, 1
      %p73 = scmp.eq.s32.totalorder %s14, 1
      %p74 = scmp.ne.s32.totalorder %s69, %s71
      %p75 = scmp.eq.s32.totalorder %s14, 0
      %p76 = por %p74, %p75
      %p77 = scmp.ne.s32.totalorder %s69, %s71
      %p78 = scmp.eq.s32.totalorder %s19, 1
      %p79 = por %p77, %p78
      %p80 = scmp.ne.s32.totalorder %s71, %s72
      %p81 = scmp.eq.s32.totalorder %s19, 0
      %p82 = por %p80, %p81
      %p83 = scmp.ne.s32.totalorder %s71, %s72
      %p84 = scmp.eq.s32.totalorder %s20, 1
      %p85 = por %p83, %p84
      %p87 = scmp.ne.s32.totalorder %s72, %s86
      %p88 = scmp.eq.s32.totalorder %s20, 0
      %p89 = por %p87, %p88
      %s91 = sadd.s32 %s90, 1
      %p94 = scmp.eq.s32.totalorder %s14, 1
      %p95 = scmp.ne.s32.totalorder %s90, %s92
      %p96 = scmp.eq.s32.totalorder %s14, 0
      %p97 = por %p95, %p96
      %p98 = scmp.ne.s32.totalorder %s90, %s92
      %p99 = scmp.eq.s32.totalorder %s19, 1
      %p100 = por %p98, %p99
      %p101 = scmp.ne.s32.totalorder %s92, %s93
      %p102 = scmp.eq.s32.totalorder %s19, 0
      %p103 = por %p101, %p102
      %p104 = scmp.ne.s32.totalorder %s92, %s93
      %p105 = scmp.eq.s32.totalorder %s20, 1
      %p106 = por %p104, %p105
      %p108 = scmp.ne.s32.totalorder %s93, %s107
      %p109 = scmp.eq.s32.totalorder %s20, 0
      %p110 = por %p108, %p109
      %s112 = sadd.s32 %s111, 1
      %p115 = scmp.eq.s32.totalorder %s14, 1
      %p116 = scmp.ne.s32.totalorder %s111, %s113
      %p117 = scmp.eq.s32.totalorder %s14, 0
      %p118 = por %p116, %p117
      %p119 = scmp.ne.s32.totalorder %s111, %s113
      %p120 = scmp.eq.s32.totalorder %s19, 1
      %p121 = por %p119, %p120
      %p122 = scmp.ne.s32.totalorder %s113, %s114
      %p123 = scmp.eq.s32.totalorder %s19, 0
      %p124 = por %p122, %p123
      %p125 = scmp.ne.s32.totalorder %s113, %s114
      %p126 = scmp.eq.s32.totalorder %s20, 1
      %p127 = por %p125, %p126
      %p129 = scmp.ne.s32.totalorder %s114, %s128
      %p130 = scmp.eq.s32.totalorder %s20, 0
      %p131 = por %p129, %p130
      %s132 = ssub.s32 %s14, %s21
      %p133 = scmp.eq.s32.totalorder %s132, 0
      %s135 = sadd.s32 %s134, 1
      %s136 = scalar_select %p133, %s134, %s135
      %p139 = pneg %p133
      %p140 = scmp.eq.s32.totalorder %s14, 1
      %p141 = por %p139, %p140
      %p142 = scmp.ne.s32.totalorder %s134, %s137
      %p143 = scmp.eq.s32.totalorder %s14, 0
      %p144 = por %p142, %p143
      %p145 = scmp.ne.s32.totalorder %s134, %s137
      %p146 = scmp.eq.s32.totalorder %s19, 1
      %p147 = por %p145, %p146
      %p148 = scmp.ne.s32.totalorder %s137, %s138
      %p149 = scmp.eq.s32.totalorder %s19, 0
      %p150 = por %p148, %p149
      %p151 = scmp.ne.s32.totalorder %s137, %s138
      %p152 = scmp.eq.s32.totalorder %s20, 1
      %p153 = por %p151, %p152
      %p155 = scmp.ne.s32.totalorder %s138, %s154
      %p156 = scmp.eq.s32.totalorder %s20, 0
      %p157 = por %p155, %p156
      %p158 = scmp.le.s32.totalorder 1, %s14
      %p159 = scmp.lt.s32.totalorder %s14, 3
      %p160 = pnand %p158, %p159
      %p161 = pneg %p160
      // Predicated region
      $region9: #{tpu_custom_call.1} parent=5 // pred_check
        _
      $region10: #{tpu_custom_call.1} parent=5 // pred_check_branch
        %163 = sbr.rel (%p160) target = $region12
      $region11: #{tpu_custom_call.1} parent=5 // pred_region
        %s164 = ssub.s32 %s14, 1
        // Predicated region
        $region13: #{tpu_custom_call.1} parent=11 // pred_check
          %p165 = pneg %p61
        $region14: #{tpu_custom_call.1} parent=11 // pred_check_branch
          %167 = sbr.rel (%p165) target = $region16
        $region15: #{tpu_custom_call.1} parent=11 // pred_region
          _
        $region16: #{tpu_custom_call.1} parent=11 // pred_fallthru
          _
        // Predicated region
        $region17: #{tpu_custom_call.1} parent=11 // pred_check
          %p168 = pneg %p82
        $region18: #{tpu_custom_call.1} parent=11 // pred_check_branch
          %170 = sbr.rel (%p168) target = $region20
        $region19: #{tpu_custom_call.1} parent=11 // pred_region
          _
        $region20: #{tpu_custom_call.1} parent=11 // pred_fallthru
          _
        // Predicated region
        $region21: #{tpu_custom_call.1} parent=11 // pred_check
          %p171 = pneg %p103
        $region22: #{tpu_custom_call.1} parent=11 // pred_check_branch
          %173 = sbr.rel (%p171) target = $region24
        $region23: #{tpu_custom_call.1} parent=11 // pred_region
          _
        $region24: #{tpu_custom_call.1} parent=11 // pred_fallthru
          _
        // Predicated region
        $region25: #{tpu_custom_call.1} parent=11 // pred_check
          %p174 = pneg %p124
        $region26: #{tpu_custom_call.1} parent=11 // pred_check_branch
          %176 = sbr.rel (%p174) target = $region28
        $region27: #{tpu_custom_call.1} parent=11 // pred_region
          _
        $region28: #{tpu_custom_call.1} parent=11 // pred_fallthru
          _
      $region12: #{tpu_custom_call.1} parent=5 // pred_fallthru
        _
      %p177 = scmp.lt.s32.totalorder %s14, 2
      // Predicated region
      $region29: #{tpu_custom_call.1} parent=5 // pred_check
        %p178 = pneg %p177
      $region30: #{tpu_custom_call.1} parent=5 // pred_check_branch
        %180 = sbr.rel (%p178) target = $region32
      $region31: #{tpu_custom_call.1} parent=5 // pred_region
        // Predicated region
        $region33: #{tpu_custom_call.1} parent=31 // pred_check
          %p181 = pneg %p34
        $region34: #{tpu_custom_call.1} parent=31 // pred_check_branch
          %183 = sbr.rel (%p181) target = $region36
        $region35: #{tpu_custom_call.1} parent=31 // pred_region
          %p184 = scmp.lt.s32.totalorder %s14, 1
          %s185 = scalar_select %p184, %s14, 1
          %s186 = smul.addr %s185, 22
          %s187 = smul.addr %s186, 4
          %s188 = scalar_lea.vmem %s0, %s187
        $region36: #{tpu_custom_call.1} parent=31 // pred_fallthru
          _
      $region32: #{tpu_custom_call.1} parent=5 // pred_fallthru
        _
      %p189 = scmp.le.s32.totalorder 1, %s14
      %p190 = scmp.lt.s32.totalorder %s14, 3
      %p191 = pnand %p189, %p190
      %p192 = pneg %p191
      // Predicated region
      $region37: #{tpu_custom_call.1} parent=5 // pred_check
        _
      $region38: #{tpu_custom_call.1} parent=5 // pred_check_branch
        %194 = sbr.rel (%p191) target = $region40
      $region39: #{tpu_custom_call.1} parent=5 // pred_region
        %s195 = ssub.s32 %s14, 1
        %p196 = scmp.lt.s32.totalorder %s19, 1
        %s197 = scalar_select %p196, %s19, 1
        %s198 = smul.addr %s197, 22
        %s199 = smul.addr %s198, 4
        %s200 = scalar_lea.vmem %s0, %s199
        %p201 = pneg %p40
        %p202 = pneg %p37
        %p203 = pneg %p61
        %p204 = pneg %p58
        %p205 = pneg %p82
        %p206 = pneg %p79
        %p207 = pneg %p103
        %p208 = pneg %p100
        %p209 = pneg %p124
        %p210 = pneg %p121
        %p211 = pneg %p150
        %p212 = pneg %p147
        %s213 = sand.u32 %s137, 1
        %s214 = scalar_lea.sflag [#allocation3], %s213
        %s215 = sand.u32 %s137, 1
        %s216 = smul.addr %s215, 144
        %s217 = scalar_lea.vmem [#allocation2], %s216
        %p218 = scmp.lt.s32.totalorder %s19, 1
        %s219 = scalar_select %p218, %s19, 1
        %s220 = smul.addr %s219, 22
        %s221 = smul.addr %s220, 4
        %s222 = scalar_lea.vmem %s0, %s221
        %v224 = vld [vmem:[%s222] sm:$0xf]
        %v225 = vld [vmem:[%s222 + $0x4] sm:$0xf]
        %v226 = vld [vmem:[%s222 + $0x8] sm:$0xf]
        %v227 = vld [vmem:[%s222 + $0xc] sm:$0xf]
        %v228 = vld [vmem:[%s222 + $0x10] sm:$0xf]
        %v229 = vld [vmem:[%s222 + $0x14] sm:$0xf]
        %v230 = vld [vmem:[%s222 + $0x18] sm:$0xf]
        %v231 = vld [vmem:[%s222 + $0x1c] sm:$0xf]
        %v232 = vld [vmem:[%s222 + $0x20] sm:$0xf]
        %v233 = vld [vmem:[%s222 + $0x24] sm:$0xf]
        %v234 = vld [vmem:[%s222 + $0x28] sm:$0xf]
        %v235 = vld [vmem:[%s222 + $0x2c] sm:$0xf]
        %v236 = vld [vmem:[%s222 + $0x30] sm:$0xf]
        %v237 = vld [vmem:[%s222 + $0x34] sm:$0xf]
        %v238 = vld [vmem:[%s222 + $0x38] sm:$0xf]
        %v239 = vld [vmem:[%s222 + $0x3c] sm:$0xf]
        %v240 = vld [vmem:[%s222 + $0x40] sm:$0xf]
        %v241 = vld [vmem:[%s222 + $0x44] sm:$0xf]
        %v242 = vld [vmem:[%s1] sm:$0xf]
        %v243 = vld [vmem:[%s1 + $0x4] sm:$0xf]
        %v244 = vld [vmem:[%s222 + $0x48] sm:$0x1]
        %s245 = scalar_lea.vmem %s1, 8
        %v246 = vld [vmem:[%s245] sm:$0xf]
        %v247 = vld [vmem:[%s245 + $0x4] sm:$0xf]
        %v267 = vunpack.c.l.b16 %v224
        %v268 = vunpack.c.l.b16 %v225
        %v269 = vunpack.c.l.b16 %v226
        %v270 = vunpack.c.l.b16 %v227
        %v271 = vunpack.c.l.b16 %v228
        %v272 = vunpack.c.l.b16 %v229
        %v273 = vunpack.c.l.b16 %v230
        %v274 = vunpack.c.l.b16 %v231
        %v275 = vunpack.c.l.b16 %v232
        %v276 = vunpack.c.l.b16 %v233
        %v277 = vunpack.c.l.b16 %v234
        %v278 = vunpack.c.l.b16 %v235
        %v279 = vunpack.c.l.b16 %v236
        %v280 = vunpack.c.l.b16 %v237
        %v281 = vunpack.c.l.b16 %v238
        %v282 = vunpack.c.l.b16 %v239
        %v283 = vunpack.c.l.b16 %v240
        %v284 = vunpack.c.l.b16 %v241
        %v285 = vunpack.c.l.b16 %v244
        %v286 = vpack.c.b16 %v268, %v267
        %v287 = vpack.c.b16 %v270, %v269
        %v288 = vpack.c.b16 %v272, %v271
        %v289 = vpack.c.b16 %v274, %v273
        %v290 = vpack.c.b16 %v276, %v275
        %v291 = vpack.c.b16 %v278, %v277
        %v292 = vpack.c.b16 %v280, %v279
        %v293 = vpack.c.b16 %v282, %v281
        %v294 = vpack.c.b16 %v284, %v283
        %v295 = vpack.c.b16 %v285, %v285
        %vm296 = vsmask.f32 7424
        %v298 = vshrl.u32 %v286, 16
        %v300 = vshll.u32 %v286, 16
        %v302 = vrot.slane %v300, 1
        %v303 = vor.u32 %v298, %v302
        %v305 = vshll.u32 %v287, 16
        %v307 = vrot.slane %v305, 1
        %v308 = vsel %vm296, %v303, %v307
        %v309 = vshrl.u32 %v287, 16
        %v311 = vor.u32 %v309, %v307
        %v313 = vshll.u32 %v288, 16
        %v315 = vrot.slane %v313, 1
        %v316 = vsel %vm296, %v311, %v315
        %v317 = vshrl.u32 %v288, 16
        %v319 = vor.u32 %v317, %v315
        %v321 = vshll.u32 %v289, 16
        %v323 = vrot.slane %v321, 1
        %v324 = vsel %vm296, %v319, %v323
        %v325 = vshrl.u32 %v289, 16
        %v327 = vor.u32 %v325, %v323
        %v329 = vshll.u32 %v290, 16
        %v331 = vrot.slane %v329, 1
        %v332 = vsel %vm296, %v327, %v331
        %v333 = vshrl.u32 %v290, 16
        %v335 = vor.u32 %v333, %v331
        %v337 = vshll.u32 %v291, 16
        %v339 = vrot.slane %v337, 1
        %v340 = vsel %vm296, %v335, %v339
        %v341 = vshrl.u32 %v291, 16
        %v343 = vor.u32 %v341, %v339
        %v345 = vshll.u32 %v292, 16
        %v347 = vrot.slane %v345, 1
        %v348 = vsel %vm296, %v343, %v347
        %v349 = vshrl.u32 %v292, 16
        %v351 = vor.u32 %v349, %v347
        %v353 = vshll.u32 %v293, 16
        %v355 = vrot.slane %v353, 1
        %v356 = vsel %vm296, %v351, %v355
        %v357 = vshrl.u32 %v293, 16
        %v359 = vor.u32 %v357, %v355
        %v361 = vshll.u32 %v294, 16
        %v363 = vrot.slane %v361, 1
        %v364 = vsel %vm296, %v359, %v363
        %v365 = vshrl.u32 %v294, 16
        %v367 = vor.u32 %v365, %v363
        %v369 = vshll.u32 %v295, 16
        %v371 = vrot.slane %v369, 1
        %v372 = vsel %vm296, %v367, %v371
        %v375 = vunpack.c.l.b16 %v246
        %v376 = vunpack.c.l.b16 %v247
        %v377 = vpack.c.b16 %v376, %v375
        %vm379 = vcmask 130048
        %v381 = vsel %vm379, %v308, 0
        %v384 = vsel %vm379, %v316, 0
        %v387 = vsel %vm379, %v324, 0
        %v390 = vsel %vm379, %v332, 0
        %v393 = vsel %vm379, %v340, 0
        %v396 = vsel %vm379, %v348, 0
        %v399 = vsel %vm379, %v356, 0
        %v402 = vsel %vm379, %v364, 0
        %v405 = vsel %vm379, %v372, 0
        %407 = vmatprep.subr.bf16.mxu0 0
        %408 = vmatpush1.bf16.msra.mxu0 %v377
        %409 = vmatprep.subr.bf16.mxu0 0
        %410 = vmatpush1.bf16.msra.mxu0 0
        %411 = vmatprep.subr.bf16.mxu0 0
        %412 = vmatpush1.bf16.msra.mxu0 0
        %413 = vmatprep.subr.bf16.mxu0 0
        %414 = vmatpush1.bf16.msra.mxu0 0
        %415 = vmatprep.subr.bf16.mxu0 0
        %416 = vmatpush1.bf16.msra.mxu0 0
        %417 = vmatprep.subr.bf16.mxu0 0
        %418 = vmatpush1.bf16.msra.mxu0 0
        %419 = vmatprep.subr.bf16.mxu0 0
        %420 = vmatpush1.bf16.msra.mxu0 0
        %421 = vmatprep.subr.bf16.mxu0 0
        %422 = vmatpush1.bf16.msra.mxu0 0
        %423 = vmatprep.subr.bf16.mxu0 0
        %424 = vmatpush1.bf16.msra.mxu0 0
        %425 = vmatprep.subr.bf16.mxu0 0
        %426 = vmatpush1.bf16.msra.mxu0 0
        %427 = vmatprep.subr.bf16.mxu0 0
        %428 = vmatpush1.bf16.msra.mxu0 0
        %429 = vmatprep.subr.bf16.mxu0 0
        %430 = vmatpush1.bf16.msra.mxu0 0
        %431 = vmatprep.subr.bf16.mxu0 0
        %432 = vmatpush1.bf16.msra.mxu0 0
        %433 = vmatprep.subr.bf16.mxu0 0
        %434 = vmatpush1.bf16.msra.mxu0 0
        %435 = vmatprep.subr.bf16.mxu0 0
        %436 = vmatpush1.bf16.msra.mxu0 0
        %437 = vmatprep.subr.bf16.mxu0 0
        %438 = vmatpush1.bf16.msra.mxu0 0
        %439 = vmatprep.mubr.bf16.mxu0 0
        %440 = vmatmul.mubr.bf16.gmra.mrb[0].mxu0 %v381
        %v441 = vpop.f32.mrb[0].mxu0
        %v442 = vadd.f32 0.0, %v441
        %v443 = vpop.f32.mrb[0].mxu0
        %v444 = vpop.f32.mrb[0].mxu0
        %v445 = vadd.f32 0.0, %v444
        %v446 = vpop.f32.mrb[0].mxu0
        %447 = vmatprep.mubr.bf16.mxu0 0
        %448 = vmatmul.mubr.bf16.gmra.mrb[0].mxu0 %v384
        %v449 = vpop.f32.mrb[0].mxu0
        %v450 = vadd.f32 0.0, %v449
        %v451 = vpop.f32.mrb[0].mxu0
        %v452 = vpop.f32.mrb[0].mxu0
        %v453 = vadd.f32 0.0, %v452
        %v454 = vpop.f32.mrb[0].mxu0
        %455 = vmatprep.mubr.bf16.mxu0 0
        %456 = vmatmul.mubr.bf16.gmra.mrb[0].mxu0 %v387
        %v457 = vpop.f32.mrb[0].mxu0
        %v458 = vadd.f32 0.0, %v457
        %v459 = vpop.f32.mrb[0].mxu0
        %v460 = vpop.f32.mrb[0].mxu0
        %v461 = vadd.f32 0.0, %v460
        %v462 = vpop.f32.mrb[0].mxu0
        %463 = vmatprep.mubr.bf16.mxu0 0
        %464 = vmatmul.mubr.bf16.gmra.mrb[0].mxu0 %v390
        %v465 = vpop.f32.mrb[0].mxu0
        %v466 = vadd.f32 0.0, %v465
        %v467 = vpop.f32.mrb[0].mxu0
        %v468 = vpop.f32.mrb[0].mxu0
        %v469 = vadd.f32 0.0, %v468
        %v470 = vpop.f32.mrb[0].mxu0
        %471 = vmatprep.mubr.bf16.mxu0 0
        %472 = vmatmul.mubr.bf16.gmra.mrb[0].mxu0 %v393
        %v473 = vpop.f32.mrb[0].mxu0
        %v474 = vadd.f32 0.0, %v473
        %v475 = vpop.f32.mrb[0].mxu0
        %v476 = vpop.f32.mrb[0].mxu0
        %v477 = vadd.f32 0.0, %v476
        %v478 = vpop.f32.mrb[0].mxu0
        %479 = vmatprep.mubr.bf16.mxu0 0
        %480 = vmatmul.mubr.bf16.gmra.mrb[0].mxu0 %v396
        %v481 = vpop.f32.mrb[0].mxu0
        %v482 = vadd.f32 0.0, %v481
        %v483 = vpop.f32.mrb[0].mxu0
        %v484 = vpop.f32.mrb[0].mxu0
        %v485 = vadd.f32 0.0, %v484
        %v486 = vpop.f32.mrb[0].mxu0
        %487 = vmatprep.mubr.bf16.mxu0 0
        %488 = vmatmul.mubr.bf16.gmra.mrb[0].mxu0 %v399
        %v489 = vpop.f32.mrb[0].mxu0
        %v490 = vadd.f32 0.0, %v489
        %v491 = vpop.f32.mrb[0].mxu0
        %v492 = vpop.f32.mrb[0].mxu0
        %v493 = vadd.f32 0.0, %v492
        %v494 = vpop.f32.mrb[0].mxu0
        %495 = vmatprep.mubr.bf16.mxu0 0
        %496 = vmatmul.mubr.bf16.gmra.mrb[0].mxu0 %v402
        %v497 = vpop.f32.mrb[0].mxu0
        %v498 = vadd.f32 0.0, %v497
        %v499 = vpop.f32.mrb[0].mxu0
        %v500 = vpop.f32.mrb[0].mxu0
        %v501 = vadd.f32 0.0, %v500
        %v502 = vpop.f32.mrb[0].mxu0
        %503 = vmatprep.mubr.bf16.mxu0 0
        %504 = vmatmul.mubr.bf16.gmra.mrb[0].mxu0 %v405
        %v505 = vpop.f32.mrb[0].mxu0
        %v506 = vadd.f32 0.0, %v505
        %v507 = vpop.f32.mrb[0].mxu0
        %v508 = vpop.f32.mrb[0].mxu0
        %v509 = vadd.f32 0.0, %v508
        %v510 = vpop.f32.mrb[0].mxu0
        %511 = vdwg.mxu0
        %v514 = vunpack.c.l.b16 %v242
        %v515 = vunpack.c.l.b16 %v243
        %v516 = vpack.c.b16 %v515, %v514
        %v518 = vsel %vm379, %v286, 0
        %v520 = vsel %vm379, %v287, 0
        %v522 = vsel %vm379, %v288, 0
        %v524 = vsel %vm379, %v289, 0
        %v526 = vsel %vm379, %v290, 0
        %v528 = vsel %vm379, %v291, 0
        %v530 = vsel %vm379, %v292, 0
        %v532 = vsel %vm379, %v293, 0
        %v534 = vsel %vm379, %v294, 0
        %536 = vmatprep.subr.bf16.mxu0 0
        %537 = vmatpush1.bf16.msra.mxu0 %v516
        %538 = vmatprep.subr.bf16.mxu0 0
        %539 = vmatpush1.bf16.msra.mxu0 0
        %540 = vmatprep.subr.bf16.mxu0 0
        %541 = vmatpush1.bf16.msra.mxu0 0
        %542 = vmatprep.subr.bf16.mxu0 0
        %543 = vmatpush1.bf16.msra.mxu0 0
        %544 = vmatprep.subr.bf16.mxu0 0
        %545 = vmatpush1.bf16.msra.mxu0 0
        %546 = vmatprep.subr.bf16.mxu0 0
        %547 = vmatpush1.bf16.msra.mxu0 0
        %548 = vmatprep.subr.bf16.mxu0 0
        %549 = vmatpush1.bf16.msra.mxu0 0
        %550 = vmatprep.subr.bf16.mxu0 0
        %551 = vmatpush1.bf16.msra.mxu0 0
        %552 = vmatprep.subr.bf16.mxu0 0
        %553 = vmatpush1.bf16.msra.mxu0 0
        %554 = vmatprep.subr.bf16.mxu0 0
        %555 = vmatpush1.bf16.msra.mxu0 0
        %556 = vmatprep.subr.bf16.mxu0 0
        %557 = vmatpush1.bf16.msra.mxu0 0
        %558 = vmatprep.subr.bf16.mxu0 0
        %559 = vmatpush1.bf16.msra.mxu0 0
        %560 = vmatprep.subr.bf16.mxu0 0
        %561 = vmatpush1.bf16.msra.mxu0 0
        %562 = vmatprep.subr.bf16.mxu0 0
        %563 = vmatpush1.bf16.msra.mxu0 0
        %564 = vmatprep.subr.bf16.mxu0 0
        %565 = vmatpush1.bf16.msra.mxu0 0
        %566 = vmatprep.subr.bf16.mxu0 0
        %567 = vmatpush1.bf16.msra.mxu0 0
        %568 = vmatprep.mubr.bf16.mxu0 0
        %569 = vmatmul.mubr.bf16.gmra.mrb[0].mxu0 %v518
        %v570 = vpop.f32.mrb[0].mxu0
        %v571 = vadd.f32 %v442, %v570
        %v572 = vpop.f32.mrb[0].mxu0
        %v573 = vpop.f32.mrb[0].mxu0
        %v574 = vadd.f32 %v445, %v573
        %v575 = vpop.f32.mrb[0].mxu0
        %576 = vmatprep.mubr.bf16.mxu0 0
        %577 = vmatmul.mubr.bf16.gmra.mrb[0].mxu0 %v520
        %v578 = vpop.f32.mrb[0].mxu0
        %v579 = vadd.f32 %v450, %v578
        %v580 = vpop.f32.mrb[0].mxu0
        %v581 = vpop.f32.mrb[0].mxu0
        %v582 = vadd.f32 %v453, %v581
        %v583 = vpop.f32.mrb[0].mxu0
        %584 = vmatprep.mubr.bf16.mxu0 0
        %585 = vmatmul.mubr.bf16.gmra.mrb[0].mxu0 %v522
        %v586 = vpop.f32.mrb[0].mxu0
        %v587 = vadd.f32 %v458, %v586
        %v588 = vpop.f32.mrb[0].mxu0
        %v589 = vpop.f32.mrb[0].mxu0
        %v590 = vadd.f32 %v461, %v589
        %v591 = vpop.f32.mrb[0].mxu0
        %592 = vmatprep.mubr.bf16.mxu0 0
        %593 = vmatmul.mubr.bf16.gmra.mrb[0].mxu0 %v524
        %v594 = vpop.f32.mrb[0].mxu0
        %v595 = vadd.f32 %v466, %v594
        %v596 = vpop.f32.mrb[0].mxu0
        %v597 = vpop.f32.mrb[0].mxu0
        %v598 = vadd.f32 %v469, %v597
        %v599 = vpop.f32.mrb[0].mxu0
        %600 = vmatprep.mubr.bf16.mxu0 0
        %601 = vmatmul.mubr.bf16.gmra.mrb[0].mxu0 %v526
        %v602 = vpop.f32.mrb[0].mxu0
        %v603 = vadd.f32 %v474, %v602
        %v604 = vpop.f32.mrb[0].mxu0
        %v605 = vpop.f32.mrb[0].mxu0
        %v606 = vadd.f32 %v477, %v605
        %v607 = vpop.f32.mrb[0].mxu0
        %608 = vmatprep.mubr.bf16.mxu0 0
        %609 = vmatmul.mubr.bf16.gmra.mrb[0].mxu0 %v528
        %v610 = vpop.f32.mrb[0].mxu0
        %v611 = vadd.f32 %v482, %v610
        %v612 = vpop.f32.mrb[0].mxu0
        %v613 = vpop.f32.mrb[0].mxu0
        %v614 = vadd.f32 %v485, %v613
        %v615 = vpop.f32.mrb[0].mxu0
        %616 = vmatprep.mubr.bf16.mxu0 0
        %617 = vmatmul.mubr.bf16.gmra.mrb[0].mxu0 %v530
        %v618 = vpop.f32.mrb[0].mxu0
        %v619 = vadd.f32 %v490, %v618
        %v620 = vpop.f32.mrb[0].mxu0
        %v621 = vpop.f32.mrb[0].mxu0
        %v622 = vadd.f32 %v493, %v621
        %v623 = vpop.f32.mrb[0].mxu0
        %624 = vmatprep.mubr.bf16.mxu0 0
        %625 = vmatmul.mubr.bf16.gmra.mrb[0].mxu0 %v532
        %v626 = vpop.f32.mrb[0].mxu0
        %v627 = vadd.f32 %v498, %v626
        %v628 = vpop.f32.mrb[0].mxu0
        %v629 = vpop.f32.mrb[0].mxu0
        %v630 = vadd.f32 %v501, %v629
        %v631 = vpop.f32.mrb[0].mxu0
        %632 = vmatprep.mubr.bf16.mxu0 0
        %633 = vmatmul.mubr.bf16.gmra.mrb[0].mxu0 %v534
        %v634 = vpop.f32.mrb[0].mxu0
        %v635 = vadd.f32 %v506, %v634
        %v636 = vpop.f32.mrb[0].mxu0
        %v637 = vpop.f32.mrb[0].mxu0
        %v638 = vadd.f32 %v509, %v637
        %v639 = vpop.f32.mrb[0].mxu0
        %640 = vdwg.mxu0
        %v641 = vld [vmem:[%s222] sm:$0xe]
        %s642 = scalar_lea.vmem %s1, 16
        %v643 = vld [vmem:[%s642] sm:$0xf]
        %v644 = vld [vmem:[%s642 + $0x4] sm:$0xf]
        %v646 = vunpack.c.l.b16 %v641
        %v647 = vpack.c.b16 %v268, %v646
        %vm648 = vcmask 1046528
        %v649 = vrot.slane %v647, 1
        %v650 = vrot.slane %v287, 1
        %v651 = vsel %vm648, %v649, %v650
        %v652 = vrot.slane %v288, 1
        %v653 = vsel %vm648, %v650, %v652
        %v654 = vrot.slane %v289, 1
        %v655 = vsel %vm648, %v652, %v654
        %v656 = vrot.slane %v290, 1
        %v657 = vsel %vm648, %v654, %v656
        %v658 = vrot.slane %v291, 1
        %v659 = vsel %vm648, %v656, %v658
        %v660 = vrot.slane %v292, 1
        %v661 = vsel %vm648, %v658, %v660
        %v662 = vrot.slane %v293, 1
        %v663 = vsel %vm648, %v660, %v662
        %v664 = vrot.slane %v294, 1
        %v665 = vsel %vm648, %v662, %v664
        %v666 = vrot.slane %v295, 1
        %v667 = vsel %vm648, %v664, %v666
        %v670 = vunpack.c.l.b16 %v643
        %v671 = vunpack.c.l.b16 %v644
        %v672 = vpack.c.b16 %v671, %v670
        %v675 = vsel %vm379, %v651, 0
        %v678 = vsel %vm379, %v653, 0
        %v681 = vsel %vm379, %v655, 0
        %v684 = vsel %vm379, %v657, 0
        %v687 = vsel %vm379, %v659, 0
        %v690 = vsel %vm379, %v661, 0
        %v693 = vsel %vm379, %v663, 0
        %v696 = vsel %vm379, %v665, 0
        %v699 = vsel %vm379, %v667, 0
        %701 = vmatprep.subr.bf16.mxu0 0
        %702 = vmatpush1.bf16.msra.mxu0 %v672
        %703 = vmatprep.subr.bf16.mxu0 0
        %704 = vmatpush1.bf16.msra.mxu0 0
        %705 = vmatprep.subr.bf16.mxu0 0
        %706 = vmatpush1.bf16.msra.mxu0 0
        %707 = vmatprep.subr.bf16.mxu0 0
        %708 = vmatpush1.bf16.msra.mxu0 0
        %709 = vmatprep.subr.bf16.mxu0 0
        %710 = vmatpush1.bf16.msra.mxu0 0
        %711 = vmatprep.subr.bf16.mxu0 0
        %712 = vmatpush1.bf16.msra.mxu0 0
        %713 = vmatprep.subr.bf16.mxu0 0
        %714 = vmatpush1.bf16.msra.mxu0 0
        %715 = vmatprep.subr.bf16.mxu0 0
        %716 = vmatpush1.bf16.msra.mxu0 0
        %717 = vmatprep.subr.bf16.mxu0 0
        %718 = vmatpush1.bf16.msra.mxu0 0
        %719 = vmatprep.subr.bf16.mxu0 0
        %720 = vmatpush1.bf16.msra.mxu0 0
        %721 = vmatprep.subr.bf16.mxu0 0
        %722 = vmatpush1.bf16.msra.mxu0 0
        %723 = vmatprep.subr.bf16.mxu0 0
        %724 = vmatpush1.bf16.msra.mxu0 0
        %725 = vmatprep.subr.bf16.mxu0 0
        %726 = vmatpush1.bf16.msra.mxu0 0
        %727 = vmatprep.subr.bf16.mxu0 0
        %728 = vmatpush1.bf16.msra.mxu0 0
        %729 = vmatprep.subr.bf16.mxu0 0
        %730 = vmatpush1.bf16.msra.mxu0 0
        %731 = vmatprep.subr.bf16.mxu0 0
        %732 = vmatpush1.bf16.msra.mxu0 0
        %733 = vmatprep.mubr.bf16.mxu0 0
        %734 = vmatmul.mubr.bf16.gmra.mrb[0].mxu0 %v675
        %v735 = vpop.f32.mrb[0].mxu0
        %v736 = vadd.f32 0.0, %v735
        %v737 = vpop.f32.mrb[0].mxu0
        %v738 = vpop.f32.mrb[0].mxu0
        %v739 = vadd.f32 0.0, %v738
        %v740 = vpop.f32.mrb[0].mxu0
        %741 = vmatprep.mubr.bf16.mxu0 0
        %742 = vmatmul.mubr.bf16.gmra.mrb[0].mxu0 %v678
        %v743 = vpop.f32.mrb[0].mxu0
        %v744 = vadd.f32 0.0, %v743
        %v745 = vpop.f32.mrb[0].mxu0
        %v746 = vpop.f32.mrb[0].mxu0
        %v747 = vadd.f32 0.0, %v746
        %v748 = vpop.f32.mrb[0].mxu0
        %749 = vmatprep.mubr.bf16.mxu0 0
        %750 = vmatmul.mubr.bf16.gmra.mrb[0].mxu0 %v681
        %v751 = vpop.f32.mrb[0].mxu0
        %v752 = vadd.f32 0.0, %v751
        %v753 = vpop.f32.mrb[0].mxu0
        %v754 = vpop.f32.mrb[0].mxu0
        %v755 = vadd.f32 0.0, %v754
        %v756 = vpop.f32.mrb[0].mxu0
        %757 = vmatprep.mubr.bf16.mxu0 0
        %758 = vmatmul.mubr.bf16.gmra.mrb[0].mxu0 %v684
        %v759 = vpop.f32.mrb[0].mxu0
        %v760 = vadd.f32 0.0, %v759
        %v761 = vpop.f32.mrb[0].mxu0
        %v762 = vpop.f32.mrb[0].mxu0
        %v763 = vadd.f32 0.0, %v762
        %v764 = vpop.f32.mrb[0].mxu0
        %765 = vmatprep.mubr.bf16.mxu0 0
        %766 = vmatmul.mubr.bf16.gmra.mrb[0].mxu0 %v687
        %v767 = vpop.f32.mrb[0].mxu0
        %v768 = vadd.f32 0.0, %v767
        %v769 = vpop.f32.mrb[0].mxu0
        %v770 = vpop.f32.mrb[0].mxu0
        %v771 = vadd.f32 0.0, %v770
        %v772 = vpop.f32.mrb[0].mxu0
        %773 = vmatprep.mubr.bf16.mxu0 0
        %774 = vmatmul.mubr.bf16.gmra.mrb[0].mxu0 %v690
        %v775 = vpop.f32.mrb[0].mxu0
        %v776 = vadd.f32 0.0, %v775
        %v777 = vpop.f32.mrb[0].mxu0
        %v778 = vpop.f32.mrb[0].mxu0
        %v779 = vadd.f32 0.0, %v778
        %v780 = vpop.f32.mrb[0].mxu0
        %781 = vmatprep.mubr.bf16.mxu0 0
        %782 = vmatmul.mubr.bf16.gmra.mrb[0].mxu0 %v693
        %v783 = vpop.f32.mrb[0].mxu0
        %v784 = vadd.f32 0.0, %v783
        %v785 = vpop.f32.mrb[0].mxu0
        %v786 = vpop.f32.mrb[0].mxu0
        %v787 = vadd.f32 0.0, %v786
        %v788 = vpop.f32.mrb[0].mxu0
        %789 = vmatprep.mubr.bf16.mxu0 0
        %790 = vmatmul.mubr.bf16.gmra.mrb[0].mxu0 %v696
        %v791 = vpop.f32.mrb[0].mxu0
        %v792 = vadd.f32 0.0, %v791
        %v793 = vpop.f32.mrb[0].mxu0
        %v794 = vpop.f32.mrb[0].mxu0
        %v795 = vadd.f32 0.0, %v794
        %v796 = vpop.f32.mrb[0].mxu0
        %797 = vmatprep.mubr.bf16.mxu0 0
        %798 = vmatmul.mubr.bf16.gmra.mrb[0].mxu0 %v699
        %v799 = vpop.f32.mrb[0].mxu0
        %v800 = vadd.f32 0.0, %v799
        %v801 = vpop.f32.mrb[0].mxu0
        %v802 = vpop.f32.mrb[0].mxu0
        %v803 = vadd.f32 0.0, %v802
        %v804 = vpop.f32.mrb[0].mxu0
        %805 = vdwg.mxu0
        %v806 = vadd.f32 %v571, %v736
        %v807 = vadd.f32 %v574, %v739
        %v808 = vadd.f32 %v579, %v744
        %v809 = vadd.f32 %v582, %v747
        %v810 = vadd.f32 %v587, %v752
        %v811 = vadd.f32 %v590, %v755
        %v812 = vadd.f32 %v595, %v760
        %v813 = vadd.f32 %v598, %v763
        %v814 = vadd.f32 %v603, %v768
        %v815 = vadd.f32 %v606, %v771
        %v816 = vadd.f32 %v611, %v776
        %v817 = vadd.f32 %v614, %v779
        %v818 = vadd.f32 %v619, %v784
        %v819 = vadd.f32 %v622, %v787
        %v820 = vadd.f32 %v627, %v792
        %v821 = vadd.f32 %v630, %v795
        %v822 = vadd.f32 %v635, %v800
        %v823 = vadd.f32 %v638, %v803
        %v824 = vld [vmem:[%s222 + $0x4] sm:$0x8]
        %v825 = vld [vmem:[%s222 + $0x8] sm:$0xf]
        %v826 = vld [vmem:[%s222 + $0xc] sm:$0xf]
        %v827 = vld [vmem:[%s222 + $0x10] sm:$0xf]
        %v828 = vld [vmem:[%s222 + $0x14] sm:$0xf]
        %v829 = vld [vmem:[%s222 + $0x18] sm:$0xf]
        %v830 = vld [vmem:[%s222 + $0x1c] sm:$0xf]
        %v831 = vld [vmem:[%s222 + $0x20] sm:$0xf]
        %v832 = vld [vmem:[%s222 + $0x24] sm:$0xf]
        %v833 = vld [vmem:[%s222 + $0x28] sm:$0xf]
        %v834 = vld [vmem:[%s222 + $0x2c] sm:$0xf]
        %v835 = vld [vmem:[%s222 + $0x30] sm:$0xf]
        %v836 = vld [vmem:[%s222 + $0x34] sm:$0xf]
        %v837 = vld [vmem:[%s222 + $0x38] sm:$0xf]
        %v838 = vld [vmem:[%s222 + $0x3c] sm:$0xf]
        %v839 = vld [vmem:[%s222 + $0x40] sm:$0xf]
        %v840 = vld [vmem:[%s222 + $0x44] sm:$0xf]
        %v841 = vld [vmem:[%s222 + $0x48] sm:$0xf]
        %v842 = vld [vmem:[%s222 + $0x4c] sm:$0x7]
        %s843 = scalar_lea.vmem %s1, 24
        %v844 = vld [vmem:[%s843] sm:$0xf]
        %v845 = vld [vmem:[%s843 + $0x4] sm:$0xf]
        %v865 = vunpack.c.l.b16 %v824
        %v866 = vunpack.c.l.b16 %v825
        %v867 = vunpack.c.l.b16 %v826
        %v868 = vunpack.c.l.b16 %v827
        %v869 = vunpack.c.l.b16 %v828
        %v870 = vunpack.c.l.b16 %v829
        %v871 = vunpack.c.l.b16 %v830
        %v872 = vunpack.c.l.b16 %v831
        %v873 = vunpack.c.l.b16 %v832
        %v874 = vunpack.c.l.b16 %v833
        %v875 = vunpack.c.l.b16 %v834
        %v876 = vunpack.c.l.b16 %v835
        %v877 = vunpack.c.l.b16 %v836
        %v878 = vunpack.c.l.b16 %v837
        %v879 = vunpack.c.l.b16 %v838
        %v880 = vunpack.c.l.b16 %v839
        %v881 = vunpack.c.l.b16 %v840
        %v882 = vunpack.c.l.b16 %v841
        %v883 = vunpack.c.l.b16 %v842
        %v884 = vpack.c.b16 %v866, %v865
        %v885 = vpack.c.b16 %v868, %v867
        %v886 = vpack.c.b16 %v870, %v869
        %v887 = vpack.c.b16 %v872, %v871
        %v888 = vpack.c.b16 %v874, %v873
        %v889 = vpack.c.b16 %v876, %v875
        %v890 = vpack.c.b16 %v878, %v877
        %v891 = vpack.c.b16 %v880, %v879
        %v892 = vpack.c.b16 %v882, %v881
        %v893 = vpack.c.b16 %v883, %v883
        %vm894 = vcmask 1044480
        %v895 = vrot.slane %v884, 3
        %v896 = vrot.slane %v885, 3
        %v897 = vsel %vm894, %v895, %v896
        %v898 = vrot.slane %v886, 3
        %v899 = vsel %vm894, %v896, %v898
        %v900 = vrot.slane %v887, 3
        %v901 = vsel %vm894, %v898, %v900
        %v902 = vrot.slane %v888, 3
        %v903 = vsel %vm894, %v900, %v902
        %v904 = vrot.slane %v889, 3
        %v905 = vsel %vm894, %v902, %v904
        %v906 = vrot.slane %v890, 3
        %v907 = vsel %vm894, %v904, %v906
        %v908 = vrot.slane %v891, 3
        %v909 = vsel %vm894, %v906, %v908
        %v910 = vrot.slane %v892, 3
        %v911 = vsel %vm894, %v908, %v910
        %v912 = vrot.slane %v893, 3
        %v913 = vsel %vm894, %v910, %v912
        %v916 = vunpack.c.l.b16 %v844
        %v917 = vunpack.c.l.b16 %v845
        %v918 = vpack.c.b16 %v917, %v916
        %v921 = vsel %vm379, %v897, 0
        %v924 = vsel %vm379, %v899, 0
        %v927 = vsel %vm379, %v901, 0
        %v930 = vsel %vm379, %v903, 0
        %v933 = vsel %vm379, %v905, 0
        %v936 = vsel %vm379, %v907, 0
        %v939 = vsel %vm379, %v909, 0
        %v942 = vsel %vm379, %v911, 0
        %v945 = vsel %vm379, %v913, 0
        %947 = vmatprep.subr.bf16.mxu0 0
        %948 = vmatpush1.bf16.msra.mxu0 %v918
        %949 = vmatprep.subr.bf16.mxu0 0
        %950 = vmatpush1.bf16.msra.mxu0 0
        %951 = vmatprep.subr.bf16.mxu0 0
        %952 = vmatpush1.bf16.msra.mxu0 0
        %953 = vmatprep.subr.bf16.mxu0 0
        %954 = vmatpush1.bf16.msra.mxu0 0
        %955 = vmatprep.subr.bf16.mxu0 0
        %956 = vmatpush1.bf16.msra.mxu0 0
        %957 = vmatprep.subr.bf16.mxu0 0
        %958 = vmatpush1.bf16.msra.mxu0 0
        %959 = vmatprep.subr.bf16.mxu0 0
        %960 = vmatpush1.bf16.msra.mxu0 0
        %961 = vmatprep.subr.bf16.mxu0 0
        %962 = vmatpush1.bf16.msra.mxu0 0
        %963 = vmatprep.subr.bf16.mxu0 0
        %964 = vmatpush1.bf16.msra.mxu0 0
        %965 = vmatprep.subr.bf16.mxu0 0
        %966 = vmatpush1.bf16.msra.mxu0 0
        %967 = vmatprep.subr.bf16.mxu0 0
        %968 = vmatpush1.bf16.msra.mxu0 0
        %969 = vmatprep.subr.bf16.mxu0 0
        %970 = vmatpush1.bf16.msra.mxu0 0
        %971 = vmatprep.subr.bf16.mxu0 0
        %972 = vmatpush1.bf16.msra.mxu0 0
        %973 = vmatprep.subr.bf16.mxu0 0
        %974 = vmatpush1.bf16.msra.mxu0 0
        %975 = vmatprep.subr.bf16.mxu0 0
        %976 = vmatpush1.bf16.msra.mxu0 0
        %977 = vmatprep.subr.bf16.mxu0 0
        %978 = vmatpush1.bf16.msra.mxu0 0
        %979 = vmatprep.mubr.bf16.mxu0 0
        %980 = vmatmul.mubr.bf16.gmra.mrb[0].mxu0 %v921
        %v981 = vpop.f32.mrb[0].mxu0
        %v982 = vadd.f32 0.0, %v981
        %v983 = vpop.f32.mrb[0].mxu0
        %v984 = vpop.f32.mrb[0].mxu0
        %v985 = vadd.f32 0.0, %v984
        %v986 = vpop.f32.mrb[0].mxu0
        %987 = vmatprep.mubr.bf16.mxu0 0
        %988 = vmatmul.mubr.bf16.gmra.mrb[0].mxu0 %v924
        %v989 = vpop.f32.mrb[0].mxu0
        %v990 = vadd.f32 0.0, %v989
        %v991 = vpop.f32.mrb[0].mxu0
        %v992 = vpop.f32.mrb[0].mxu0
        %v993 = vadd.f32 0.0, %v992
        %v994 = vpop.f32.mrb[0].mxu0
        %995 = vmatprep.mubr.bf16.mxu0 0
        %996 = vmatmul.mubr.bf16.gmra.mrb[0].mxu0 %v927
        %v997 = vpop.f32.mrb[0].mxu0
        %v998 = vadd.f32 0.0, %v997
        %v999 = vpop.f32.mrb[0].mxu0
        %v1000 = vpop.f32.mrb[0].mxu0
        %v1001 = vadd.f32 0.0, %v1000
        %v1002 = vpop.f32.mrb[0].mxu0
        %1003 = vmatprep.mubr.bf16.mxu0 0
        %1004 = vmatmul.mubr.bf16.gmra.mrb[0].mxu0 %v930
        %v1005 = vpop.f32.mrb[0].mxu0
        %v1006 = vadd.f32 0.0, %v1005
        %v1007 = vpop.f32.mrb[0].mxu0
        %v1008 = vpop.f32.mrb[0].mxu0
        %v1009 = vadd.f32 0.0, %v1008
        %v1010 = vpop.f32.mrb[0].mxu0
        %1011 = vmatprep.mubr.bf16.mxu0 0
        %1012 = vmatmul.mubr.bf16.gmra.mrb[0].mxu0 %v933
        %v1013 = vpop.f32.mrb[0].mxu0
        %v1014 = vadd.f32 0.0, %v1013
        %v1015 = vpop.f32.mrb[0].mxu0
        %v1016 = vpop.f32.mrb[0].mxu0
        %v1017 = vadd.f32 0.0, %v1016
        %v1018 = vpop.f32.mrb[0].mxu0
        %1019 = vmatprep.mubr.bf16.mxu0 0
        %1020 = vmatmul.mubr.bf16.gmra.mrb[0].mxu0 %v936
        %v1021 = vpop.f32.mrb[0].mxu0
        %v1022 = vadd.f32 0.0, %v1021
        %v1023 = vpop.f32.mrb[0].mxu0
        %v1024 = vpop.f32.mrb[0].mxu0
        %v1025 = vadd.f32 0.0, %v1024
        %v1026 = vpop.f32.mrb[0].mxu0
        %1027 = vmatprep.mubr.bf16.mxu0 0
        %1028 = vmatmul.mubr.bf16.gmra.mrb[0].mxu0 %v939
        %v1029 = vpop.f32.mrb[0].mxu0
        %v1030 = vadd.f32 0.0, %v1029
        %v1031 = vpop.f32.mrb[0].mxu0
        %v1032 = vpop.f32.mrb[0].mxu0
        %v1033 = vadd.f32 0.0, %v1032
        %v1034 = vpop.f32.mrb[0].mxu0
        %1035 = vmatprep.mubr.bf16.mxu0 0
        %1036 = vmatmul.mubr.bf16.gmra.mrb[0].mxu0 %v942
        %v1037 = vpop.f32.mrb[0].mxu0
        %v1038 = vadd.f32 0.0, %v1037
        %v1039 = vpop.f32.mrb[0].mxu0
        %v1040 = vpop.f32.mrb[0].mxu0
        %v1041 = vadd.f32 0.0, %v1040
        %v1042 = vpop.f32.mrb[0].mxu0
        %1043 = vmatprep.mubr.bf16.mxu0 0
        %1044 = vmatmul.mubr.bf16.gmra.mrb[0].mxu0 %v945
        %v1045 = vpop.f32.mrb[0].mxu0
        %v1046 = vadd.f32 0.0, %v1045
        %v1047 = vpop.f32.mrb[0].mxu0
        %v1048 = vpop.f32.mrb[0].mxu0
        %v1049 = vadd.f32 0.0, %v1048
        %v1050 = vpop.f32.mrb[0].mxu0
        %1051 = vdwg.mxu0
        %v1052 = vadd.f32 %v806, %v982
        %v1053 = vadd.f32 %v807, %v985
        %v1054 = vadd.f32 %v808, %v990
        %v1055 = vadd.f32 %v809, %v993
        %v1056 = vadd.f32 %v810, %v998
        %v1057 = vadd.f32 %v811, %v1001
        %v1058 = vadd.f32 %v812, %v1006
        %v1059 = vadd.f32 %v813, %v1009
        %v1060 = vadd.f32 %v814, %v1014
        %v1061 = vadd.f32 %v815, %v1017
        %v1062 = vadd.f32 %v816, %v1022
        %v1063 = vadd.f32 %v817, %v1025
        %v1064 = vadd.f32 %v818, %v1030
        %v1065 = vadd.f32 %v819, %v1033
        %v1066 = vadd.f32 %v820, %v1038
        %v1067 = vadd.f32 %v821, %v1041
        %v1068 = vadd.f32 %v822, %v1046
        %v1069 = vadd.f32 %v823, %v1049
        %v1070 = vld [vmem:[%s222 + $0x4c] sm:$0xf]
        %s1071 = scalar_lea.vmem %s1, 32
        %v1072 = vld [vmem:[%s1071] sm:$0xf]
        %v1073 = vld [vmem:[%s1071 + $0x4] sm:$0xf]
        %v1075 = vunpack.c.l.b16 %v1070
        %v1076 = vpack.c.b16 %v1075, %v1075
        %vm1077 = vsmask.f32 4352
        %v1079 = vshrl.u32 %v884, 16
        %v1081 = vrot.slane %v1079, 3
        %v1082 = vshll.u32 %v884, 16
        %v1084 = vrot.slane %v1082, 4
        %v1085 = vor.u32 %v1081, %v1084
        %v1087 = vshrl.u32 %v885, 16
        %v1089 = vrot.slane %v1087, 3
        %v1090 = vshll.u32 %v885, 16
        %v1092 = vrot.slane %v1090, 4
        %v1093 = vor.u32 %v1089, %v1092
        %v1094 = vsel %vm1077, %v1085, %v1093
        %v1096 = vshrl.u32 %v886, 16
        %v1098 = vrot.slane %v1096, 3
        %v1099 = vshll.u32 %v886, 16
        %v1101 = vrot.slane %v1099, 4
        %v1102 = vor.u32 %v1098, %v1101
        %v1103 = vsel %vm1077, %v1093, %v1102
        %v1105 = vshrl.u32 %v887, 16
        %v1107 = vrot.slane %v1105, 3
        %v1108 = vshll.u32 %v887, 16
        %v1110 = vrot.slane %v1108, 4
        %v1111 = vor.u32 %v1107, %v1110
        %v1112 = vsel %vm1077, %v1102, %v1111
        %v1114 = vshrl.u32 %v888, 16
        %v1116 = vrot.slane %v1114, 3
        %v1117 = vshll.u32 %v888, 16
        %v1119 = vrot.slane %v1117, 4
        %v1120 = vor.u32 %v1116, %v1119
        %v1121 = vsel %vm1077, %v1111, %v1120
        %v1123 = vshrl.u32 %v889, 16
        %v1125 = vrot.slane %v1123, 3
        %v1126 = vshll.u32 %v889, 16
        %v1128 = vrot.slane %v1126, 4
        %v1129 = vor.u32 %v1125, %v1128
        %v1130 = vsel %vm1077, %v1120, %v1129
        %v1132 = vshrl.u32 %v890, 16
        %v1134 = vrot.slane %v1132, 3
        %v1135 = vshll.u32 %v890, 16
        %v1137 = vrot.slane %v1135, 4
        %v1138 = vor.u32 %v1134, %v1137
        %v1139 = vsel %vm1077, %v1129, %v1138
        %v1141 = vshrl.u32 %v891, 16
        %v1143 = vrot.slane %v1141, 3
        %v1144 = vshll.u32 %v891, 16
        %v1146 = vrot.slane %v1144, 4
        %v1147 = vor.u32 %v1143, %v1146
        %v1148 = vsel %vm1077, %v1138, %v1147
        %v1150 = vshrl.u32 %v892, 16
        %v1152 = vrot.slane %v1150, 3
        %v1153 = vshll.u32 %v892, 16
        %v1155 = vrot.slane %v1153, 4
        %v1156 = vor.u32 %v1152, %v1155
        %v1157 = vsel %vm1077, %v1147, %v1156
        %v1159 = vshrl.u32 %v1076, 16
        %v1161 = vrot.slane %v1159, 3
        %v1162 = vshll.u32 %v1076, 16
        %v1164 = vrot.slane %v1162, 4
        %v1165 = vor.u32 %v1161, %v1164
        %v1166 = vsel %vm1077, %v1156, %v1165
        %v1169 = vunpack.c.l.b16 %v1072
        %v1170 = vunpack.c.l.b16 %v1073
        %v1171 = vpack.c.b16 %v1170, %v1169
        %v1174 = vsel %vm379, %v1094, 0
        %v1177 = vsel %vm379, %v1103, 0
        %v1180 = vsel %vm379, %v1112, 0
        %v1183 = vsel %vm379, %v1121, 0
        %v1186 = vsel %vm379, %v1130, 0
        %v1189 = vsel %vm379, %v1139, 0
        %v1192 = vsel %vm379, %v1148, 0
        %v1195 = vsel %vm379, %v1157, 0
        %v1198 = vsel %vm379, %v1166, 0
        %1200 = vmatprep.subr.bf16.mxu0 0
        %1201 = vmatpush1.bf16.msra.mxu0 %v1171
        %1202 = vmatprep.subr.bf16.mxu0 0
        %1203 = vmatpush1.bf16.msra.mxu0 0
        %1204 = vmatprep.subr.bf16.mxu0 0
        %1205 = vmatpush1.bf16.msra.mxu0 0
        %1206 = vmatprep.subr.bf16.mxu0 0
        %1207 = vmatpush1.bf16.msra.mxu0 0
        %1208 = vmatprep.subr.bf16.mxu0 0
        %1209 = vmatpush1.bf16.msra.mxu0 0
        %1210 = vmatprep.subr.bf16.mxu0 0
        %1211 = vmatpush1.bf16.msra.mxu0 0
        %1212 = vmatprep.subr.bf16.mxu0 0
        %1213 = vmatpush1.bf16.msra.mxu0 0
        %1214 = vmatprep.subr.bf16.mxu0 0
        %1215 = vmatpush1.bf16.msra.mxu0 0
        %1216 = vmatprep.subr.bf16.mxu0 0
        %1217 = vmatpush1.bf16.msra.mxu0 0
        %1218 = vmatprep.subr.bf16.mxu0 0
        %1219 = vmatpush1.bf16.msra.mxu0 0
        %1220 = vmatprep.subr.bf16.mxu0 0
        %1221 = vmatpush1.bf16.msra.mxu0 0
        %1222 = vmatprep.subr.bf16.mxu0 0
        %1223 = vmatpush1.bf16.msra.mxu0 0
        %1224 = vmatprep.subr.bf16.mxu0 0
        %1225 = vmatpush1.bf16.msra.mxu0 0
        %1226 = vmatprep.subr.bf16.mxu0 0
        %1227 = vmatpush1.bf16.msra.mxu0 0
        %1228 = vmatprep.subr.bf16.mxu0 0
        %1229 = vmatpush1.bf16.msra.mxu0 0
        %1230 = vmatprep.subr.bf16.mxu0 0
        %1231 = vmatpush1.bf16.msra.mxu0 0
        %1232 = vmatprep.mubr.bf16.mxu0 0
        %1233 = vmatmul.mubr.bf16.gmra.mrb[0].mxu0 %v1174
        %v1234 = vpop.f32.mrb[0].mxu0
        %v1235 = vadd.f32 0.0, %v1234
        %v1236 = vpop.f32.mrb[0].mxu0
        %v1237 = vpop.f32.mrb[0].mxu0
        %v1238 = vadd.f32 0.0, %v1237
        %v1239 = vpop.f32.mrb[0].mxu0
        %1240 = vmatprep.mubr.bf16.mxu0 0
        %1241 = vmatmul.mubr.bf16.gmra.mrb[0].mxu0 %v1177
        %v1242 = vpop.f32.mrb[0].mxu0
        %v1243 = vadd.f32 0.0, %v1242
        %v1244 = vpop.f32.mrb[0].mxu0
        %v1245 = vpop.f32.mrb[0].mxu0
        %v1246 = vadd.f32 0.0, %v1245
        %v1247 = vpop.f32.mrb[0].mxu0
        %1248 = vmatprep.mubr.bf16.mxu0 0
        %1249 = vmatmul.mubr.bf16.gmra.mrb[0].mxu0 %v1180
        %v1250 = vpop.f32.mrb[0].mxu0
        %v1251 = vadd.f32 0.0, %v1250
        %v1252 = vpop.f32.mrb[0].mxu0
        %v1253 = vpop.f32.mrb[0].mxu0
        %v1254 = vadd.f32 0.0, %v1253
        %v1255 = vpop.f32.mrb[0].mxu0
        %1256 = vmatprep.mubr.bf16.mxu0 0
        %1257 = vmatmul.mubr.bf16.gmra.mrb[0].mxu0 %v1183
        %v1258 = vpop.f32.mrb[0].mxu0
        %v1259 = vadd.f32 0.0, %v1258
        %v1260 = vpop.f32.mrb[0].mxu0
        %v1261 = vpop.f32.mrb[0].mxu0
        %v1262 = vadd.f32 0.0, %v1261
        %v1263 = vpop.f32.mrb[0].mxu0
        %1264 = vmatprep.mubr.bf16.mxu0 0
        %1265 = vmatmul.mubr.bf16.gmra.mrb[0].mxu0 %v1186
        %v1266 = vpop.f32.mrb[0].mxu0
        %v1267 = vadd.f32 0.0, %v1266
        %v1268 = vpop.f32.mrb[0].mxu0
        %v1269 = vpop.f32.mrb[0].mxu0
        %v1270 = vadd.f32 0.0, %v1269
        %v1271 = vpop.f32.mrb[0].mxu0
        %1272 = vmatprep.mubr.bf16.mxu0 0
        %1273 = vmatmul.mubr.bf16.gmra.mrb[0].mxu0 %v1189
        %v1274 = vpop.f32.mrb[0].mxu0
        %v1275 = vadd.f32 0.0, %v1274
        %v1276 = vpop.f32.mrb[0].mxu0
        %v1277 = vpop.f32.mrb[0].mxu0
        %v1278 = vadd.f32 0.0, %v1277
        %v1279 = vpop.f32.mrb[0].mxu0
        %1280 = vmatprep.mubr.bf16.mxu0 0
        %1281 = vmatmul.mubr.bf16.gmra.mrb[0].mxu0 %v1192
        %v1282 = vpop.f32.mrb[0].mxu0
        %v1283 = vadd.f32 0.0, %v1282
        %v1284 = vpop.f32.mrb[0].mxu0
        %v1285 = vpop.f32.mrb[0].mxu0
        %v1286 = vadd.f32 0.0, %v1285
        %v1287 = vpop.f32.mrb[0].mxu0
        %1288 = vmatprep.mubr.bf16.mxu0 0
        %1289 = vmatmul.mubr.bf16.gmra.mrb[0].mxu0 %v1195
        %v1290 = vpop.f32.mrb[0].mxu0
        %v1291 = vadd.f32 0.0, %v1290
        %v1292 = vpop.f32.mrb[0].mxu0
        %v1293 = vpop.f32.mrb[0].mxu0
        %v1294 = vadd.f32 0.0, %v1293
        %v1295 = vpop.f32.mrb[0].mxu0
        %1296 = vmatprep.mubr.bf16.mxu0 0
        %1297 = vmatmul.mubr.bf16.gmra.mrb[0].mxu0 %v1198
        %v1298 = vpop.f32.mrb[0].mxu0
        %v1299 = vadd.f32 0.0, %v1298
        %v1300 = vpop.f32.mrb[0].mxu0
        %v1301 = vpop.f32.mrb[0].mxu0
        %v1302 = vadd.f32 0.0, %v1301
        %v1303 = vpop.f32.mrb[0].mxu0
        %1304 = vdwg.mxu0
        %v1305 = vadd.f32 %v1052, %v1235
        %v1306 = vadd.f32 %v1053, %v1238
        %v1307 = vadd.f32 %v1054, %v1243
        %v1308 = vadd.f32 %v1055, %v1246
        %v1309 = vadd.f32 %v1056, %v1251
        %v1310 = vadd.f32 %v1057, %v1254
        %v1311 = vadd.f32 %v1058, %v1259
        %v1312 = vadd.f32 %v1059, %v1262
        %v1313 = vadd.f32 %v1060, %v1267
        %v1314 = vadd.f32 %v1061, %v1270
        %v1315 = vadd.f32 %v1062, %v1275
        %v1316 = vadd.f32 %v1063, %v1278
        %v1317 = vadd.f32 %v1064, %v1283
        %v1318 = vadd.f32 %v1065, %v1286
        %v1319 = vadd.f32 %v1066, %v1291
        %v1320 = vadd.f32 %v1067, %v1294
        %v1321 = vadd.f32 %v1068, %v1299
        %v1322 = vadd.f32 %v1069, %v1302
        %s1323 = scalar_lea.vmem %s1, 40
        %v1324 = vld [vmem:[%s1323] sm:$0xf]
        %v1325 = vld [vmem:[%s1323 + $0x4] sm:$0xf]
        %v1326 = vpack.c.b16 %v867, %v866
        %v1327 = vpack.c.b16 %v869, %v868
        %v1328 = vpack.c.b16 %v871, %v870
        %v1329 = vpack.c.b16 %v873, %v872
        %v1330 = vpack.c.b16 %v875, %v874
        %v1331 = vpack.c.b16 %v877, %v876
        %v1332 = vpack.c.b16 %v879, %v878
        %v1333 = vpack.c.b16 %v881, %v880
        %v1334 = vpack.c.b16 %v1075, %v882
        %v1337 = vunpack.c.l.b16 %v1324
        %v1338 = vunpack.c.l.b16 %v1325
        %v1339 = vpack.c.b16 %v1338, %v1337
        %v1342 = vsel %vm379, %v1326, 0
        %v1345 = vsel %vm379, %v1327, 0
        %v1348 = vsel %vm379, %v1328, 0
        %v1351 = vsel %vm379, %v1329, 0
        %v1354 = vsel %vm379, %v1330, 0
        %v1357 = vsel %vm379, %v1331, 0
        %v1360 = vsel %vm379, %v1332, 0
        %v1363 = vsel %vm379, %v1333, 0
        %v1366 = vsel %vm379, %v1334, 0
        %1368 = vmatprep.subr.bf16.mxu0 0
        %1369 = vmatpush1.bf16.msra.mxu0 %v1339
        %1370 = vmatprep.subr.bf16.mxu0 0
        %1371 = vmatpush1.bf16.msra.mxu0 0
        %1372 = vmatprep.subr.bf16.mxu0 0
        %1373 = vmatpush1.bf16.msra.mxu0 0
        %1374 = vmatprep.subr.bf16.mxu0 0
        %1375 = vmatpush1.bf16.msra.mxu0 0
        %1376 = vmatprep.subr.bf16.mxu0 0
        %1377 = vmatpush1.bf16.msra.mxu0 0
        %1378 = vmatprep.subr.bf16.mxu0 0
        %1379 = vmatpush1.bf16.msra.mxu0 0
        %1380 = vmatprep.subr.bf16.mxu0 0
        %1381 = vmatpush1.bf16.msra.mxu0 0
        %1382 = vmatprep.subr.bf16.mxu0 0
        %1383 = vmatpush1.bf16.msra.mxu0 0
        %1384 = vmatprep.subr.bf16.mxu0 0
        %1385 = vmatpush1.bf16.msra.mxu0 0
        %1386 = vmatprep.subr.bf16.mxu0 0
        %1387 = vmatpush1.bf16.msra.mxu0 0
        %1388 = vmatprep.subr.bf16.mxu0 0
        %1389 = vmatpush1.bf16.msra.mxu0 0
        %1390 = vmatprep.subr.bf16.mxu0 0
        %1391 = vmatpush1.bf16.msra.mxu0 0
        %1392 = vmatprep.subr.bf16.mxu0 0
        %1393 = vmatpush1.bf16.msra.mxu0 0
        %1394 = vmatprep.subr.bf16.mxu0 0
        %1395 = vmatpush1.bf16.msra.mxu0 0
        %1396 = vmatprep.subr.bf16.mxu0 0
        %1397 = vmatpush1.bf16.msra.mxu0 0
        %1398 = vmatprep.subr.bf16.mxu0 0
        %1399 = vmatpush1.bf16.msra.mxu0 0
        %1400 = vmatprep.mubr.bf16.mxu0 0
        %1401 = vmatmul.mubr.bf16.gmra.mrb[0].mxu0 %v1342
        %v1402 = vpop.f32.mrb[0].mxu0
        %v1403 = vadd.f32 0.0, %v1402
        %v1404 = vpop.f32.mrb[0].mxu0
        %v1405 = vpop.f32.mrb[0].mxu0
        %v1406 = vadd.f32 0.0, %v1405
        %v1407 = vpop.f32.mrb[0].mxu0
        %1408 = vmatprep.mubr.bf16.mxu0 0
        %1409 = vmatmul.mubr.bf16.gmra.mrb[0].mxu0 %v1345
        %v1410 = vpop.f32.mrb[0].mxu0
        %v1411 = vadd.f32 0.0, %v1410
        %v1412 = vpop.f32.mrb[0].mxu0
        %v1413 = vpop.f32.mrb[0].mxu0
        %v1414 = vadd.f32 0.0, %v1413
        %v1415 = vpop.f32.mrb[0].mxu0
        %1416 = vmatprep.mubr.bf16.mxu0 0
        %1417 = vmatmul.mubr.bf16.gmra.mrb[0].mxu0 %v1348
        %v1418 = vpop.f32.mrb[0].mxu0
        %v1419 = vadd.f32 0.0, %v1418
        %v1420 = vpop.f32.mrb[0].mxu0
        %v1421 = vpop.f32.mrb[0].mxu0
        %v1422 = vadd.f32 0.0, %v1421
        %v1423 = vpop.f32.mrb[0].mxu0
        %1424 = vmatprep.mubr.bf16.mxu0 0
        %1425 = vmatmul.mubr.bf16.gmra.mrb[0].mxu0 %v1351
        %v1426 = vpop.f32.mrb[0].mxu0
        %v1427 = vadd.f32 0.0, %v1426
        %v1428 = vpop.f32.mrb[0].mxu0
        %v1429 = vpop.f32.mrb[0].mxu0
        %v1430 = vadd.f32 0.0, %v1429
        %v1431 = vpop.f32.mrb[0].mxu0
        %1432 = vmatprep.mubr.bf16.mxu0 0
        %1433 = vmatmul.mubr.bf16.gmra.mrb[0].mxu0 %v1354
        %v1434 = vpop.f32.mrb[0].mxu0
        %v1435 = vadd.f32 0.0, %v1434
        %v1436 = vpop.f32.mrb[0].mxu0
        %v1437 = vpop.f32.mrb[0].mxu0
        %v1438 = vadd.f32 0.0, %v1437
        %v1439 = vpop.f32.mrb[0].mxu0
        %1440 = vmatprep.mubr.bf16.mxu0 0
        %1441 = vmatmul.mubr.bf16.gmra.mrb[0].mxu0 %v1357
        %v1442 = vpop.f32.mrb[0].mxu0
        %v1443 = vadd.f32 0.0, %v1442
        %v1444 = vpop.f32.mrb[0].mxu0
        %v1445 = vpop.f32.mrb[0].mxu0
        %v1446 = vadd.f32 0.0, %v1445
        %v1447 = vpop.f32.mrb[0].mxu0
        %1448 = vmatprep.mubr.bf16.mxu0 0
        %1449 = vmatmul.mubr.bf16.gmra.mrb[0].mxu0 %v1360
        %v1450 = vpop.f32.mrb[0].mxu0
        %v1451 = vadd.f32 0.0, %v1450
        %v1452 = vpop.f32.mrb[0].mxu0
        %v1453 = vpop.f32.mrb[0].mxu0
        %v1454 = vadd.f32 0.0, %v1453
        %v1455 = vpop.f32.mrb[0].mxu0
        %1456 = vmatprep.mubr.bf16.mxu0 0
        %1457 = vmatmul.mubr.bf16.gmra.mrb[0].mxu0 %v1363
        %v1458 = vpop.f32.mrb[0].mxu0
        %v1459 = vadd.f32 0.0, %v1458
        %v1460 = vpop.f32.mrb[0].mxu0
        %v1461 = vpop.f32.mrb[0].mxu0
        %v1462 = vadd.f32 0.0, %v1461
        %v1463 = vpop.f32.mrb[0].mxu0
        %1464 = vmatprep.mubr.bf16.mxu0 0
        %1465 = vmatmul.mubr.bf16.gmra.mrb[0].mxu0 %v1366
        %v1466 = vpop.f32.mrb[0].mxu0
        %v1467 = vadd.f32 0.0, %v1466
        %v1468 = vpop.f32.mrb[0].mxu0
        %v1469 = vpop.f32.mrb[0].mxu0
        %v1470 = vadd.f32 0.0, %v1469
        %v1471 = vpop.f32.mrb[0].mxu0
        %1472 = vdwg.mxu0
        %v1473 = vadd.f32 %v1305, %v1403
        %v1474 = vadd.f32 %v1306, %v1406
        %v1475 = vadd.f32 %v1307, %v1411
        %v1476 = vadd.f32 %v1308, %v1414
        %v1477 = vadd.f32 %v1309, %v1419
        %v1478 = vadd.f32 %v1310, %v1422
        %v1479 = vadd.f32 %v1311, %v1427
        %v1480 = vadd.f32 %v1312, %v1430
        %v1481 = vadd.f32 %v1313, %v1435
        %v1482 = vadd.f32 %v1314, %v1438
        %v1483 = vadd.f32 %v1315, %v1443
        %v1484 = vadd.f32 %v1316, %v1446
        %v1485 = vadd.f32 %v1317, %v1451
        %v1486 = vadd.f32 %v1318, %v1454
        %v1487 = vadd.f32 %v1319, %v1459
        %v1488 = vadd.f32 %v1320, %v1462
        %v1489 = vadd.f32 %v1321, %v1467
        %v1490 = vadd.f32 %v1322, %v1470
        %v1491 = vld [vmem:[%s222 + $0xc] sm:$0xc]
        %v1492 = vld [vmem:[%s222 + $0x10] sm:$0xf]
        %v1493 = vld [vmem:[%s222 + $0x14] sm:$0xf]
        %v1494 = vld [vmem:[%s222 + $0x18] sm:$0xf]
        %v1495 = vld [vmem:[%s222 + $0x1c] sm:$0xf]
        %v1496 = vld [vmem:[%s222 + $0x20] sm:$0xf]
        %v1497 = vld [vmem:[%s222 + $0x24] sm:$0xf]
        %v1498 = vld [vmem:[%s222 + $0x28] sm:$0xf]
        %v1499 = vld [vmem:[%s222 + $0x2c] sm:$0xf]
        %v1500 = vld [vmem:[%s222 + $0x30] sm:$0xf]
        %v1501 = vld [vmem:[%s222 + $0x34] sm:$0xf]
        %v1502 = vld [vmem:[%s222 + $0x38] sm:$0xf]
        %v1503 = vld [vmem:[%s222 + $0x3c] sm:$0xf]
        %v1504 = vld [vmem:[%s222 + $0x40] sm:$0xf]
        %v1505 = vld [vmem:[%s222 + $0x44] sm:$0xf]
        %v1506 = vld [vmem:[%s222 + $0x48] sm:$0xf]
        %v1507 = vld [vmem:[%s222 + $0x4c] sm:$0xf]
        %v1508 = vld [vmem:[%s222 + $0x50] sm:$0xf]
        %v1509 = vld [vmem:[%s222 + $0x54] sm:$0x3]
        %s1510 = scalar_lea.vmem %s1, 48
        %v1511 = vld [vmem:[%s1510] sm:$0xf]
        %v1512 = vld [vmem:[%s1510 + $0x4] sm:$0xf]
        %v1532 = vunpack.c.l.b16 %v1491
        %v1533 = vunpack.c.l.b16 %v1492
        %v1534 = vunpack.c.l.b16 %v1493
        %v1535 = vunpack.c.l.b16 %v1494
        %v1536 = vunpack.c.l.b16 %v1495
        %v1537 = vunpack.c.l.b16 %v1496
        %v1538 = vunpack.c.l.b16 %v1497
        %v1539 = vunpack.c.l.b16 %v1498
        %v1540 = vunpack.c.l.b16 %v1499
        %v1541 = vunpack.c.l.b16 %v1500
        %v1542 = vunpack.c.l.b16 %v1501
        %v1543 = vunpack.c.l.b16 %v1502
        %v1544 = vunpack.c.l.b16 %v1503
        %v1545 = vunpack.c.l.b16 %v1504
        %v1546 = vunpack.c.l.b16 %v1505
        %v1547 = vunpack.c.l.b16 %v1506
        %v1548 = vunpack.c.l.b16 %v1507
        %v1549 = vunpack.c.l.b16 %v1508
        %v1550 = vunpack.c.l.b16 %v1509
        %v1551 = vpack.c.b16 %v1533, %v1532
        %v1552 = vpack.c.b16 %v1535, %v1534
        %v1553 = vpack.c.b16 %v1537, %v1536
        %v1554 = vpack.c.b16 %v1539, %v1538
        %v1555 = vpack.c.b16 %v1541, %v1540
        %v1556 = vpack.c.b16 %v1543, %v1542
        %v1557 = vpack.c.b16 %v1545, %v1544
        %v1558 = vpack.c.b16 %v1547, %v1546
        %v1559 = vpack.c.b16 %v1549, %v1548
        %v1560 = vpack.c.b16 %v1550, %v1550
        %vm1561 = vcmask 1045504
        %v1562 = vrot.slane %v1551, 2
        %v1563 = vrot.slane %v1552, 2
        %v1564 = vsel %vm1561, %v1562, %v1563
        %v1565 = vrot.slane %v1553, 2
        %v1566 = vsel %vm1561, %v1563, %v1565
        %v1567 = vrot.slane %v1554, 2
        %v1568 = vsel %vm1561, %v1565, %v1567
        %v1569 = vrot.slane %v1555, 2
        %v1570 = vsel %vm1561, %v1567, %v1569
        %v1571 = vrot.slane %v1556, 2
        %v1572 = vsel %vm1561, %v1569, %v1571
        %v1573 = vrot.slane %v1557, 2
        %v1574 = vsel %vm1561, %v1571, %v1573
        %v1575 = vrot.slane %v1558, 2
        %v1576 = vsel %vm1561, %v1573, %v1575
        %v1577 = vrot.slane %v1559, 2
        %v1578 = vsel %vm1561, %v1575, %v1577
        %v1579 = vrot.slane %v1560, 2
        %v1580 = vsel %vm1561, %v1577, %v1579
        %v1583 = vunpack.c.l.b16 %v1511
        %v1584 = vunpack.c.l.b16 %v1512
        %v1585 = vpack.c.b16 %v1584, %v1583
        %v1588 = vsel %vm379, %v1564, 0
        %v1591 = vsel %vm379, %v1566, 0
        %v1594 = vsel %vm379, %v1568, 0
        %v1597 = vsel %vm379, %v1570, 0
        %v1600 = vsel %vm379, %v1572, 0
        %v1603 = vsel %vm379, %v1574, 0
        %v1606 = vsel %vm379, %v1576, 0
        %v1609 = vsel %vm379, %v1578, 0
        %v1612 = vsel %vm379, %v1580, 0
        %1614 = vmatprep.subr.bf16.mxu0 0
        %1615 = vmatpush1.bf16.msra.mxu0 %v1585
        %1616 = vmatprep.subr.bf16.mxu0 0
        %1617 = vmatpush1.bf16.msra.mxu0 0
        %1618 = vmatprep.subr.bf16.mxu0 0
        %1619 = vmatpush1.bf16.msra.mxu0 0
        %1620 = vmatprep.subr.bf16.mxu0 0
        %1621 = vmatpush1.bf16.msra.mxu0 0
        %1622 = vmatprep.subr.bf16.mxu0 0
        %1623 = vmatpush1.bf16.msra.mxu0 0
        %1624 = vmatprep.subr.bf16.mxu0 0
        %1625 = vmatpush1.bf16.msra.mxu0 0
        %1626 = vmatprep.subr.bf16.mxu0 0
        %1627 = vmatpush1.bf16.msra.mxu0 0
        %1628 = vmatprep.subr.bf16.mxu0 0
        %1629 = vmatpush1.bf16.msra.mxu0 0
        %1630 = vmatprep.subr.bf16.mxu0 0
        %1631 = vmatpush1.bf16.msra.mxu0 0
        %1632 = vmatprep.subr.bf16.mxu0 0
        %1633 = vmatpush1.bf16.msra.mxu0 0
        %1634 = vmatprep.subr.bf16.mxu0 0
        %1635 = vmatpush1.bf16.msra.mxu0 0
        %1636 = vmatprep.subr.bf16.mxu0 0
        %1637 = vmatpush1.bf16.msra.mxu0 0
        %1638 = vmatprep.subr.bf16.mxu0 0
        %1639 = vmatpush1.bf16.msra.mxu0 0
        %1640 = vmatprep.subr.bf16.mxu0 0
        %1641 = vmatpush1.bf16.msra.mxu0 0
        %1642 = vmatprep.subr.bf16.mxu0 0
        %1643 = vmatpush1.bf16.msra.mxu0 0
        %1644 = vmatprep.subr.bf16.mxu0 0
        %1645 = vmatpush1.bf16.msra.mxu0 0
        %1646 = vmatprep.mubr.bf16.mxu0 0
        %1647 = vmatmul.mubr.bf16.gmra.mrb[0].mxu0 %v1588
        %v1648 = vpop.f32.mrb[0].mxu0
        %v1649 = vadd.f32 0.0, %v1648
        %v1650 = vpop.f32.mrb[0].mxu0
        %v1651 = vpop.f32.mrb[0].mxu0
        %v1652 = vadd.f32 0.0, %v1651
        %v1653 = vpop.f32.mrb[0].mxu0
        %1654 = vmatprep.mubr.bf16.mxu0 0
        %1655 = vmatmul.mubr.bf16.gmra.mrb[0].mxu0 %v1591
        %v1656 = vpop.f32.mrb[0].mxu0
        %v1657 = vadd.f32 0.0, %v1656
        %v1658 = vpop.f32.mrb[0].mxu0
        %v1659 = vpop.f32.mrb[0].mxu0
        %v1660 = vadd.f32 0.0, %v1659
        %v1661 = vpop.f32.mrb[0].mxu0
        %1662 = vmatprep.mubr.bf16.mxu0 0
        %1663 = vmatmul.mubr.bf16.gmra.mrb[0].mxu0 %v1594
        %v1664 = vpop.f32.mrb[0].mxu0
        %v1665 = vadd.f32 0.0, %v1664
        %v1666 = vpop.f32.mrb[0].mxu0
        %v1667 = vpop.f32.mrb[0].mxu0
        %v1668 = vadd.f32 0.0, %v1667
        %v1669 = vpop.f32.mrb[0].mxu0
        %1670 = vmatprep.mubr.bf16.mxu0 0
        %1671 = vmatmul.mubr.bf16.gmra.mrb[0].mxu0 %v1597
        %v1672 = vpop.f32.mrb[0].mxu0
        %v1673 = vadd.f32 0.0, %v1672
        %v1674 = vpop.f32.mrb[0].mxu0
        %v1675 = vpop.f32.mrb[0].mxu0
        %v1676 = vadd.f32 0.0, %v1675
        %v1677 = vpop.f32.mrb[0].mxu0
        %1678 = vmatprep.mubr.bf16.mxu0 0
        %1679 = vmatmul.mubr.bf16.gmra.mrb[0].mxu0 %v1600
        %v1680 = vpop.f32.mrb[0].mxu0
        %v1681 = vadd.f32 0.0, %v1680
        %v1682 = vpop.f32.mrb[0].mxu0
        %v1683 = vpop.f32.mrb[0].mxu0
        %v1684 = vadd.f32 0.0, %v1683
        %v1685 = vpop.f32.mrb[0].mxu0
        %1686 = vmatprep.mubr.bf16.mxu0 0
        %1687 = vmatmul.mubr.bf16.gmra.mrb[0].mxu0 %v1603
        %v1688 = vpop.f32.mrb[0].mxu0
        %v1689 = vadd.f32 0.0, %v1688
        %v1690 = vpop.f32.mrb[0].mxu0
        %v1691 = vpop.f32.mrb[0].mxu0
        %v1692 = vadd.f32 0.0, %v1691
        %v1693 = vpop.f32.mrb[0].mxu0
        %1694 = vmatprep.mubr.bf16.mxu0 0
        %1695 = vmatmul.mubr.bf16.gmra.mrb[0].mxu0 %v1606
        %v1696 = vpop.f32.mrb[0].mxu0
        %v1697 = vadd.f32 0.0, %v1696
        %v1698 = vpop.f32.mrb[0].mxu0
        %v1699 = vpop.f32.mrb[0].mxu0
        %v1700 = vadd.f32 0.0, %v1699
        %v1701 = vpop.f32.mrb[0].mxu0
        %1702 = vmatprep.mubr.bf16.mxu0 0
        %1703 = vmatmul.mubr.bf16.gmra.mrb[0].mxu0 %v1609
        %v1704 = vpop.f32.mrb[0].mxu0
        %v1705 = vadd.f32 0.0, %v1704
        %v1706 = vpop.f32.mrb[0].mxu0
        %v1707 = vpop.f32.mrb[0].mxu0
        %v1708 = vadd.f32 0.0, %v1707
        %v1709 = vpop.f32.mrb[0].mxu0
        %1710 = vmatprep.mubr.bf16.mxu0 0
        %1711 = vmatmul.mubr.bf16.gmra.mrb[0].mxu0 %v1612
        %v1712 = vpop.f32.mrb[0].mxu0
        %v1713 = vadd.f32 0.0, %v1712
        %v1714 = vpop.f32.mrb[0].mxu0
        %v1715 = vpop.f32.mrb[0].mxu0
        %v1716 = vadd.f32 0.0, %v1715
        %v1717 = vpop.f32.mrb[0].mxu0
        %1718 = vdwg.mxu0
        %v1719 = vadd.f32 %v1473, %v1649
        %v1720 = vadd.f32 %v1474, %v1652
        %v1721 = vadd.f32 %v1475, %v1657
        %v1722 = vadd.f32 %v1476, %v1660
        %v1723 = vadd.f32 %v1477, %v1665
        %v1724 = vadd.f32 %v1478, %v1668
        %v1725 = vadd.f32 %v1479, %v1673
        %v1726 = vadd.f32 %v1480, %v1676
        %v1727 = vadd.f32 %v1481, %v1681
        %v1728 = vadd.f32 %v1482, %v1684
        %v1729 = vadd.f32 %v1483, %v1689
        %v1730 = vadd.f32 %v1484, %v1692
        %v1731 = vadd.f32 %v1485, %v1697
        %v1732 = vadd.f32 %v1486, %v1700
        %v1733 = vadd.f32 %v1487, %v1705
        %v1734 = vadd.f32 %v1488, %v1708
        %v1735 = vadd.f32 %v1489, %v1713
        %v1736 = vadd.f32 %v1490, %v1716
        %v1737 = vld [vmem:[%s222 + $0x54] sm:$0x7]
        %s1738 = scalar_lea.vmem %s1, 56
        %v1739 = vld [vmem:[%s1738] sm:$0xf]
        %v1740 = vld [vmem:[%s1738 + $0x4] sm:$0xf]
        %v1742 = vunpack.c.l.b16 %v1737
        %v1743 = vpack.c.b16 %v1742, %v1742
        %vm1744 = vsmask.f32 5376
        %v1746 = vshrl.u32 %v1551, 16
        %v1748 = vrot.slane %v1746, 2
        %v1749 = vshll.u32 %v1551, 16
        %v1751 = vrot.slane %v1749, 3
        %v1752 = vor.u32 %v1748, %v1751
        %v1754 = vshrl.u32 %v1552, 16
        %v1756 = vrot.slane %v1754, 2
        %v1757 = vshll.u32 %v1552, 16
        %v1759 = vrot.slane %v1757, 3
        %v1760 = vor.u32 %v1756, %v1759
        %v1761 = vsel %vm1744, %v1752, %v1760
        %v1763 = vshrl.u32 %v1553, 16
        %v1765 = vrot.slane %v1763, 2
        %v1766 = vshll.u32 %v1553, 16
        %v1768 = vrot.slane %v1766, 3
        %v1769 = vor.u32 %v1765, %v1768
        %v1770 = vsel %vm1744, %v1760, %v1769
        %v1772 = vshrl.u32 %v1554, 16
        %v1774 = vrot.slane %v1772, 2
        %v1775 = vshll.u32 %v1554, 16
        %v1777 = vrot.slane %v1775, 3
        %v1778 = vor.u32 %v1774, %v1777
        %v1779 = vsel %vm1744, %v1769, %v1778
        %v1781 = vshrl.u32 %v1555, 16
        %v1783 = vrot.slane %v1781, 2
        %v1784 = vshll.u32 %v1555, 16
        %v1786 = vrot.slane %v1784, 3
        %v1787 = vor.u32 %v1783, %v1786
        %v1788 = vsel %vm1744, %v1778, %v1787
        %v1790 = vshrl.u32 %v1556, 16
        %v1792 = vrot.slane %v1790, 2
        %v1793 = vshll.u32 %v1556, 16
        %v1795 = vrot.slane %v1793, 3
        %v1796 = vor.u32 %v1792, %v1795
        %v1797 = vsel %vm1744, %v1787, %v1796
        %v1799 = vshrl.u32 %v1557, 16
        %v1801 = vrot.slane %v1799, 2
        %v1802 = vshll.u32 %v1557, 16
        %v1804 = vrot.slane %v1802, 3
        %v1805 = vor.u32 %v1801, %v1804
        %v1806 = vsel %vm1744, %v1796, %v1805
        %v1808 = vshrl.u32 %v1558, 16
        %v1810 = vrot.slane %v1808, 2
        %v1811 = vshll.u32 %v1558, 16
        %v1813 = vrot.slane %v1811, 3
        %v1814 = vor.u32 %v1810, %v1813
        %v1815 = vsel %vm1744, %v1805, %v1814
        %v1817 = vshrl.u32 %v1559, 16
        %v1819 = vrot.slane %v1817, 2
        %v1820 = vshll.u32 %v1559, 16
        %v1822 = vrot.slane %v1820, 3
        %v1823 = vor.u32 %v1819, %v1822
        %v1824 = vsel %vm1744, %v1814, %v1823
        %v1826 = vshrl.u32 %v1743, 16
        %v1828 = vrot.slane %v1826, 2
        %v1829 = vshll.u32 %v1743, 16
        %v1831 = vrot.slane %v1829, 3
        %v1832 = vor.u32 %v1828, %v1831
        %v1833 = vsel %vm1744, %v1823, %v1832
        %v1836 = vunpack.c.l.b16 %v1739
        %v1837 = vunpack.c.l.b16 %v1740
        %v1838 = vpack.c.b16 %v1837, %v1836
        %v1841 = vsel %vm379, %v1761, 0
        %v1844 = vsel %vm379, %v1770, 0
        %v1847 = vsel %vm379, %v1779, 0
        %v1850 = vsel %vm379, %v1788, 0
        %v1853 = vsel %vm379, %v1797, 0
        %v1856 = vsel %vm379, %v1806, 0
        %v1859 = vsel %vm379, %v1815, 0
        %v1862 = vsel %vm379, %v1824, 0
        %v1865 = vsel %vm379, %v1833, 0
        %1867 = vmatprep.subr.bf16.mxu0 0
        %1868 = vmatpush1.bf16.msra.mxu0 %v1838
        %1869 = vmatprep.subr.bf16.mxu0 0
        %1870 = vmatpush1.bf16.msra.mxu0 0
        %1871 = vmatprep.subr.bf16.mxu0 0
        %1872 = vmatpush1.bf16.msra.mxu0 0
        %1873 = vmatprep.subr.bf16.mxu0 0
        %1874 = vmatpush1.bf16.msra.mxu0 0
        %1875 = vmatprep.subr.bf16.mxu0 0
        %1876 = vmatpush1.bf16.msra.mxu0 0
        %1877 = vmatprep.subr.bf16.mxu0 0
        %1878 = vmatpush1.bf16.msra.mxu0 0
        %1879 = vmatprep.subr.bf16.mxu0 0
        %1880 = vmatpush1.bf16.msra.mxu0 0
        %1881 = vmatprep.subr.bf16.mxu0 0
        %1882 = vmatpush1.bf16.msra.mxu0 0
        %1883 = vmatprep.subr.bf16.mxu0 0
        %1884 = vmatpush1.bf16.msra.mxu0 0
        %1885 = vmatprep.subr.bf16.mxu0 0
        %1886 = vmatpush1.bf16.msra.mxu0 0
        %1887 = vmatprep.subr.bf16.mxu0 0
        %1888 = vmatpush1.bf16.msra.mxu0 0
        %1889 = vmatprep.subr.bf16.mxu0 0
        %1890 = vmatpush1.bf16.msra.mxu0 0
        %1891 = vmatprep.subr.bf16.mxu0 0
        %1892 = vmatpush1.bf16.msra.mxu0 0
        %1893 = vmatprep.subr.bf16.mxu0 0
        %1894 = vmatpush1.bf16.msra.mxu0 0
        %1895 = vmatprep.subr.bf16.mxu0 0
        %1896 = vmatpush1.bf16.msra.mxu0 0
        %1897 = vmatprep.subr.bf16.mxu0 0
        %1898 = vmatpush1.bf16.msra.mxu0 0
        %1899 = vmatprep.mubr.bf16.mxu0 0
        %1900 = vmatmul.mubr.bf16.gmra.mrb[0].mxu0 %v1841
        %v1901 = vpop.f32.mrb[0].mxu0
        %v1902 = vadd.f32 0.0, %v1901
        %v1903 = vpop.f32.mrb[0].mxu0
        %v1904 = vpop.f32.mrb[0].mxu0
        %v1905 = vadd.f32 0.0, %v1904
        %v1906 = vpop.f32.mrb[0].mxu0
        %1907 = vmatprep.mubr.bf16.mxu0 0
        %1908 = vmatmul.mubr.bf16.gmra.mrb[0].mxu0 %v1844
        %v1909 = vpop.f32.mrb[0].mxu0
        %v1910 = vadd.f32 0.0, %v1909
        %v1911 = vpop.f32.mrb[0].mxu0
        %v1912 = vpop.f32.mrb[0].mxu0
        %v1913 = vadd.f32 0.0, %v1912
        %v1914 = vpop.f32.mrb[0].mxu0
        %1915 = vmatprep.mubr.bf16.mxu0 0
        %1916 = vmatmul.mubr.bf16.gmra.mrb[0].mxu0 %v1847
        %v1917 = vpop.f32.mrb[0].mxu0
        %v1918 = vadd.f32 0.0, %v1917
        %v1919 = vpop.f32.mrb[0].mxu0
        %v1920 = vpop.f32.mrb[0].mxu0
        %v1921 = vadd.f32 0.0, %v1920
        %v1922 = vpop.f32.mrb[0].mxu0
        %1923 = vmatprep.mubr.bf16.mxu0 0
        %1924 = vmatmul.mubr.bf16.gmra.mrb[0].mxu0 %v1850
        %v1925 = vpop.f32.mrb[0].mxu0
        %v1926 = vadd.f32 0.0, %v1925
        %v1927 = vpop.f32.mrb[0].mxu0
        %v1928 = vpop.f32.mrb[0].mxu0
        %v1929 = vadd.f32 0.0, %v1928
        %v1930 = vpop.f32.mrb[0].mxu0
        %1931 = vmatprep.mubr.bf16.mxu0 0
        %1932 = vmatmul.mubr.bf16.gmra.mrb[0].mxu0 %v1853
        %v1933 = vpop.f32.mrb[0].mxu0
        %v1934 = vadd.f32 0.0, %v1933
        %v1935 = vpop.f32.mrb[0].mxu0
        %v1936 = vpop.f32.mrb[0].mxu0
        %v1937 = vadd.f32 0.0, %v1936
        %v1938 = vpop.f32.mrb[0].mxu0
        %1939 = vmatprep.mubr.bf16.mxu0 0
        %1940 = vmatmul.mubr.bf16.gmra.mrb[0].mxu0 %v1856
        %v1941 = vpop.f32.mrb[0].mxu0
        %v1942 = vadd.f32 0.0, %v1941
        %v1943 = vpop.f32.mrb[0].mxu0
        %v1944 = vpop.f32.mrb[0].mxu0
        %v1945 = vadd.f32 0.0, %v1944
        %v1946 = vpop.f32.mrb[0].mxu0
        %1947 = vmatprep.mubr.bf16.mxu0 0
        %1948 = vmatmul.mubr.bf16.gmra.mrb[0].mxu0 %v1859
        %v1949 = vpop.f32.mrb[0].mxu0
        %v1950 = vadd.f32 0.0, %v1949
        %v1951 = vpop.f32.mrb[0].mxu0
        %v1952 = vpop.f32.mrb[0].mxu0
        %v1953 = vadd.f32 0.0, %v1952
        %v1954 = vpop.f32.mrb[0].mxu0
        %1955 = vmatprep.mubr.bf16.mxu0 0
        %1956 = vmatmul.mubr.bf16.gmra.mrb[0].mxu0 %v1862
        %v1957 = vpop.f32.mrb[0].mxu0
        %v1958 = vadd.f32 0.0, %v1957
        %v1959 = vpop.f32.mrb[0].mxu0
        %v1960 = vpop.f32.mrb[0].mxu0
        %v1961 = vadd.f32 0.0, %v1960
        %v1962 = vpop.f32.mrb[0].mxu0
        %1963 = vmatprep.mubr.bf16.mxu0 0
        %1964 = vmatmul.mubr.bf16.gmra.mrb[0].mxu0 %v1865
        %v1965 = vpop.f32.mrb[0].mxu0
        %v1966 = vadd.f32 0.0, %v1965
        %v1967 = vpop.f32.mrb[0].mxu0
        %v1968 = vpop.f32.mrb[0].mxu0
        %v1969 = vadd.f32 0.0, %v1968
        %v1970 = vpop.f32.mrb[0].mxu0
        %1971 = vdwg.mxu0
        %v1972 = vadd.f32 %v1719, %v1902
        %v1973 = vadd.f32 %v1720, %v1905
        %v1974 = vadd.f32 %v1721, %v1910
        %v1975 = vadd.f32 %v1722, %v1913
        %v1976 = vadd.f32 %v1723, %v1918
        %v1977 = vadd.f32 %v1724, %v1921
        %v1978 = vadd.f32 %v1725, %v1926
        %v1979 = vadd.f32 %v1726, %v1929
        %v1980 = vadd.f32 %v1727, %v1934
        %v1981 = vadd.f32 %v1728, %v1937
        %v1982 = vadd.f32 %v1729, %v1942
        %v1983 = vadd.f32 %v1730, %v1945
        %v1984 = vadd.f32 %v1731, %v1950
        %v1985 = vadd.f32 %v1732, %v1953
        %v1986 = vadd.f32 %v1733, %v1958
        %v1987 = vadd.f32 %v1734, %v1961
        %v1988 = vadd.f32 %v1735, %v1966
        %v1989 = vadd.f32 %v1736, %v1969
        %v1990 = vld [vmem:[%s222 + $0xc] sm:$0x8]
        %s1991 = scalar_lea.vmem %s1, 64
        %v1992 = vld [vmem:[%s1991] sm:$0xf]
        %v1993 = vld [vmem:[%s1991 + $0x4] sm:$0xf]
        %v1995 = vunpack.c.l.b16 %v1990
        %v1996 = vpack.c.b16 %v1533, %v1995
        %v1997 = vrot.slane %v1996, 3
        %v1998 = vrot.slane %v1552, 3
        %v1999 = vsel %vm894, %v1997, %v1998
        %v2000 = vrot.slane %v1553, 3
        %v2001 = vsel %vm894, %v1998, %v2000
        %v2002 = vrot.slane %v1554, 3
        %v2003 = vsel %vm894, %v2000, %v2002
        %v2004 = vrot.slane %v1555, 3
        %v2005 = vsel %vm894, %v2002, %v2004
        %v2006 = vrot.slane %v1556, 3
        %v2007 = vsel %vm894, %v2004, %v2006
        %v2008 = vrot.slane %v1557, 3
        %v2009 = vsel %vm894, %v2006, %v2008
        %v2010 = vrot.slane %v1558, 3
        %v2011 = vsel %vm894, %v2008, %v2010
        %v2012 = vrot.slane %v1559, 3
        %v2013 = vsel %vm894, %v2010, %v2012
        %v2014 = vrot.slane %v1743, 3
        %v2015 = vsel %vm894, %v2012, %v2014
        %v2018 = vunpack.c.l.b16 %v1992
        %v2019 = vunpack.c.l.b16 %v1993
        %v2020 = vpack.c.b16 %v2019, %v2018
        %v2023 = vsel %vm379, %v1999, 0
        %v2026 = vsel %vm379, %v2001, 0
        %v2029 = vsel %vm379, %v2003, 0
        %v2032 = vsel %vm379, %v2005, 0
        %v2035 = vsel %vm379, %v2007, 0
        %v2038 = vsel %vm379, %v2009, 0
        %v2041 = vsel %vm379, %v2011, 0
        %v2044 = vsel %vm379, %v2013, 0
        %v2047 = vsel %vm379, %v2015, 0
        %2049 = vmatprep.subr.bf16.mxu0 0
        %2050 = vmatpush1.bf16.msra.mxu0 %v2020
        %2051 = vmatprep.subr.bf16.mxu0 0
        %2052 = vmatpush1.bf16.msra.mxu0 0
        %2053 = vmatprep.subr.bf16.mxu0 0
        %2054 = vmatpush1.bf16.msra.mxu0 0
        %2055 = vmatprep.subr.bf16.mxu0 0
        %2056 = vmatpush1.bf16.msra.mxu0 0
        %2057 = vmatprep.subr.bf16.mxu0 0
        %2058 = vmatpush1.bf16.msra.mxu0 0
        %2059 = vmatprep.subr.bf16.mxu0 0
        %2060 = vmatpush1.bf16.msra.mxu0 0
        %2061 = vmatprep.subr.bf16.mxu0 0
        %2062 = vmatpush1.bf16.msra.mxu0 0
        %2063 = vmatprep.subr.bf16.mxu0 0
        %2064 = vmatpush1.bf16.msra.mxu0 0
        %2065 = vmatprep.subr.bf16.mxu0 0
        %2066 = vmatpush1.bf16.msra.mxu0 0
        %2067 = vmatprep.subr.bf16.mxu0 0
        %2068 = vmatpush1.bf16.msra.mxu0 0
        %2069 = vmatprep.subr.bf16.mxu0 0
        %2070 = vmatpush1.bf16.msra.mxu0 0
        %2071 = vmatprep.subr.bf16.mxu0 0
        %2072 = vmatpush1.bf16.msra.mxu0 0
        %2073 = vmatprep.subr.bf16.mxu0 0
        %2074 = vmatpush1.bf16.msra.mxu0 0
        %2075 = vmatprep.subr.bf16.mxu0 0
        %2076 = vmatpush1.bf16.msra.mxu0 0
        %2077 = vmatprep.subr.bf16.mxu0 0
        %2078 = vmatpush1.bf16.msra.mxu0 0
        %2079 = vmatprep.subr.bf16.mxu0 0
        %2080 = vmatpush1.bf16.msra.mxu0 0
        %2081 = vmatprep.mubr.bf16.mxu0 0
        %2082 = vmatmul.mubr.bf16.gmra.mrb[0].mxu0 %v2023
        %v2083 = vpop.f32.mrb[0].mxu0
        %v2084 = vadd.f32 0.0, %v2083
        %v2085 = vpop.f32.mrb[0].mxu0
        %v2086 = vpop.f32.mrb[0].mxu0
        %v2087 = vadd.f32 0.0, %v2086
        %v2088 = vpop.f32.mrb[0].mxu0
        %2089 = vmatprep.mubr.bf16.mxu0 0
        %2090 = vmatmul.mubr.bf16.gmra.mrb[0].mxu0 %v2026
        %v2091 = vpop.f32.mrb[0].mxu0
        %v2092 = vadd.f32 0.0, %v2091
        %v2093 = vpop.f32.mrb[0].mxu0
        %v2094 = vpop.f32.mrb[0].mxu0
        %v2095 = vadd.f32 0.0, %v2094
        %v2096 = vpop.f32.mrb[0].mxu0
        %2097 = vmatprep.mubr.bf16.mxu0 0
        %2098 = vmatmul.mubr.bf16.gmra.mrb[0].mxu0 %v2029
        %v2099 = vpop.f32.mrb[0].mxu0
        %v2100 = vadd.f32 0.0, %v2099
        %v2101 = vpop.f32.mrb[0].mxu0
        %v2102 = vpop.f32.mrb[0].mxu0
        %v2103 = vadd.f32 0.0, %v2102
        %v2104 = vpop.f32.mrb[0].mxu0
        %2105 = vmatprep.mubr.bf16.mxu0 0
        %2106 = vmatmul.mubr.bf16.gmra.mrb[0].mxu0 %v2032
        %v2107 = vpop.f32.mrb[0].mxu0
        %v2108 = vadd.f32 0.0, %v2107
        %v2109 = vpop.f32.mrb[0].mxu0
        %v2110 = vpop.f32.mrb[0].mxu0
        %v2111 = vadd.f32 0.0, %v2110
        %v2112 = vpop.f32.mrb[0].mxu0
        %2113 = vmatprep.mubr.bf16.mxu0 0
        %2114 = vmatmul.mubr.bf16.gmra.mrb[0].mxu0 %v2035
        %v2115 = vpop.f32.mrb[0].mxu0
        %v2116 = vadd.f32 0.0, %v2115
        %v2117 = vpop.f32.mrb[0].mxu0
        %v2118 = vpop.f32.mrb[0].mxu0
        %v2119 = vadd.f32 0.0, %v2118
        %v2120 = vpop.f32.mrb[0].mxu0
        %2121 = vmatprep.mubr.bf16.mxu0 0
        %2122 = vmatmul.mubr.bf16.gmra.mrb[0].mxu0 %v2038
        %v2123 = vpop.f32.mrb[0].mxu0
        %v2124 = vadd.f32 0.0, %v2123
        %v2125 = vpop.f32.mrb[0].mxu0
        %v2126 = vpop.f32.mrb[0].mxu0
        %v2127 = vadd.f32 0.0, %v2126
        %v2128 = vpop.f32.mrb[0].mxu0
        %2129 = vmatprep.mubr.bf16.mxu0 0
        %2130 = vmatmul.mubr.bf16.gmra.mrb[0].mxu0 %v2041
        %v2131 = vpop.f32.mrb[0].mxu0
        %v2132 = vadd.f32 0.0, %v2131
        %v2133 = vpop.f32.mrb[0].mxu0
        %v2134 = vpop.f32.mrb[0].mxu0
        %v2135 = vadd.f32 0.0, %v2134
        %v2136 = vpop.f32.mrb[0].mxu0
        %2137 = vmatprep.mubr.bf16.mxu0 0
        %2138 = vmatmul.mubr.bf16.gmra.mrb[0].mxu0 %v2044
        %v2139 = vpop.f32.mrb[0].mxu0
        %v2140 = vadd.f32 0.0, %v2139
        %v2141 = vpop.f32.mrb[0].mxu0
        %v2142 = vpop.f32.mrb[0].mxu0
        %v2143 = vadd.f32 0.0, %v2142
        %v2144 = vpop.f32.mrb[0].mxu0
        %2145 = vmatprep.mubr.bf16.mxu0 0
        %2146 = vmatmul.mubr.bf16.gmra.mrb[0].mxu0 %v2047
        %v2147 = vpop.f32.mrb[0].mxu0
        %v2148 = vadd.f32 0.0, %v2147
        %v2149 = vpop.f32.mrb[0].mxu0
        %v2150 = vpop.f32.mrb[0].mxu0
        %v2151 = vadd.f32 0.0, %v2150
        %v2152 = vpop.f32.mrb[0].mxu0
        %2153 = vdwg.mxu0
        %v2154 = vadd.f32 %v1972, %v2084
        %v2155 = vadd.f32 %v1973, %v2087
        %v2156 = vadd.f32 %v1974, %v2092
        %v2157 = vadd.f32 %v1975, %v2095
        %v2158 = vadd.f32 %v1976, %v2100
        %v2159 = vadd.f32 %v1977, %v2103
        %v2160 = vadd.f32 %v1978, %v2108
        %v2161 = vadd.f32 %v1979, %v2111
        %v2162 = vadd.f32 %v1980, %v2116
        %v2163 = vadd.f32 %v1981, %v2119
        %v2164 = vadd.f32 %v1982, %v2124
        %v2165 = vadd.f32 %v1983, %v2127
        %v2166 = vadd.f32 %v1984, %v2132
        %v2167 = vadd.f32 %v1985, %v2135
        %v2168 = vadd.f32 %v1986, %v2140
        %v2169 = vadd.f32 %v1987, %v2143
        %v2170 = vadd.f32 %v1988, %v2148
        %v2171 = vadd.f32 %v1989, %v2151
        %v2172 = vld [vmem:[%s2] sm:$0x1]
        %v2174 = vlaneseq
        %v2175 = vshrl.u32 %v2174, 7
        %v2176 = vsub.s32 0, %v2175
        %v2177 = vrot.slane %v2172, %v2176
        %v2179 = vadd.f32 %v2154, %v2177
        %v2180 = vadd.f32 %v2155, %v2177
        %v2181 = vadd.f32 %v2156, %v2177
        %v2182 = vadd.f32 %v2157, %v2177
        %v2183 = vadd.f32 %v2158, %v2177
        %v2184 = vadd.f32 %v2159, %v2177
        %v2185 = vadd.f32 %v2160, %v2177
        %v2186 = vadd.f32 %v2161, %v2177
        %v2187 = vadd.f32 %v2162, %v2177
        %v2188 = vadd.f32 %v2163, %v2177
        %v2189 = vadd.f32 %v2164, %v2177
        %v2190 = vadd.f32 %v2165, %v2177
        %v2191 = vadd.f32 %v2166, %v2177
        %v2192 = vadd.f32 %v2167, %v2177
        %v2193 = vadd.f32 %v2168, %v2177
        %v2194 = vadd.f32 %v2169, %v2177
        %v2195 = vadd.f32 %v2170, %v2177
        %v2196 = vadd.f32 %v2171, %v2177
        %v2197 = vmax.f32 %v2179, 0.0
        %v2198 = vmax.f32 %v2180, 0.0
        %v2199 = vmax.f32 %v2181, 0.0
        %v2200 = vmax.f32 %v2182, 0.0
        %v2201 = vmax.f32 %v2183, 0.0
        %v2202 = vmax.f32 %v2184, 0.0
        %v2203 = vmax.f32 %v2185, 0.0
        %v2204 = vmax.f32 %v2186, 0.0
        %v2205 = vmax.f32 %v2187, 0.0
        %v2206 = vmax.f32 %v2188, 0.0
        %v2207 = vmax.f32 %v2189, 0.0
        %v2208 = vmax.f32 %v2190, 0.0
        %v2209 = vmax.f32 %v2191, 0.0
        %v2210 = vmax.f32 %v2192, 0.0
        %v2211 = vmax.f32 %v2193, 0.0
        %v2212 = vmax.f32 %v2194, 0.0
        %v2213 = vmax.f32 %v2195, 0.0
        %v2214 = vmax.f32 %v2196, 0.0
        %v2215 = vpack.c.bf16 %v2198, %v2197
        %v2216 = vpack.c.bf16 %v2200, %v2199
        %v2217 = vpack.c.bf16 %v2202, %v2201
        %v2218 = vpack.c.bf16 %v2204, %v2203
        %v2219 = vpack.c.bf16 %v2206, %v2205
        %v2220 = vpack.c.bf16 %v2208, %v2207
        %v2221 = vpack.c.bf16 %v2210, %v2209
        %v2222 = vpack.c.bf16 %v2212, %v2211
        %v2223 = vpack.c.bf16 %v2214, %v2213
        %v2224 = vld [vmem:[%s3] sm:$0xf]
        %v2225 = vld [vmem:[%s3 + $0x4] sm:$0xf]
        %v2226 = vld [vmem:[%s3 + $0x8] sm:$0xf]
        %v2227 = vld [vmem:[%s3 + $0xc] sm:$0xf]
        %v2228 = vld [vmem:[%s4] sm:$0x1]
        %v2230 = vlaneseq
        %v2231 = vshrl.u32 %v2230, 7
        %v2232 = vsub.s32 0, %v2231
        %v2233 = vrot.slane %v2228, %v2232
        %v2239 = vunpack.c.l.b16 %v2224
        %v2240 = vunpack.c.l.b16 %v2225
        %v2241 = vunpack.c.l.b16 %v2226
        %v2242 = vunpack.c.l.b16 %v2227
        %v2243 = vpack.c.b16 %v2240, %v2239
        %v2244 = vpack.c.b16 %v2242, %v2241
        %vm2247 = vcmask 261120
        %v2249 = vsel %vm2247, %v2215, 0
        %v2252 = vsel %vm2247, %v2216, 0
        %v2255 = vsel %vm2247, %v2217, 0
        %v2258 = vsel %vm2247, %v2218, 0
        %v2261 = vsel %vm2247, %v2219, 0
        %v2264 = vsel %vm2247, %v2220, 0
        %v2267 = vsel %vm2247, %v2221, 0
        %v2270 = vsel %vm2247, %v2222, 0
        %v2273 = vsel %vm2247, %v2223, 0
        %2275 = vmatprep.subr.bf16.mxu0 0
        %2276 = vmatpush1.bf16.msra.mxu0 %v2243
        %2277 = vmatprep.subr.bf16.mxu0 0
        %2278 = vmatpush1.bf16.msra.mxu0 %v2244
        %2279 = vmatprep.subr.bf16.mxu0 0
        %2280 = vmatpush1.bf16.msra.mxu0 0
        %2281 = vmatprep.subr.bf16.mxu0 0
        %2282 = vmatpush1.bf16.msra.mxu0 0
        %2283 = vmatprep.subr.bf16.mxu0 0
        %2284 = vmatpush1.bf16.msra.mxu0 0
        %2285 = vmatprep.subr.bf16.mxu0 0
        %2286 = vmatpush1.bf16.msra.mxu0 0
        %2287 = vmatprep.subr.bf16.mxu0 0
        %2288 = vmatpush1.bf16.msra.mxu0 0
        %2289 = vmatprep.subr.bf16.mxu0 0
        %2290 = vmatpush1.bf16.msra.mxu0 0
        %2291 = vmatprep.subr.bf16.mxu0 0
        %2292 = vmatpush1.bf16.msra.mxu0 0
        %2293 = vmatprep.subr.bf16.mxu0 0
        %2294 = vmatpush1.bf16.msra.mxu0 0
        %2295 = vmatprep.subr.bf16.mxu0 0
        %2296 = vmatpush1.bf16.msra.mxu0 0
        %2297 = vmatprep.subr.bf16.mxu0 0
        %2298 = vmatpush1.bf16.msra.mxu0 0
        %2299 = vmatprep.subr.bf16.mxu0 0
        %2300 = vmatpush1.bf16.msra.mxu0 0
        %2301 = vmatprep.subr.bf16.mxu0 0
        %2302 = vmatpush1.bf16.msra.mxu0 0
        %2303 = vmatprep.subr.bf16.mxu0 0
        %2304 = vmatpush1.bf16.msra.mxu0 0
        %2305 = vmatprep.subr.bf16.mxu0 0
        %2306 = vmatpush1.bf16.msra.mxu0 0
        %2307 = vmatprep.mubr.bf16.mxu0 0
        %2308 = vmatmul.mubr.bf16.gmra.mrb[0].mxu0 %v2249
        %v2309 = vpop.f32.mrb[0].mxu0
        %v2310 = vadd.f32 %v2233, %v2309
        %v2311 = vpop.f32.mrb[0].mxu0
        %v2312 = vpop.f32.mrb[0].mxu0
        %v2313 = vadd.f32 %v2233, %v2312
        %v2314 = vpop.f32.mrb[0].mxu0
        %2315 = vmatprep.mubr.bf16.mxu0 0
        %2316 = vmatmul.mubr.bf16.gmra.mrb[0].mxu0 %v2252
        %v2317 = vpop.f32.mrb[0].mxu0
        %v2318 = vadd.f32 %v2233, %v2317
        %v2319 = vpop.f32.mrb[0].mxu0
        %v2320 = vpop.f32.mrb[0].mxu0
        %v2321 = vadd.f32 %v2233, %v2320
        %v2322 = vpop.f32.mrb[0].mxu0
        %2323 = vmatprep.mubr.bf16.mxu0 0
        %2324 = vmatmul.mubr.bf16.gmra.mrb[0].mxu0 %v2255
        %v2325 = vpop.f32.mrb[0].mxu0
        %v2326 = vadd.f32 %v2233, %v2325
        %v2327 = vpop.f32.mrb[0].mxu0
        %v2328 = vpop.f32.mrb[0].mxu0
        %v2329 = vadd.f32 %v2233, %v2328
        %v2330 = vpop.f32.mrb[0].mxu0
        %2331 = vmatprep.mubr.bf16.mxu0 0
        %2332 = vmatmul.mubr.bf16.gmra.mrb[0].mxu0 %v2258
        %v2333 = vpop.f32.mrb[0].mxu0
        %v2334 = vadd.f32 %v2233, %v2333
        %v2335 = vpop.f32.mrb[0].mxu0
        %v2336 = vpop.f32.mrb[0].mxu0
        %v2337 = vadd.f32 %v2233, %v2336
        %v2338 = vpop.f32.mrb[0].mxu0
        %2339 = vmatprep.mubr.bf16.mxu0 0
        %2340 = vmatmul.mubr.bf16.gmra.mrb[0].mxu0 %v2261
        %v2341 = vpop.f32.mrb[0].mxu0
        %v2342 = vadd.f32 %v2233, %v2341
        %v2343 = vpop.f32.mrb[0].mxu0
        %v2344 = vpop.f32.mrb[0].mxu0
        %v2345 = vadd.f32 %v2233, %v2344
        %v2346 = vpop.f32.mrb[0].mxu0
        %2347 = vmatprep.mubr.bf16.mxu0 0
        %2348 = vmatmul.mubr.bf16.gmra.mrb[0].mxu0 %v2264
        %v2349 = vpop.f32.mrb[0].mxu0
        %v2350 = vadd.f32 %v2233, %v2349
        %v2351 = vpop.f32.mrb[0].mxu0
        %v2352 = vpop.f32.mrb[0].mxu0
        %v2353 = vadd.f32 %v2233, %v2352
        %v2354 = vpop.f32.mrb[0].mxu0
        %2355 = vmatprep.mubr.bf16.mxu0 0
        %2356 = vmatmul.mubr.bf16.gmra.mrb[0].mxu0 %v2267
        %v2357 = vpop.f32.mrb[0].mxu0
        %v2358 = vadd.f32 %v2233, %v2357
        %v2359 = vpop.f32.mrb[0].mxu0
        %v2360 = vpop.f32.mrb[0].mxu0
        %v2361 = vadd.f32 %v2233, %v2360
        %v2362 = vpop.f32.mrb[0].mxu0
        %2363 = vmatprep.mubr.bf16.mxu0 0
        %2364 = vmatmul.mubr.bf16.gmra.mrb[0].mxu0 %v2270
        %v2365 = vpop.f32.mrb[0].mxu0
        %v2366 = vadd.f32 %v2233, %v2365
        %v2367 = vpop.f32.mrb[0].mxu0
        %v2368 = vpop.f32.mrb[0].mxu0
        %v2369 = vadd.f32 %v2233, %v2368
        %v2370 = vpop.f32.mrb[0].mxu0
        %2371 = vmatprep.mubr.bf16.mxu0 0
        %2372 = vmatmul.mubr.bf16.gmra.mrb[0].mxu0 %v2273
        %v2373 = vpop.f32.mrb[0].mxu0
        %v2374 = vadd.f32 %v2233, %v2373
        %v2375 = vpop.f32.mrb[0].mxu0
        %v2376 = vpop.f32.mrb[0].mxu0
        %v2377 = vadd.f32 %v2233, %v2376
        %v2378 = vpop.f32.mrb[0].mxu0
        %2379 = vdwg.mxu0
        %v2380 = vsub.f32 0.0, %v2310
        %v2381 = vsub.f32 0.0, %v2313
        %v2382 = vsub.f32 0.0, %v2318
        %v2383 = vsub.f32 0.0, %v2321
        %v2384 = vsub.f32 0.0, %v2326
        %v2385 = vsub.f32 0.0, %v2329
        %v2386 = vsub.f32 0.0, %v2334
        %v2387 = vsub.f32 0.0, %v2337
        %v2388 = vsub.f32 0.0, %v2342
        %v2389 = vsub.f32 0.0, %v2345
        %v2390 = vsub.f32 0.0, %v2350
        %v2391 = vsub.f32 0.0, %v2353
        %v2392 = vsub.f32 0.0, %v2358
        %v2393 = vsub.f32 0.0, %v2361
        %v2394 = vsub.f32 0.0, %v2366
        %v2395 = vsub.f32 0.0, %v2369
        %v2396 = vsub.f32 0.0, %v2374
        %v2397 = vsub.f32 0.0, %v2377
        %v2398 = vmul.f32 %v2380, 1.442695
        %v2399 = vpow.pop %v2398
        %v2400 = vmul.f32 %v2381, 1.442695
        %v2401 = vpow.pop %v2400
        %v2402 = vmul.f32 %v2382, 1.442695
        %v2403 = vpow.pop %v2402
        %v2404 = vmul.f32 %v2383, 1.442695
        %v2405 = vpow.pop %v2404
        %v2406 = vmul.f32 %v2384, 1.442695
        %v2407 = vpow.pop %v2406
        %v2408 = vmul.f32 %v2385, 1.442695
        %v2409 = vpow.pop %v2408
        %v2410 = vmul.f32 %v2386, 1.442695
        %v2411 = vpow.pop %v2410
        %v2412 = vmul.f32 %v2387, 1.442695
        %v2413 = vpow.pop %v2412
        %v2414 = vmul.f32 %v2388, 1.442695
        %v2415 = vpow.pop %v2414
        %v2416 = vmul.f32 %v2389, 1.442695
        %v2417 = vpow.pop %v2416
        %v2418 = vmul.f32 %v2390, 1.442695
        %v2419 = vpow.pop %v2418
        %v2420 = vmul.f32 %v2391, 1.442695
        %v2421 = vpow.pop %v2420
        %v2422 = vmul.f32 %v2392, 1.442695
        %v2423 = vpow.pop %v2422
        %v2424 = vmul.f32 %v2393, 1.442695
        %v2425 = vpow.pop %v2424
        %v2426 = vmul.f32 %v2394, 1.442695
        %v2427 = vpow.pop %v2426
        %v2428 = vmul.f32 %v2395, 1.442695
        %v2429 = vpow.pop %v2428
        %v2430 = vmul.f32 %v2396, 1.442695
        %v2431 = vpow.pop %v2430
        %v2432 = vmul.f32 %v2397, 1.442695
        %v2433 = vpow.pop %v2432
        %v2434 = vadd.f32 %v2399, 1.0
        %v2435 = vadd.f32 %v2401, 1.0
        %v2436 = vadd.f32 %v2403, 1.0
        %v2437 = vadd.f32 %v2405, 1.0
        %v2438 = vadd.f32 %v2407, 1.0
        %v2439 = vadd.f32 %v2409, 1.0
        %v2440 = vadd.f32 %v2411, 1.0
        %v2441 = vadd.f32 %v2413, 1.0
        %v2442 = vadd.f32 %v2415, 1.0
        %v2443 = vadd.f32 %v2417, 1.0
        %v2444 = vadd.f32 %v2419, 1.0
        %v2445 = vadd.f32 %v2421, 1.0
        %v2446 = vadd.f32 %v2423, 1.0
        %v2447 = vadd.f32 %v2425, 1.0
        %v2448 = vadd.f32 %v2427, 1.0
        %v2449 = vadd.f32 %v2429, 1.0
        %v2450 = vadd.f32 %v2431, 1.0
        %v2451 = vadd.f32 %v2433, 1.0
        %v2452 = vrcp.pop %v2434
        %v2453 = vrcp.pop %v2435
        %v2454 = vrcp.pop %v2436
        %v2455 = vrcp.pop %v2437
        %v2456 = vrcp.pop %v2438
        %v2457 = vrcp.pop %v2439
        %v2458 = vrcp.pop %v2440
        %v2459 = vrcp.pop %v2441
        %v2460 = vrcp.pop %v2442
        %v2461 = vrcp.pop %v2443
        %v2462 = vrcp.pop %v2444
        %v2463 = vrcp.pop %v2445
        %v2464 = vrcp.pop %v2446
        %v2465 = vrcp.pop %v2447
        %v2466 = vrcp.pop %v2448
        %v2467 = vrcp.pop %v2449
        %v2468 = vrcp.pop %v2450
        %v2469 = vrcp.pop %v2451
        %v2470 = vlaneseq
        %v2471 = vand.u32 %v2470, 127
        %vm2472 = vcmp.lt.s32.totalorder %v2471, 18
        %v2473 = vsel %vm2472, %v2452, %v2310
        %v2474 = vsel %vm2472, %v2453, %v2313
        %v2475 = vsel %vm2472, %v2454, %v2318
        %v2476 = vsel %vm2472, %v2455, %v2321
        %v2477 = vsel %vm2472, %v2456, %v2326
        %v2478 = vsel %vm2472, %v2457, %v2329
        %v2479 = vsel %vm2472, %v2458, %v2334
        %v2480 = vsel %vm2472, %v2459, %v2337
        %v2481 = vsel %vm2472, %v2460, %v2342
        %v2482 = vsel %vm2472, %v2461, %v2345
        %v2483 = vsel %vm2472, %v2462, %v2350
        %v2484 = vsel %vm2472, %v2463, %v2353
        %v2485 = vsel %vm2472, %v2464, %v2358
        %v2486 = vsel %vm2472, %v2465, %v2361
        %v2487 = vsel %vm2472, %v2466, %v2366
        %v2488 = vsel %vm2472, %v2467, %v2369
        %v2489 = vsel %vm2472, %v2468, %v2374
        %v2490 = vsel %vm2472, %v2469, %v2377
        %2491 = vst [vmem:[%s217] sm:$0xff] %v2473
        %2492 = vst [vmem:[%s217 + $0x8] sm:$0xff] %v2474
        %2493 = vst [vmem:[%s217 + $0x10] sm:$0xff] %v2475
        %2494 = vst [vmem:[%s217 + $0x18] sm:$0xff] %v2476
        %2495 = vst [vmem:[%s217 + $0x20] sm:$0xff] %v2477
        %2496 = vst [vmem:[%s217 + $0x28] sm:$0xff] %v2478
        %2497 = vst [vmem:[%s217 + $0x30] sm:$0xff] %v2479
        %2498 = vst [vmem:[%s217 + $0x38] sm:$0xff] %v2480
        %2499 = vst [vmem:[%s217 + $0x40] sm:$0xff] %v2481
        %2500 = vst [vmem:[%s217 + $0x48] sm:$0xff] %v2482
        %2501 = vst [vmem:[%s217 + $0x50] sm:$0xff] %v2483
        %2502 = vst [vmem:[%s217 + $0x58] sm:$0xff] %v2484
        %2503 = vst [vmem:[%s217 + $0x60] sm:$0xff] %v2485
        %2504 = vst [vmem:[%s217 + $0x68] sm:$0xff] %v2486
        %2505 = vst [vmem:[%s217 + $0x70] sm:$0xff] %v2487
        %2506 = vst [vmem:[%s217 + $0x78] sm:$0xff] %v2488
        %2507 = vst [vmem:[%s217 + $0x80] sm:$0xff] %v2489
        %2508 = vst [vmem:[%s217 + $0x88] sm:$0xff] %v2490
        %s2509 = sand.u32 %s137, 1
        %s2510 = scalar_lea.sflag [#allocation3], %s2509
        %s2511 = sand.u32 %s137, 1
        %s2512 = smul.addr %s2511, 144
        %s2513 = scalar_lea.vmem [#allocation2], %s2512
        // Predicated region
        $region41: #{tpu_custom_call.1} parent=39 // pred_check
          %p2514 = pneg %p147
        $region42: #{tpu_custom_call.1} parent=39 // pred_check_branch
          %2516 = sbr.rel (%p2514) target = $region44
        $region43: #{tpu_custom_call.1} parent=39 // pred_region
          %s2518 = ssub.s32 2304, 2304
          %2519 = vsyncadd %s2510, %s2518
          %s2520 = smul.addr %s19, 18
          %s2521 = smul.addr %s2520, 128
          %s2522 = scalar_lea.hbm %s5, %s2521
          %s2523 = sshll.u32 %s2513, 4
          %s2524 = int_to_ptr.vmem [resolvable:$true] %s2523
          %2529 = dma.vmem_to_hbm [thread:$0]  %s2524, 2304, %s2522, %s2510, 128, 128, 8
        $region44: #{tpu_custom_call.1} parent=39 // pred_fallthru
          _
      $region40: #{tpu_custom_call.1} parent=5 // pred_fallthru
        _
      %p2530 = scmp.le.s32.totalorder 2, %s14
      // Predicated region
      $region45: #{tpu_custom_call.1} parent=5 // pred_check
        %p2531 = pneg %p2530
      $region46: #{tpu_custom_call.1} parent=5 // pred_check_branch
        %2533 = sbr.rel (%p2531) target = $region48
      $region47: #{tpu_custom_call.1} parent=5 // pred_region
        %s2534 = ssub.s32 %s14, 2
        // Predicated region
        $region49: #{tpu_custom_call.1} parent=47 // pred_check
          %p2535 = pneg %p153
        $region50: #{tpu_custom_call.1} parent=47 // pred_check_branch
          %2537 = sbr.rel (%p2535) target = $region52
        $region51: #{tpu_custom_call.1} parent=47 // pred_region
          %s2538 = sand.u32 %s138, 1
          %s2539 = scalar_lea.sflag [#allocation3], %s2538
          %s2540 = sand.u32 %s138, 1
          %s2541 = smul.addr %s2540, 144
          %s2542 = scalar_lea.vmem [#allocation2], %s2541
          %2543 = dma.done %s2539, 2304
        $region52: #{tpu_custom_call.1} parent=47 // pred_fallthru
          _
      $region48: #{tpu_custom_call.1} parent=5 // pred_fallthru
        _
    $region6: #{tpu_custom_call.1} parent=1 // loop_footer
      %s18 = sadd.s32 1, %s14
    $region7: #{tpu_custom_call.1} parent=1 // loop_footer_branch
      %13 = sbr.rel target = $region3
    $region8: #{tpu_custom_call.1} parent=1 // loop_exit
      _
    %2544 = vsyncpa [#allocation3], 1
    %s2545 = scalar_lea.sflag [#allocation3], 1
    %2546 = vsyncpa %s2545, 1

</llo_original>
